<compile_context>
chip_gen: v5e
topology: v5e:2x2
jax: 0.10.0
libtpu: 0.0.40
codegen_flags: <defaults>
</compile_context>

<pallas_src>
import math
from functools import partial

import numpy as np
import jax
import jax.numpy as jnp
from jax import lax
from jax.experimental import pallas as pl
from jax.experimental.pallas import tpu as pltpu


# ----------------------------------------------------------------------------
# sin/cos positional embeddings (numpy, verbatim semantics of the reference)
# ----------------------------------------------------------------------------
def get_1d_sincos_pos_embed_from_grid(embed_dim, pos):
    assert embed_dim % 2 == 0
    omega = np.arange(embed_dim // 2, dtype=np.float32)
    omega /= embed_dim / 2.0
    omega = 1.0 / 10000 ** omega
    pos = pos.reshape(-1)
    out = np.einsum('m,d->md', pos, omega)
    emb_sin = np.sin(out)
    emb_cos = np.cos(out)
    return np.concatenate([emb_sin, emb_cos], axis=1)


def get_2d_sincos_pos_embed_from_grid(embed_dim, grid):
    assert embed_dim % 2 == 0
    emb_h = get_1d_sincos_pos_embed_from_grid(embed_dim // 2, grid[0])
    emb_w = get_1d_sincos_pos_embed_from_grid(embed_dim // 2, grid[1])
    return np.concatenate([emb_h, emb_w], axis=1)


def get_2d_sincos_pos_embed(embed_dim, grid_size_h, grid_size_w):
    grid_h = np.arange(grid_size_h, dtype=np.float32)
    grid_w = np.arange(grid_size_w, dtype=np.float32)
    grid = np.meshgrid(grid_w, grid_h)
    grid = np.stack(grid, axis=0).reshape([2, 1, grid_size_h, grid_size_w])
    return get_2d_sincos_pos_embed_from_grid(embed_dim, grid)


# ----------------------------------------------------------------------------
# Generation-aware tile sizing / compiler params.
# ----------------------------------------------------------------------------
def _detect_tiles():
    kind = ""
    try:
        kind = jax.devices()[0].device_kind.lower()
    except Exception:
        pass
    if ("v5" in kind) or ("v6" in kind):
        # v5e/v6e: 128 MiB physical VMEM, kernels are HBM-bound -> bigger row /
        # reduction tiles plus an explicit scoped-VMEM limit above the default.
        return {"tm": 512, "tn": 256, "tk": 1024, "vmem": 64 * 1024 * 1024}
    # v7x (64 MiB physical VMEM, 2 TCs) and unknown chips: conservative budget,
    # default scoped limit.
    return {"tm": 256, "tn": 256, "tk": 512, "vmem": None}


_TILES = _detect_tiles()


def _cparams(dims):
    return pltpu.CompilerParams(dimension_semantics=dims,
                                vmem_limit_bytes=_TILES["vmem"])


def _pick_tile(dim, target, align):
    """Largest multiple-of-`align` divisor of `dim` that is <= target.

    Returns the full dim when dim <= target or when no aligned divisor exists
    (a full-extent block always satisfies the (8,128) BlockSpec rule)."""
    if dim <= target:
        return dim
    t = (target // align) * align
    while t >= align:
        if dim % t == 0:
            return t
        t -= align
    return dim


# ----------------------------------------------------------------------------
# In-kernel exact-form GELU.
# erf via Abramowitz & Stegun 7.1.26 (max abs err ~1.5e-7, float32-level), so the
# fused GELU matches nn.GELU() (erf form) to f32 precision using only VPU/EUP ops.
# ----------------------------------------------------------------------------
def _erf_approx(x):
    a1, a2, a3, a4, a5 = (0.254829592, -0.284496736, 1.421413741,
                          -1.453152027, 1.061405429)
    pp = 0.3275911
    ax = jnp.abs(x)
    t = 1.0 / (1.0 + pp * ax)
    poly = ((((a5 * t + a4) * t + a3) * t + a2) * t + a1) * t
    y = 1.0 - poly * jnp.exp(-ax * ax)
    return jnp.where(x >= 0, y, -y)


def _gelu_exact(x):
    return 0.5 * x * (1.0 + _erf_approx(x * (1.0 / math.sqrt(2.0))))


# ----------------------------------------------------------------------------
# Kernel 1: fused LayerNorm + Linear (+ optional GELU, optional nan_to_num)
#   grid = (M/tm, Nout/tn), both axes "parallel".  LN of the (tm, K) row tile is
#   recomputed per output-column tile: cheap VPU work next to the MXU matmul, and
#   dropping the scratch fits the v7x VMEM budget + enables megacore on both axes.
# ----------------------------------------------------------------------------
def _ln_linear_kernel(x_ref, g_ref, b_ref, w_ref, bias_ref, o_ref, *,
                      activation, nan_guard):
    x = x_ref[...]
    mean = jnp.mean(x, axis=-1, keepdims=True)
    xc = x - mean
    var = jnp.mean(xc * xc, axis=-1, keepdims=True)
    inv = lax.rsqrt(var + 1e-5)            # torch LayerNorm eps, biased variance
    xn = xc * inv * g_ref[...] + b_ref[...]

    # bf16 MXU operands, f32 accumulation.
    y = jnp.dot(xn.astype(jnp.bfloat16), w_ref[...].astype(jnp.bfloat16),
                preferred_element_type=jnp.float32) + bias_ref[...]
    if activation == "gelu":
        y = _gelu_exact(y)
    if nan_guard:
        # fused nan_to_num (NaN -> 0, +/-inf -> +/-float32 max), matches the
        # reference's trailing x.nan_to_num() without an extra HBM pass.
        y = jnp.where(jnp.isnan(y), 0.0, y)
        big = jnp.float32(np.finfo(np.float32).max)
        y = jnp.clip(y, -big, big)
    o_ref[...] = y


def fused_layernorm_linear(x, gamma, beta, w, b, *, activation=None,
                           nan_guard=False):
    """LayerNorm(x) @ w + b, x: (M, K), w: (K, N), b: (N,) -> (M, N)."""
    M, K = x.shape
    Nout = w.shape[1]
    tm = _pick_tile(M, _TILES["tm"], 8)
    tn = _pick_tile(Nout, _TILES["tn"], 128)
    grid = (M // tm, Nout // tn)
    return pl.pallas_call(
        partial(_ln_linear_kernel, activation=activation, nan_guard=nan_guard),
        grid_spec=pltpu.PrefetchScalarGridSpec(
            num_scalar_prefetch=0,
            grid=grid,
            in_specs=[
                pl.BlockSpec((tm, K), lambda i, j: (i, 0)),
                pl.BlockSpec((1, K), lambda i, j: (0, 0)),
                pl.BlockSpec((1, K), lambda i, j: (0, 0)),
                pl.BlockSpec((K, tn), lambda i, j: (0, j)),
                pl.BlockSpec((1, tn), lambda i, j: (0, j)),
            ],
            out_specs=pl.BlockSpec((tm, tn), lambda i, j: (i, j)),
        ),
        out_shape=jax.ShapeDtypeStruct((M, Nout), jnp.float32),
        compiler_params=_cparams(("parallel", "parallel")),
    )(x, gamma.reshape(1, K), beta.reshape(1, K), w, b.reshape(1, Nout))


# ----------------------------------------------------------------------------
# Kernel 2: tiled Linear with K-reduction grid axis + fused bias + residual add
# ----------------------------------------------------------------------------
def _linear_residual_kernel(x_ref, w_ref, bias_ref, res_ref, o_ref, acc_ref):
    @pl.when(pl.program_id(2) == 0)
    def _():
        acc_ref[...] = jnp.zeros_like(acc_ref)

    acc_ref[...] += jnp.dot(x_ref[...].astype(jnp.bfloat16),
                            w_ref[...].astype(jnp.bfloat16),
                            preferred_element_type=jnp.float32)

    @pl.when(pl.program_id(2) == pl.num_programs(2) - 1)
    def _():
        o_ref[...] = acc_ref[...] + bias_ref[...] + res_ref[...]


def fused_linear_residual(x, w, b, res):
    """x @ w + b + res, x: (M, K), w: (K, N), b: (N,), res: (M, N) -> (M, N)."""
    M, K = x.shape
    Nout = w.shape[1]
    tm = _pick_tile(M, _TILES["tm"], 8)
    tn = _pick_tile(Nout, _TILES["tn"], 128)
    tk = _pick_tile(K, _TILES["tk"], 128)
    grid = (M // tm, Nout // tn, K // tk)
    return pl.pallas_call(
        _linear_residual_kernel,
        grid_spec=pltpu.PrefetchScalarGridSpec(
            num_scalar_prefetch=0,
            grid=grid,
            in_specs=[
                pl.BlockSpec((tm, tk), lambda i, j, k: (i, k)),
                pl.BlockSpec((tk, tn), lambda i, j, k: (k, j)),
                pl.BlockSpec((1, tn), lambda i, j, k: (0, j)),
                pl.BlockSpec((tm, tn), lambda i, j, k: (i, j)),
            ],
            out_specs=pl.BlockSpec((tm, tn), lambda i, j, k: (i, j)),
            scratch_shapes=[pltpu.VMEM((tm, tn), jnp.float32)],
        ),
        out_shape=jax.ShapeDtypeStruct((M, Nout), jnp.float32),
        compiler_params=_cparams(("parallel", "parallel", "arbitrary")),
    )(x, w, b.reshape(1, Nout), res)


# ----------------------------------------------------------------------------
# Kernel 3: fused patch embedding
#   one (L, C*P2) x (C*P2, D) matmul per sample (1/C folded into the weights),
#   epilogue adds pos_embed (per token) and the per-sample additive
#   (mean_c(conv_bias_c + channel_embed_c) + time_pos_embed[t] + lead_time_emb[b]).
# ----------------------------------------------------------------------------
def _patch_embed_kernel(p_ref, w_ref, pos_ref, add_ref, o_ref):
    o_ref[0] = (jnp.dot(p_ref[0].astype(jnp.bfloat16),
                        w_ref[...].astype(jnp.bfloat16),
                        preferred_element_type=jnp.float32)
                + pos_ref[...] + add_ref[0])


def patch_embed_pallas(patches, w_flat, pos_embed, add_n):
    """patches: (N, L, C*P2), w_flat: (C*P2, D), pos_embed: (L, D), add_n: (N, 1, D)."""
    # TODO(synk): fold the host-side (N,C,H,W)->(N,L,C*P2) patch transpose into this
    # kernel via per-channel BlockSpec slabs to save one full HBM copy of the input.
    N, L, CP2 = patches.shape
    D = w_flat.shape[1]
    return pl.pallas_call(
        _patch_embed_kernel,
        grid_spec=pltpu.PrefetchScalarGridSpec(
            num_scalar_prefetch=0,
            grid=(N,),
            in_specs=[
                pl.BlockSpec((1, L, CP2), lambda n: (n, 0, 0)),
                pl.BlockSpec((CP2, D), lambda n: (0, 0)),
                pl.BlockSpec((L, D), lambda n: (0, 0)),
                pl.BlockSpec((1, 1, D), lambda n: (n, 0, 0)),
            ],
            out_specs=pl.BlockSpec((1, L, D), lambda n: (n, 0, 0)),
        ),
        out_shape=jax.ShapeDtypeStruct((N, L, D), jnp.float32),
        compiler_params=_cparams(("parallel",)),
    )(patches, w_flat, pos_embed, add_n)


# ----------------------------------------------------------------------------
# Kernel 4: multi-head self-attention
#   grid = (sample, q_row_tile): the per-head score matrix is bounded to (tq, L);
#   scale is folded into q; qkv is sliced straight out of the (N, L, 3, H, dh)
#   view (no host transpose); the output block is a lane-dense (tq, D) slab (one
#   dense HBM store per step instead of H narrow (L, dh) strided stores).
#   Heads are a *static* loop so the h*dh output lane offset is a static slice.
# ----------------------------------------------------------------------------
def _mha_kernel(q_ref, k_ref, v_ref, o_ref, *, scale, num_heads, head_dim):
    # q_ref: (tq, H, dh); k_ref/v_ref: (L, H, dh); o_ref: (tq, H*dh)
    for h in range(num_heads):                       # static: static lane offsets
        q = (q_ref[:, h, :] * scale).astype(jnp.bfloat16)   # scale folded into q
        k = k_ref[:, h, :].astype(jnp.bfloat16)
        v = v_ref[:, h, :].astype(jnp.bfloat16)
        s = lax.dot_general(q, k, (((1,), (1,)), ((), ())),
                            preferred_element_type=jnp.float32)      # (tq, L)
        m = jnp.max(s, axis=-1, keepdims=True)
        e = jnp.exp(s - m)
        p = e * pl.reciprocal(jnp.sum(e, axis=-1, keepdims=True), approx=True)
        o_ref[:, h * head_dim:(h + 1) * head_dim] = jnp.dot(
            p.astype(jnp.bfloat16), v, preferred_element_type=jnp.float32)


def attention_pallas(qkv, num_heads):
    """qkv: (N, L, 3, H, dh) -> (N, L, H*dh) (lane-dense output)."""
    N, L, _, H, dh = qkv.shape
    D = H * dh
    scale = dh ** -0.5
    tq = _pick_tile(L, 256, 8)          # q-row tile; k/v stay resident per sample
    # TODO(synk): flash-style online softmax over kv tiles for very long sequences.
    qspec = pl.BlockSpec((None, tq, None, H, dh), lambda n, qi: (n, qi, 0, 0, 0))
    kspec = pl.BlockSpec((None, L, None, H, dh), lambda n, qi: (n, 0, 1, 0, 0))
    vspec = pl.BlockSpec((None, L, None, H, dh), lambda n, qi: (n, 0, 2, 0, 0))
    return pl.pallas_call(
        partial(_mha_kernel, scale=scale, num_heads=H, head_dim=dh),
        grid_spec=pltpu.PrefetchScalarGridSpec(
            num_scalar_prefetch=0,
            grid=(N, L // tq),
            in_specs=[qspec, kspec, vspec],
            out_specs=pl.BlockSpec((None, tq, D), lambda n, qi: (n, qi, 0)),
        ),
        out_shape=jax.ShapeDtypeStruct((N, L, D), jnp.float32),
        compiler_params=_cparams(("parallel", "parallel")),
    )(qkv, qkv, qkv)


# ----------------------------------------------------------------------------
# Parameter initialization (deterministic, xavier-uniform like the PyTorch init)
# ----------------------------------------------------------------------------
def xavier_uniform(key, shape, fan_in, fan_out):
    limit = math.sqrt(6.0 / (fan_in + fan_out))
    return jax.random.uniform(key, shape, jnp.float32, -limit, limit)


def init_params(key, cfg):
    C_in = cfg["c_in"]
    C_out = cfg["c_out"]
    D = cfg["embed_dim"]
    p = cfg["patch_size"]
    depth = cfg["depth"]
    T = cfg["time_history"]
    H, W = cfg["img_size"]
    hidden = int(D * cfg["mlp_ratio"])
    P2 = p * p
    L = (H // p) * (W // p)

    keys = iter(jax.random.split(key, 16 + 8 * depth))
    params = {}

    # per-variable PatchEmbed conv (kernel=stride=p), as a (P2, D) matmul
    pw = []
    for _ in range(C_in):
        w_conv = xavier_uniform(next(keys), (D, P2), P2, D)   # xavier on (D, p*p) view
        pw.append(w_conv.T)                                   # (P2, D)
    params["patch_w"] = jnp.stack(pw, axis=0)                 # (C, P2, D)
    params["patch_b"] = jnp.zeros((C_in, D), jnp.float32)     # conv bias (zero init)

    # fixed (non-learnable) sincos position / channel / time embeddings
    params["pos_embed"] = jnp.asarray(
        get_2d_sincos_pos_embed(D, H // p, W // p), jnp.float32)            # (L, D)
    assert params["pos_embed"].shape == (L, D)
    params["channel_embed"] = jnp.asarray(
        get_1d_sincos_pos_embed_from_grid(D, np.arange(C_in)), jnp.float32)  # (C, D)
    params["time_pos_embed"] = jnp.asarray(
        get_1d_sincos_pos_embed_from_grid(D, np.arange(T)), jnp.float32)     # (T, D)

    # lead-time linear (1 -> D)
    params["lt_w"] = xavier_uniform(next(keys), (1, D), 1, D)
    params["lt_b"] = jnp.zeros((D,), jnp.float32)

    # transformer blocks
    blocks = []
    for _ in range(depth):
        bp = {
            "n1_g": jnp.ones((D,), jnp.float32),
            "n1_b": jnp.zeros((D,), jnp.float32),
            "qkv_w": xavier_uniform(next(keys), (D, 3 * D), D, 3 * D),
            "qkv_b": jnp.zeros((3 * D,), jnp.float32),
            "proj_w": xavier_uniform(next(keys), (D, D), D, D),
            "proj_b": jnp.zeros((D,), jnp.float32),
            "n2_g": jnp.ones((D,), jnp.float32),
            "n2_b": jnp.zeros((D,), jnp.float32),
            "fc1_w": xavier_uniform(next(keys), (D, hidden), D, hidden),
            "fc1_b": jnp.zeros((hidden,), jnp.float32),
            "fc2_w": xavier_uniform(next(keys), (hidden, D), hidden, D),
            "fc2_b": jnp.zeros((D,), jnp.float32),
        }
        blocks.append(bp)
    params["blocks"] = blocks

    # final norm + linear head
    params["norm_g"] = jnp.ones((D,), jnp.float32)
    params["norm_b"] = jnp.zeros((D,), jnp.float32)
    params["head_w"] = xavier_uniform(next(keys), (D, C_out * P2), D, C_out * P2)
    params["head_b"] = jnp.zeros((C_out * P2,), jnp.float32)
    return params


# ----------------------------------------------------------------------------
# Forward pass
# ----------------------------------------------------------------------------
def block_forward(x2, bp, N, L, num_heads):
    """Pre-norm ViT block (timm Block).  x2: (N*L, D)."""
    M, D = x2.shape
    dh = D // num_heads

    # LN1 + qkv (fused)
    qkv = fused_layernorm_linear(x2, bp["n1_g"], bp["n1_b"],
                                 bp["qkv_w"], bp["qkv_b"])          # (M, 3D)
    qkv = qkv.reshape(N, L, 3, num_heads, dh)                       # view, no copy
    attn = attention_pallas(qkv, num_heads)                         # (N, L, D)
    attn = attn.reshape(M, D)                                       # view, no copy
    # attn proj + residual (fused); drop_path = identity
    x2 = fused_linear_residual(attn, bp["proj_w"], bp["proj_b"], x2)

    # LN2 + fc1 + GELU (fused), then fc2 + residual (fused)
    h1 = fused_layernorm_linear(x2, bp["n2_g"], bp["n2_b"],
                                bp["fc1_w"], bp["fc1_b"], activation="gelu")
    x2 = fused_linear_residual(h1, bp["fc2_w"], bp["fc2_b"], x2)
    return x2


def climax_forward(params, x, cfg):
    """x: (B, T, C_in, H, W) float32 -> (B, T, C_out, H, W)."""
    B, T, C, H, W = x.shape
    p = cfg["patch_size"]
    D = cfg["embed_dim"]
    C_out = cfg["c_out"]
    num_heads = cfg["num_heads"]
    h, w = H // p, W // p
    L = h * w
    N = B * T
    P2 = p * p

    x = x.reshape(N, C, H, W).astype(jnp.float32)
    # patches ordered (c, pi, pj) along the last axis to match the stacked conv
    # weights; same values as Conv2d(stride=p) + flatten in the reference.
    patches = (x.reshape(N, C, h, p, w, p)
                 .transpose(0, 2, 4, 1, 3, 5)          # (N, h, w, C, p, p)
                 .reshape(N, L, C * P2))

    # Host-side prep (tiny): fold the channel mean (1/C) into the weights and the
    # channel-mean of (conv bias + channel embed) + time embed + lead-time embed
    # into a single per-sample additive vector.
    w_flat = params["patch_w"].reshape(C * P2, D) * (1.0 / C)        # (C*P2, D)
    bias_mean = jnp.mean(params["patch_b"] + params["channel_embed"], axis=0)  # (D,)
    lead_times = jnp.zeros((B,), jnp.float32)                        # as in ClimaX.forward
    lt_emb = lead_times[:, None] @ params["lt_w"] + params["lt_b"]   # (B, D)
    add_bt = (params["time_pos_embed"][None, :, :] + lt_emb[:, None, :]
              + bias_mean[None, None, :])                            # (B, T, D)
    add_n = add_bt.reshape(N, 1, D)

    # fused patch embed + all embedding adds (pos_drop = identity)
    tok = patch_embed_pallas(patches, w_flat, params["pos_embed"], add_n)  # (N, L, D)

    seq = tok.reshape(N * L, D)
    for bp in params["blocks"]:
        seq = block_forward(seq, bp, N, L, num_heads)

    # final norm + linear head + nan_to_num fused into one kernel
    out = fused_layernorm_linear(seq, params["norm_g"], params["norm_b"],
                                 params["head_w"], params["head_b"],
                                 nan_guard=True)                      # (M, C_out*P2)

    # unpatchify: (N, L, p*p*c) -> (N, c, H, W)
    out = out.reshape(N, h, w, p, p, C_out)
    out = jnp.einsum("nhwpqc->nchpwq", out)
    imgs = out.reshape(N, C_out, h * p, w * p)
    preds = imgs.reshape(B, T, C_out, H, W)
    return preds


# ----------------------------------------------------------------------------
if __name__ == "__main__":
    cfg = {
        "img_size": (16, 16),     # [lat, lon] = [H, W]
        "patch_size": 4,
        "c_in": 4,                # ['CO2', 'SO2', 'CH4', 'BC']
        "c_out": 2,               # ['pr', 'tas']
        "embed_dim": 32,
        "depth": 2,
        "num_heads": 4,
        "mlp_ratio": 4.0,
        "time_history": 1,
    }

    key = jax.random.PRNGKey(0)
    k_param, k_data = jax.random.split(key)
    params = init_params(k_param, cfg)

    B, T = 2, cfg["time_history"]
    H, W = cfg["img_size"]
    x = jax.random.normal(k_data, (B, T, cfg["c_in"], H, W), jnp.float32)

    fwd = jax.jit(partial(climax_forward, cfg=cfg))
    preds = fwd(params, x)
    preds = jax.block_until_ready(preds)

    assert preds.shape == (B, T, cfg["c_out"], H, W)
    assert bool(jnp.all(jnp.isfinite(preds)))
    print("KERNEL_OK")
</pallas_src>

<mosaic_0001>
module attributes {stable_mosaic.version = 11 : i64} {
  func.func @_ln_linear_kernel(%arg0: i32, %arg1: i32, %arg2: memref<32x32xf32, #tpu.memory_space<vmem>>, %arg3: memref<1x32xf32, #tpu.memory_space<vmem>>, %arg4: memref<1x32xf32, #tpu.memory_space<vmem>>, %arg5: memref<32x96xf32, #tpu.memory_space<vmem>>, %arg6: memref<1x96xf32, #tpu.memory_space<vmem>>, %arg7: memref<32x96xf32, #tpu.memory_space<vmem>>) attributes {dimension_semantics = [#tpu.dimension_semantics<parallel>, #tpu.dimension_semantics<parallel>], iteration_bounds = array<i64: 1, 1>, scalar_prefetch = 0 : i64, scratch_operands = 0 : i64, tpu.core_type = #tpu.core_type<tc>, window_params = [{transform_indices = @transform_0, window_bounds = array<i64: 32, 32>}, {pipeline_mode = #tpu.pipeline_mode<synchronous>, transform_indices = @transform_1, window_bounds = array<i64: 1, 32>}, {pipeline_mode = #tpu.pipeline_mode<synchronous>, transform_indices = @transform_2, window_bounds = array<i64: 1, 32>}, {transform_indices = @transform_3, window_bounds = array<i64: 32, 96>}, {transform_indices = @transform_4, window_bounds = array<i64: 1, 96>}, {transform_indices = @transform_5, window_bounds = array<i64: 32, 96>}]} {
    %c0 = arith.constant 0 : index
    %c0_0 = arith.constant 0 : index
    %0 = vector.load %arg2[%c0, %c0_0] : memref<32x32xf32, #tpu.memory_space<vmem>>, vector<32x32xf32>
    %cst = arith.constant dense<0.000000e+00> : vector<32xf32>
    %1 = vector.multi_reduction <add>, %0, %cst [1] : vector<32x32xf32> to vector<32xf32>
    %2 = vector.shape_cast %1 : vector<32xf32> to vector<32x1xf32>
    %cst_1 = arith.constant 3.200000e+01 : f32
    %3 = vector.broadcast %cst_1 : f32 to vector<32x1xf32>
    %4 = arith.divf %2, %3 : vector<32x1xf32>
    %5 = vector.broadcast %4 : vector<32x1xf32> to vector<32x32xf32>
    %6 = arith.subf %0, %5 : vector<32x32xf32>
    %7 = arith.mulf %6, %6 : vector<32x32xf32>
    %cst_2 = arith.constant dense<0.000000e+00> : vector<32xf32>
    %8 = vector.multi_reduction <add>, %7, %cst_2 [1] : vector<32x32xf32> to vector<32xf32>
    %9 = vector.shape_cast %8 : vector<32xf32> to vector<32x1xf32>
    %cst_3 = arith.constant 3.200000e+01 : f32
    %10 = vector.broadcast %cst_3 : f32 to vector<32x1xf32>
    %11 = arith.divf %9, %10 : vector<32x1xf32>
    %cst_4 = arith.constant 9.99999974E-6 : f32
    %12 = vector.broadcast %cst_4 : f32 to vector<32x1xf32>
    %13 = arith.addf %11, %12 : vector<32x1xf32>
    %14 = math.rsqrt %13 : vector<32x1xf32>
    %15 = vector.broadcast %14 : vector<32x1xf32> to vector<32x32xf32>
    %16 = arith.mulf %6, %15 : vector<32x32xf32>
    %c0_5 = arith.constant 0 : index
    %c0_6 = arith.constant 0 : index
    %17 = vector.load %arg3[%c0_5, %c0_6] : memref<1x32xf32, #tpu.memory_space<vmem>>, vector<1x32xf32>
    %18 = vector.broadcast %17 : vector<1x32xf32> to vector<32x32xf32>
    %19 = arith.mulf %16, %18 : vector<32x32xf32>
    %c0_7 = arith.constant 0 : index
    %c0_8 = arith.constant 0 : index
    %20 = vector.load %arg4[%c0_7, %c0_8] : memref<1x32xf32, #tpu.memory_space<vmem>>, vector<1x32xf32>
    %21 = vector.broadcast %20 : vector<1x32xf32> to vector<32x32xf32>
    %22 = arith.addf %19, %21 : vector<32x32xf32>
    %23 = arith.truncf %22 : vector<32x32xf32> to vector<32x32xbf16>
    %c0_9 = arith.constant 0 : index
    %c0_10 = arith.constant 0 : index
    %24 = vector.load %arg5[%c0_9, %c0_10] : memref<32x96xf32, #tpu.memory_space<vmem>>, vector<32x96xf32>
    %25 = arith.truncf %24 : vector<32x96xf32> to vector<32x96xbf16>
    %cst_11 = arith.constant dense<0.000000e+00> : vector<32x96xf32>
    %26 = tpu.matmul %23, %25, %cst_11 {dimension_numbers = #tpu.dot_dimension_numbers<[1], [0], [0], [1], [0, 0, 1, 1], [], []>} : vector<32x32xbf16>, vector<32x96xbf16>, vector<32x96xf32> -> vector<32x96xf32>
    %c0_12 = arith.constant 0 : index
    %c0_13 = arith.constant 0 : index
    %27 = vector.load %arg6[%c0_12, %c0_13] : memref<1x96xf32, #tpu.memory_space<vmem>>, vector<1x96xf32>
    %28 = vector.broadcast %27 : vector<1x96xf32> to vector<32x96xf32>
    %29 = arith.addf %26, %28 : vector<32x96xf32>
    %c0_14 = arith.constant 0 : index
    %c0_15 = arith.constant 0 : index
    %30 = vector.load %arg7[%c0_14, %c0_15] : memref<32x96xf32, #tpu.memory_space<vmem>>, vector<32x96xf32>
    tpu.vector_store %arg7[%c0_14, %c0_15], %29 {strides = array<i32>} : memref<32x96xf32, #tpu.memory_space<vmem>>, vector<32x96xf32>,
    return
  }
  func.func @transform_0(%arg0: i32, %arg1: i32) -> (i32, i32) {
    %c0_i32 = arith.constant 0 : i32
    %c0_i32_0 = arith.constant 0 : i32
    return %arg0, %c0_i32 : i32, i32
  }
  func.func @transform_1(%arg0: i32, %arg1: i32) -> (i32, i32) {
    %c0_i32 = arith.constant 0 : i32
    %c0_i32_0 = arith.constant 0 : i32
    %c0_i32_1 = arith.constant 0 : i32
    return %c0_i32, %c0_i32_0 : i32, i32
  }
  func.func @transform_2(%arg0: i32, %arg1: i32) -> (i32, i32) {
    %c0_i32 = arith.constant 0 : i32
    %c0_i32_0 = arith.constant 0 : i32
    %c0_i32_1 = arith.constant 0 : i32
    return %c0_i32, %c0_i32_0 : i32, i32
  }
  func.func @transform_3(%arg0: i32, %arg1: i32) -> (i32, i32) {
    %c0_i32 = arith.constant 0 : i32
    %c0_i32_0 = arith.constant 0 : i32
    return %c0_i32, %arg1 : i32, i32
  }
  func.func @transform_4(%arg0: i32, %arg1: i32) -> (i32, i32) {
    %c0_i32 = arith.constant 0 : i32
    %c0_i32_0 = arith.constant 0 : i32
    return %c0_i32, %arg1 : i32, i32
  }
  func.func @transform_5(%arg0: i32, %arg1: i32) -> (i32, i32) {
    %c0_i32 = arith.constant 0 : i32
    return %arg0, %arg1 : i32, i32
  }
}

module attributes {stable_mosaic.version = 11 : i64} {
  func.func @_patch_embed_kernel(%arg0: i32, %arg1: memref<1x16x64xf32, #tpu.memory_space<vmem>>, %arg2: memref<64x32xf32, #tpu.memory_space<vmem>>, %arg3: memref<16x32xf32, #tpu.memory_space<vmem>>, %arg4: memref<1x1x32xf32, #tpu.memory_space<vmem>>, %arg5: memref<1x16x32xf32, #tpu.memory_space<vmem>>) attributes {dimension_semantics = [#tpu.dimension_semantics<parallel>], iteration_bounds = array<i64: 2>, scalar_prefetch = 0 : i64, scratch_operands = 0 : i64, tpu.core_type = #tpu.core_type<tc>, window_params = [{transform_indices = @transform_0, window_bounds = array<i64: 1, 16, 64>}, {pipeline_mode = #tpu.pipeline_mode<synchronous>, transform_indices = @transform_1, window_bounds = array<i64: 64, 32>}, {pipeline_mode = #tpu.pipeline_mode<synchronous>, transform_indices = @transform_2, window_bounds = array<i64: 16, 32>}, {transform_indices = @transform_3, window_bounds = array<i64: 1, 1, 32>}, {transform_indices = @transform_4, window_bounds = array<i64: 1, 16, 32>}]} {
    %c0 = arith.constant 0 : index
    %c0_0 = arith.constant 0 : index
    %c0_1 = arith.constant 0 : index
    %0 = vector.load %arg1[%c0, %c0_0, %c0_1] : memref<1x16x64xf32, #tpu.memory_space<vmem>>, vector<1x16x64xf32>
    %1 = vector.shape_cast %0 : vector<1x16x64xf32> to vector<16x64xf32>
    %2 = arith.truncf %1 : vector<16x64xf32> to vector<16x64xbf16>
    %c0_2 = arith.constant 0 : index
    %c0_3 = arith.constant 0 : index
    %3 = vector.load %arg2[%c0_2, %c0_3] : memref<64x32xf32, #tpu.memory_space<vmem>>, vector<64x32xf32>
    %4 = arith.truncf %3 : vector<64x32xf32> to vector<64x32xbf16>
    %cst = arith.constant dense<0.000000e+00> : vector<16x32xf32>
    %5 = tpu.matmul %2, %4, %cst {dimension_numbers = #tpu.dot_dimension_numbers<[1], [0], [0], [1], [0, 0, 1, 1], [], []>} : vector<16x64xbf16>, vector<64x32xbf16>, vector<16x32xf32> -> vector<16x32xf32>
    %c0_4 = arith.constant 0 : index
    %c0_5 = arith.constant 0 : index
    %6 = vector.load %arg3[%c0_4, %c0_5] : memref<16x32xf32, #tpu.memory_space<vmem>>, vector<16x32xf32>
    %7 = arith.addf %5, %6 : vector<16x32xf32>
    %c0_6 = arith.constant 0 : index
    %c0_7 = arith.constant 0 : index
    %c0_8 = arith.constant 0 : index
    %8 = vector.load %arg4[%c0_6, %c0_7, %c0_8] : memref<1x1x32xf32, #tpu.memory_space<vmem>>, vector<1x1x32xf32>
    %9 = vector.shape_cast %8 : vector<1x1x32xf32> to vector<1x32xf32>
    %10 = vector.broadcast %9 : vector<1x32xf32> to vector<16x32xf32>
    %11 = arith.addf %7, %10 : vector<16x32xf32>
    %c0_9 = arith.constant 0 : index
    %c0_10 = arith.constant 0 : index
    %c0_11 = arith.constant 0 : index
    %12 = vector.load %arg5[%c0_9, %c0_10, %c0_11] : memref<1x16x32xf32, #tpu.memory_space<vmem>>, vector<1x16x32xf32>
    %13 = vector.shape_cast %12 : vector<1x16x32xf32> to vector<16x32xf32>
    %14 = vector.shape_cast %11 : vector<16x32xf32> to vector<1x16x32xf32>
    tpu.vector_store %arg5[%c0_9, %c0_10, %c0_11], %14 {strides = array<i32>} : memref<1x16x32xf32, #tpu.memory_space<vmem>>, vector<1x16x32xf32>,
    return
  }
  func.func @transform_0(%arg0: i32) -> (i32, i32, i32) {
    %c0_i32 = arith.constant 0 : i32
    %c0_i32_0 = arith.constant 0 : i32
    %c0_i32_1 = arith.constant 0 : i32
    return %arg0, %c0_i32, %c0_i32_0 : i32, i32, i32
  }
  func.func @transform_1(%arg0: i32) -> (i32, i32) {
    %c0_i32 = arith.constant 0 : i32
    %c0_i32_0 = arith.constant 0 : i32
    %c0_i32_1 = arith.constant 0 : i32
    return %c0_i32, %c0_i32_0 : i32, i32
  }
  func.func @transform_2(%arg0: i32) -> (i32, i32) {
    %c0_i32 = arith.constant 0 : i32
    %c0_i32_0 = arith.constant 0 : i32
    %c0_i32_1 = arith.constant 0 : i32
    return %c0_i32, %c0_i32_0 : i32, i32
  }
  func.func @transform_3(%arg0: i32) -> (i32, i32, i32) {
    %c0_i32 = arith.constant 0 : i32
    %c0_i32_0 = arith.constant 0 : i32
    %c0_i32_1 = arith.constant 0 : i32
    return %arg0, %c0_i32, %c0_i32_0 : i32, i32, i32
  }
  func.func @transform_4(%arg0: i32) -> (i32, i32, i32) {
    %c0_i32 = arith.constant 0 : i32
    %c0_i32_0 = arith.constant 0 : i32
    %c0_i32_1 = arith.constant 0 : i32
    return %arg0, %c0_i32, %c0_i32_0 : i32, i32, i32
  }
}

module attributes {stable_mosaic.version = 11 : i64} {
  func.func @_mha_kernel(%arg0: i32, %arg1: i32, %arg2: memref<1x16x1x4x8xf32, #tpu.memory_space<vmem>>, %arg3: memref<1x16x1x4x8xf32, #tpu.memory_space<vmem>>, %arg4: memref<1x16x1x4x8xf32, #tpu.memory_space<vmem>>, %arg5: memref<1x16x32xf32, #tpu.memory_space<vmem>>) attributes {dimension_semantics = [#tpu.dimension_semantics<parallel>, #tpu.dimension_semantics<parallel>], iteration_bounds = array<i64: 2, 1>, scalar_prefetch = 0 : i64, scratch_operands = 0 : i64, tpu.core_type = #tpu.core_type<tc>, window_params = [{transform_indices = @transform_0, window_bounds = array<i64: 1, 16, 1, 4, 8>}, {transform_indices = @transform_1, window_bounds = array<i64: 1, 16, 1, 4, 8>}, {transform_indices = @transform_2, window_bounds = array<i64: 1, 16, 1, 4, 8>}, {transform_indices = @transform_3, window_bounds = array<i64: 1, 16, 32>}]} {
    %c0 = arith.constant 0 : index
    %c0_0 = arith.constant 0 : index
    %c0_1 = arith.constant 0 : index
    %c0_2 = arith.constant 0 : index
    %c0_3 = arith.constant 0 : index
    %0 = vector.load %arg2[%c0, %c0_0, %c0_1, %c0_2, %c0_3] : memref<1x16x1x4x8xf32, #tpu.memory_space<vmem>>, vector<1x16x1x1x8xf32>
    %1 = vector.shape_cast %0 : vector<1x16x1x1x8xf32> to vector<16x8xf32>
    %cst = arith.constant 0.353553385 : f32
    %2 = vector.broadcast %cst : f32 to vector<16x8xf32>
    %3 = arith.mulf %1, %2 : vector<16x8xf32>
    %4 = arith.truncf %3 : vector<16x8xf32> to vector<16x8xbf16>
    %c0_4 = arith.constant 0 : index
    %c0_5 = arith.constant 0 : index
    %c0_6 = arith.constant 0 : index
    %c0_7 = arith.constant 0 : index
    %c0_8 = arith.constant 0 : index
    %5 = vector.load %arg3[%c0_4, %c0_5, %c0_6, %c0_7, %c0_8] : memref<1x16x1x4x8xf32, #tpu.memory_space<vmem>>, vector<1x16x1x1x8xf32>
    %6 = vector.shape_cast %5 : vector<1x16x1x1x8xf32> to vector<16x8xf32>
    %7 = arith.truncf %6 : vector<16x8xf32> to vector<16x8xbf16>
    %c0_9 = arith.constant 0 : index
    %c0_10 = arith.constant 0 : index
    %c0_11 = arith.constant 0 : index
    %c0_12 = arith.constant 0 : index
    %c0_13 = arith.constant 0 : index
    %8 = vector.load %arg4[%c0_9, %c0_10, %c0_11, %c0_12, %c0_13] : memref<1x16x1x4x8xf32, #tpu.memory_space<vmem>>, vector<1x16x1x1x8xf32>
    %9 = vector.shape_cast %8 : vector<1x16x1x1x8xf32> to vector<16x8xf32>
    %10 = arith.truncf %9 : vector<16x8xf32> to vector<16x8xbf16>
    %cst_14 = arith.constant dense<0.000000e+00> : vector<16x16xf32>
    %11 = tpu.matmul %4, %7, %cst_14 {dimension_numbers = #tpu.dot_dimension_numbers<[1], [1], [0], [0], [0, 0, 1, 0], [], []>} : vector<16x8xbf16>, vector<16x8xbf16>, vector<16x16xf32> -> vector<16x16xf32>
    %cst_15 = arith.constant dense<0xFF800000> : vector<16xf32>
    %12 = vector.multi_reduction <maximumf>, %11, %cst_15 [1] : vector<16x16xf32> to vector<16xf32>
    %13 = vector.shape_cast %12 : vector<16xf32> to vector<16x1xf32>
    %14 = vector.broadcast %13 : vector<16x1xf32> to vector<16x16xf32>
    %15 = arith.subf %11, %14 : vector<16x16xf32>
    %16 = math.exp %15 : vector<16x16xf32>
    %cst_16 = arith.constant dense<0.000000e+00> : vector<16xf32>
    %17 = vector.multi_reduction <add>, %16, %cst_16 [1] : vector<16x16xf32> to vector<16xf32>
    %18 = vector.shape_cast %17 : vector<16xf32> to vector<16x1xf32>
    %19 = tpu.reciprocal %18 {approx = true} : vector<16x1xf32> -> vector<16x1xf32>
    %20 = vector.broadcast %19 : vector<16x1xf32> to vector<16x16xf32>
    %21 = arith.mulf %16, %20 : vector<16x16xf32>
    %22 = arith.truncf %21 : vector<16x16xf32> to vector<16x16xbf16>
    %cst_17 = arith.constant dense<0.000000e+00> : vector<16x8xf32>
    %23 = tpu.matmul %22, %10, %cst_17 {dimension_numbers = #tpu.dot_dimension_numbers<[1], [0], [0], [1], [0, 0, 1, 1], [], []>} : vector<16x16xbf16>, vector<16x8xbf16>, vector<16x8xf32> -> vector<16x8xf32>
    %c0_18 = arith.constant 0 : index
    %c0_19 = arith.constant 0 : index
    %c0_20 = arith.constant 0 : index
    %24 = vector.load %arg5[%c0_18, %c0_19, %c0_20] : memref<1x16x32xf32, #tpu.memory_space<vmem>>, vector<1x16x8xf32>
    %25 = vector.shape_cast %24 : vector<1x16x8xf32> to vector<16x8xf32>
    %26 = vector.shape_cast %23 : vector<16x8xf32> to vector<1x16x8xf32>
    tpu.vector_store %arg5[%c0_18, %c0_19, %c0_20], %26 {strides = array<i32>} : memref<1x16x32xf32, #tpu.memory_space<vmem>>, vector<1x16x8xf32>,
    %c0_21 = arith.constant 0 : index
    %c0_22 = arith.constant 0 : index
    %c0_23 = arith.constant 0 : index
    %c1 = arith.constant 1 : index
    %c0_24 = arith.constant 0 : index
    %27 = vector.load %arg2[%c0_21, %c0_22, %c0_23, %c1, %c0_24] : memref<1x16x1x4x8xf32, #tpu.memory_space<vmem>>, vector<1x16x1x1x8xf32>
    %28 = vector.shape_cast %27 : vector<1x16x1x1x8xf32> to vector<16x8xf32>
    %cst_25 = arith.constant 0.353553385 : f32
    %29 = vector.broadcast %cst_25 : f32 to vector<16x8xf32>
    %30 = arith.mulf %28, %29 : vector<16x8xf32>
    %31 = arith.truncf %30 : vector<16x8xf32> to vector<16x8xbf16>
    %c0_26 = arith.constant 0 : index
    %c0_27 = arith.constant 0 : index
    %c0_28 = arith.constant 0 : index
    %c1_29 = arith.constant 1 : index
    %c0_30 = arith.constant 0 : index
    %32 = vector.load %arg3[%c0_26, %c0_27, %c0_28, %c1_29, %c0_30] : memref<1x16x1x4x8xf32, #tpu.memory_space<vmem>>, vector<1x16x1x1x8xf32>
    %33 = vector.shape_cast %32 : vector<1x16x1x1x8xf32> to vector<16x8xf32>
    %34 = arith.truncf %33 : vector<16x8xf32> to vector<16x8xbf16>
    %c0_31 = arith.constant 0 : index
    %c0_32 = arith.constant 0 : index
    %c0_33 = arith.constant 0 : index
    %c1_34 = arith.constant 1 : index
    %c0_35 = arith.constant 0 : index
    %35 = vector.load %arg4[%c0_31, %c0_32, %c0_33, %c1_34, %c0_35] : memref<1x16x1x4x8xf32, #tpu.memory_space<vmem>>, vector<1x16x1x1x8xf32>
    %36 = vector.shape_cast %35 : vector<1x16x1x1x8xf32> to vector<16x8xf32>
    %37 = arith.truncf %36 : vector<16x8xf32> to vector<16x8xbf16>
    %cst_36 = arith.constant dense<0.000000e+00> : vector<16x16xf32>
    %38 = tpu.matmul %31, %34, %cst_36 {dimension_numbers = #tpu.dot_dimension_numbers<[1], [1], [0], [0], [0, 0, 1, 0], [], []>} : vector<16x8xbf16>, vector<16x8xbf16>, vector<16x16xf32> -> vector<16x16xf32>
    %cst_37 = arith.constant dense<0xFF800000> : vector<16xf32>
    %39 = vector.multi_reduction <maximumf>, %38, %cst_37 [1] : vector<16x16xf32> to vector<16xf32>
    %40 = vector.shape_cast %39 : vector<16xf32> to vector<16x1xf32>
    %41 = vector.broadcast %40 : vector<16x1xf32> to vector<16x16xf32>
    %42 = arith.subf %38, %41 : vector<16x16xf32>
    %43 = math.exp %42 : vector<16x16xf32>
    %cst_38 = arith.constant dense<0.000000e+00> : vector<16xf32>
    %44 = vector.multi_reduction <add>, %43, %cst_38 [1] : vector<16x16xf32> to vector<16xf32>
    %45 = vector.shape_cast %44 : vector<16xf32> to vector<16x1xf32>
    %46 = tpu.reciprocal %45 {approx = true} : vector<16x1xf32> -> vector<16x1xf32>
    %47 = vector.broadcast %46 : vector<16x1xf32> to vector<16x16xf32>
    %48 = arith.mulf %43, %47 : vector<16x16xf32>
    %49 = arith.truncf %48 : vector<16x16xf32> to vector<16x16xbf16>
    %cst_39 = arith.constant dense<0.000000e+00> : vector<16x8xf32>
    %50 = tpu.matmul %49, %37, %cst_39 {dimension_numbers = #tpu.dot_dimension_numbers<[1], [0], [0], [1], [0, 0, 1, 1], [], []>} : vector<16x16xbf16>, vector<16x8xbf16>, vector<16x8xf32> -> vector<16x8xf32>
    %c0_40 = arith.constant 0 : index
    %c0_41 = arith.constant 0 : index
    %c8 = arith.constant 8 : index
    %51 = vector.load %arg5[%c0_40, %c0_41, %c8] : memref<1x16x32xf32, #tpu.memory_space<vmem>>, vector<1x16x8xf32>
    %52 = vector.shape_cast %51 : vector<1x16x8xf32> to vector<16x8xf32>
    %53 = vector.shape_cast %50 : vector<16x8xf32> to vector<1x16x8xf32>
    tpu.vector_store %arg5[%c0_40, %c0_41, %c8], %53 {strides = array<i32>} : memref<1x16x32xf32, #tpu.memory_space<vmem>>, vector<1x16x8xf32>,
    %c0_42 = arith.constant 0 : index
    %c0_43 = arith.constant 0 : index
    %c0_44 = arith.constant 0 : index
    %c2 = arith.constant 2 : index
    %c0_45 = arith.constant 0 : index
    %54 = vector.load %arg2[%c0_42, %c0_43, %c0_44, %c2, %c0_45] : memref<1x16x1x4x8xf32, #tpu.memory_space<vmem>>, vector<1x16x1x1x8xf32>
    %55 = vector.shape_cast %54 : vector<1x16x1x1x8xf32> to vector<16x8xf32>
    %cst_46 = arith.constant 0.353553385 : f32
    %56 = vector.broadcast %cst_46 : f32 to vector<16x8xf32>
    %57 = arith.mulf %55, %56 : vector<16x8xf32>
    %58 = arith.truncf %57 : vector<16x8xf32> to vector<16x8xbf16>
    %c0_47 = arith.constant 0 : index
    %c0_48 = arith.constant 0 : index
    %c0_49 = arith.constant 0 : index
    %c2_50 = arith.constant 2 : index
    %c0_51 = arith.constant 0 : index
    %59 = vector.load %arg3[%c0_47, %c0_48, %c0_49, %c2_50, %c0_51] : memref<1x16x1x4x8xf32, #tpu.memory_space<vmem>>, vector<1x16x1x1x8xf32>
    %60 = vector.shape_cast %59 : vector<1x16x1x1x8xf32> to vector<16x8xf32>
    %61 = arith.truncf %60 : vector<16x8xf32> to vector<16x8xbf16>
    %c0_52 = arith.constant 0 : index
    %c0_53 = arith.constant 0 : index
    %c0_54 = arith.constant 0 : index
    %c2_55 = arith.constant 2 : index
    %c0_56 = arith.constant 0 : index
    %62 = vector.load %arg4[%c0_52, %c0_53, %c0_54, %c2_55, %c0_56] : memref<1x16x1x4x8xf32, #tpu.memory_space<vmem>>, vector<1x16x1x1x8xf32>
    %63 = vector.shape_cast %62 : vector<1x16x1x1x8xf32> to vector<16x8xf32>
    %64 = arith.truncf %63 : vector<16x8xf32> to vector<16x8xbf16>
    %cst_57 = arith.constant dense<0.000000e+00> : vector<16x16xf32>
    %65 = tpu.matmul %58, %61, %cst_57 {dimension_numbers = #tpu.dot_dimension_numbers<[1], [1], [0], [0], [0, 0, 1, 0], [], []>} : vector<16x8xbf16>, vector<16x8xbf16>, vector<16x16xf32> -> vector<16x16xf32>
    %cst_58 = arith.constant dense<0xFF800000> : vector<16xf32>
    %66 = vector.multi_reduction <maximumf>, %65, %cst_58 [1] : vector<16x16xf32> to vector<16xf32>
    %67 = vector.shape_cast %66 : vector<16xf32> to vector<16x1xf32>
    %68 = vector.broadcast %67 : vector<16x1xf32> to vector<16x16xf32>
    %69 = arith.subf %65, %68 : vector<16x16xf32>
    %70 = math.exp %69 : vector<16x16xf32>
    %cst_59 = arith.constant dense<0.000000e+00> : vector<16xf32>
    %71 = vector.multi_reduction <add>, %70, %cst_59 [1] : vector<16x16xf32> to vector<16xf32>
    %72 = vector.shape_cast %71 : vector<16xf32> to vector<16x1xf32>
    %73 = tpu.reciprocal %72 {approx = true} : vector<16x1xf32> -> vector<16x1xf32>
    %74 = vector.broadcast %73 : vector<16x1xf32> to vector<16x16xf32>
    %75 = arith.mulf %70, %74 : vector<16x16xf32>
    %76 = arith.truncf %75 : vector<16x16xf32> to vector<16x16xbf16>
    %cst_60 = arith.constant dense<0.000000e+00> : vector<16x8xf32>
    %77 = tpu.matmul %76, %64, %cst_60 {dimension_numbers = #tpu.dot_dimension_numbers<[1], [0], [0], [1], [0, 0, 1, 1], [], []>} : vector<16x16xbf16>, vector<16x8xbf16>, vector<16x8xf32> -> vector<16x8xf32>
    %c0_61 = arith.constant 0 : index
    %c0_62 = arith.constant 0 : index
    %c16 = arith.constant 16 : index
    %78 = vector.load %arg5[%c0_61, %c0_62, %c16] : memref<1x16x32xf32, #tpu.memory_space<vmem>>, vector<1x16x8xf32>
    %79 = vector.shape_cast %78 : vector<1x16x8xf32> to vector<16x8xf32>
    %80 = vector.shape_cast %77 : vector<16x8xf32> to vector<1x16x8xf32>
    tpu.vector_store %arg5[%c0_61, %c0_62, %c16], %80 {strides = array<i32>} : memref<1x16x32xf32, #tpu.memory_space<vmem>>, vector<1x16x8xf32>,
    %c0_63 = arith.constant 0 : index
    %c0_64 = arith.constant 0 : index
    %c0_65 = arith.constant 0 : index
    %c3 = arith.constant 3 : index
    %c0_66 = arith.constant 0 : index
    %81 = vector.load %arg2[%c0_63, %c0_64, %c0_65, %c3, %c0_66] : memref<1x16x1x4x8xf32, #tpu.memory_space<vmem>>, vector<1x16x1x1x8xf32>
    %82 = vector.shape_cast %81 : vector<1x16x1x1x8xf32> to vector<16x8xf32>
    %cst_67 = arith.constant 0.353553385 : f32
    %83 = vector.broadcast %cst_67 : f32 to vector<16x8xf32>
    %84 = arith.mulf %82, %83 : vector<16x8xf32>
    %85 = arith.truncf %84 : vector<16x8xf32> to vector<16x8xbf16>
    %c0_68 = arith.constant 0 : index
    %c0_69 = arith.constant 0 : index
    %c0_70 = arith.constant 0 : index
    %c3_71 = arith.constant 3 : index
    %c0_72 = arith.constant 0 : index
    %86 = vector.load %arg3[%c0_68, %c0_69, %c0_70, %c3_71, %c0_72] : memref<1x16x1x4x8xf32, #tpu.memory_space<vmem>>, vector<1x16x1x1x8xf32>
    %87 = vector.shape_cast %86 : vector<1x16x1x1x8xf32> to vector<16x8xf32>
    %88 = arith.truncf %87 : vector<16x8xf32> to vector<16x8xbf16>
    %c0_73 = arith.constant 0 : index
    %c0_74 = arith.constant 0 : index
    %c0_75 = arith.constant 0 : index
    %c3_76 = arith.constant 3 : index
    %c0_77 = arith.constant 0 : index
    %89 = vector.load %arg4[%c0_73, %c0_74, %c0_75, %c3_76, %c0_77] : memref<1x16x1x4x8xf32, #tpu.memory_space<vmem>>, vector<1x16x1x1x8xf32>
    %90 = vector.shape_cast %89 : vector<1x16x1x1x8xf32> to vector<16x8xf32>
    %91 = arith.truncf %90 : vector<16x8xf32> to vector<16x8xbf16>
    %cst_78 = arith.constant dense<0.000000e+00> : vector<16x16xf32>
    %92 = tpu.matmul %85, %88, %cst_78 {dimension_numbers = #tpu.dot_dimension_numbers<[1], [1], [0], [0], [0, 0, 1, 0], [], []>} : vector<16x8xbf16>, vector<16x8xbf16>, vector<16x16xf32> -> vector<16x16xf32>
    %cst_79 = arith.constant dense<0xFF800000> : vector<16xf32>
    %93 = vector.multi_reduction <maximumf>, %92, %cst_79 [1] : vector<16x16xf32> to vector<16xf32>
    %94 = vector.shape_cast %93 : vector<16xf32> to vector<16x1xf32>
    %95 = vector.broadcast %94 : vector<16x1xf32> to vector<16x16xf32>
    %96 = arith.subf %92, %95 : vector<16x16xf32>
    %97 = math.exp %96 : vector<16x16xf32>
    %cst_80 = arith.constant dense<0.000000e+00> : vector<16xf32>
    %98 = vector.multi_reduction <add>, %97, %cst_80 [1] : vector<16x16xf32> to vector<16xf32>
    %99 = vector.shape_cast %98 : vector<16xf32> to vector<16x1xf32>
    %100 = tpu.reciprocal %99 {approx = true} : vector<16x1xf32> -> vector<16x1xf32>
    %101 = vector.broadcast %100 : vector<16x1xf32> to vector<16x16xf32>
    %102 = arith.mulf %97, %101 : vector<16x16xf32>
    %103 = arith.truncf %102 : vector<16x16xf32> to vector<16x16xbf16>
    %cst_81 = arith.constant dense<0.000000e+00> : vector<16x8xf32>
    %104 = tpu.matmul %103, %91, %cst_81 {dimension_numbers = #tpu.dot_dimension_numbers<[1], [0], [0], [1], [0, 0, 1, 1], [], []>} : vector<16x16xbf16>, vector<16x8xbf16>, vector<16x8xf32> -> vector<16x8xf32>
    %c0_82 = arith.constant 0 : index
    %c0_83 = arith.constant 0 : index
    %c24 = arith.constant 24 : index
    %105 = vector.load %arg5[%c0_82, %c0_83, %c24] : memref<1x16x32xf32, #tpu.memory_space<vmem>>, vector<1x16x8xf32>
    %106 = vector.shape_cast %105 : vector<1x16x8xf32> to vector<16x8xf32>
    %107 = vector.shape_cast %104 : vector<16x8xf32> to vector<1x16x8xf32>
    tpu.vector_store %arg5[%c0_82, %c0_83, %c24], %107 {strides = array<i32>} : memref<1x16x32xf32, #tpu.memory_space<vmem>>, vector<1x16x8xf32>,
    return
  }
  func.func @transform_0(%arg0: i32, %arg1: i32) -> (i32, i32, i32, i32, i32) {
    %c0_i32 = arith.constant 0 : i32
    %c0_i32_0 = arith.constant 0 : i32
    %c0_i32_1 = arith.constant 0 : i32
    %c0_i32_2 = arith.constant 0 : i32
    return %arg0, %arg1, %c0_i32, %c0_i32_0, %c0_i32_1 : i32, i32, i32, i32, i32
  }
  func.func @transform_1(%arg0: i32, %arg1: i32) -> (i32, i32, i32, i32, i32) {
    %c0_i32 = arith.constant 0 : i32
    %c1_i32 = arith.constant 1 : i32
    %c0_i32_0 = arith.constant 0 : i32
    %c0_i32_1 = arith.constant 0 : i32
    %c0_i32_2 = arith.constant 0 : i32
    return %arg0, %c0_i32, %c1_i32, %c0_i32_0, %c0_i32_1 : i32, i32, i32, i32, i32
  }
  func.func @transform_2(%arg0: i32, %arg1: i32) -> (i32, i32, i32, i32, i32) {
    %c0_i32 = arith.constant 0 : i32
    %c2_i32 = arith.constant 2 : i32
    %c0_i32_0 = arith.constant 0 : i32
    %c0_i32_1 = arith.constant 0 : i32
    %c0_i32_2 = arith.constant 0 : i32
    return %arg0, %c0_i32, %c2_i32, %c0_i32_0, %c0_i32_1 : i32, i32, i32, i32, i32
  }
  func.func @transform_3(%arg0: i32, %arg1: i32) -> (i32, i32, i32) {
    %c0_i32 = arith.constant 0 : i32
    %c0_i32_0 = arith.constant 0 : i32
    return %arg0, %arg1, %c0_i32 : i32, i32, i32
  }
}

module attributes {stable_mosaic.version = 11 : i64} {
  func.func @_linear_residual_kernel(%arg0: i32, %arg1: i32, %arg2: i32, %arg3: memref<32x32xf32, #tpu.memory_space<vmem>>, %arg4: memref<32x32xf32, #tpu.memory_space<vmem>>, %arg5: memref<1x32xf32, #tpu.memory_space<vmem>>, %arg6: memref<32x32xf32, #tpu.memory_space<vmem>>, %arg7: memref<32x32xf32, #tpu.memory_space<vmem>>, %arg8: memref<32x32xf32, #tpu.memory_space<vmem>>) attributes {dimension_semantics = [#tpu.dimension_semantics<parallel>, #tpu.dimension_semantics<parallel>, #tpu.dimension_semantics<arbitrary>], iteration_bounds = array<i64: 1, 1, 1>, scalar_prefetch = 0 : i64, scratch_operands = 1 : i64, tpu.core_type = #tpu.core_type<tc>, window_params = [{transform_indices = @transform_0, window_bounds = array<i64: 32, 32>}, {transform_indices = @transform_1, window_bounds = array<i64: 32, 32>}, {transform_indices = @transform_2, window_bounds = array<i64: 1, 32>}, {transform_indices = @transform_3, window_bounds = array<i64: 32, 32>}, {transform_indices = @transform_4, window_bounds = array<i64: 32, 32>}]} {
    %c0_i32 = arith.constant 0 : i32
    %0 = arith.cmpi eq, %arg2, %c0_i32 : i32
    %1 = arith.extui %0 : i1 to i32
    %c0_i32_0 = arith.constant 0 : i32
    %2 = arith.cmpi ne, %1, %c0_i32_0 : i32
    scf.if %2 {
      %cst_10 = arith.constant 0.000000e+00 : f32
      %14 = vector.broadcast %cst_10 : f32 to vector<32x32xf32>
      %c0_11 = arith.constant 0 : index
      %c0_12 = arith.constant 0 : index
      %15 = vector.load %arg8[%c0_11, %c0_12] : memref<32x32xf32, #tpu.memory_space<vmem>>, vector<32x32xf32>
      tpu.vector_store %arg8[%c0_11, %c0_12], %14 {strides = array<i32>} : memref<32x32xf32, #tpu.memory_space<vmem>>, vector<32x32xf32>,
    } else {
    }
    %c0 = arith.constant 0 : index
    %c0_1 = arith.constant 0 : index
    %3 = vector.load %arg8[%c0, %c0_1] : memref<32x32xf32, #tpu.memory_space<vmem>>, vector<32x32xf32>
    %c0_2 = arith.constant 0 : index
    %c0_3 = arith.constant 0 : index
    %4 = vector.load %arg3[%c0_2, %c0_3] : memref<32x32xf32, #tpu.memory_space<vmem>>, vector<32x32xf32>
    %5 = arith.truncf %4 : vector<32x32xf32> to vector<32x32xbf16>
    %c0_4 = arith.constant 0 : index
    %c0_5 = arith.constant 0 : index
    %6 = vector.load %arg4[%c0_4, %c0_5] : memref<32x32xf32, #tpu.memory_space<vmem>>, vector<32x32xf32>
    %7 = arith.truncf %6 : vector<32x32xf32> to vector<32x32xbf16>
    %cst = arith.constant dense<0.000000e+00> : vector<32x32xf32>
    %8 = tpu.matmul %5, %7, %cst {dimension_numbers = #tpu.dot_dimension_numbers<[1], [0], [0], [1], [0, 0, 1, 1], [], []>} : vector<32x32xbf16>, vector<32x32xbf16>, vector<32x32xf32> -> vector<32x32xf32>
    %9 = arith.addf %3, %8 : vector<32x32xf32>
    %c0_6 = arith.constant 0 : index
    %c0_7 = arith.constant 0 : index
    %10 = vector.load %arg8[%c0_6, %c0_7] : memref<32x32xf32, #tpu.memory_space<vmem>>, vector<32x32xf32>
    tpu.vector_store %arg8[%c0_6, %c0_7], %9 {strides = array<i32>} : memref<32x32xf32, #tpu.memory_space<vmem>>, vector<32x32xf32>,
    %c0_i32_8 = arith.constant 0 : i32
    %11 = arith.cmpi eq, %arg2, %c0_i32_8 : i32
    %12 = arith.extui %11 : i1 to i32
    %c0_i32_9 = arith.constant 0 : i32
    %13 = arith.cmpi ne, %12, %c0_i32_9 : i32
    scf.if %13 {
      %c0_10 = arith.constant 0 : index
      %c0_11 = arith.constant 0 : index
      %14 = vector.load %arg8[%c0_10, %c0_11] : memref<32x32xf32, #tpu.memory_space<vmem>>, vector<32x32xf32>
      %c0_12 = arith.constant 0 : index
      %c0_13 = arith.constant 0 : index
      %15 = vector.load %arg5[%c0_12, %c0_13] : memref<1x32xf32, #tpu.memory_space<vmem>>, vector<1x32xf32>
      %16 = vector.broadcast %15 : vector<1x32xf32> to vector<32x32xf32>
      %17 = arith.addf %14, %16 : vector<32x32xf32>
      %c0_14 = arith.constant 0 : index
      %c0_15 = arith.constant 0 : index
      %18 = vector.load %arg6[%c0_14, %c0_15] : memref<32x32xf32, #tpu.memory_space<vmem>>, vector<32x32xf32>
      %19 = arith.addf %17, %18 : vector<32x32xf32>
      %c0_16 = arith.constant 0 : index
      %c0_17 = arith.constant 0 : index
      %20 = vector.load %arg7[%c0_16, %c0_17] : memref<32x32xf32, #tpu.memory_space<vmem>>, vector<32x32xf32>
      tpu.vector_store %arg7[%c0_16, %c0_17], %19 {strides = array<i32>} : memref<32x32xf32, #tpu.memory_space<vmem>>, vector<32x32xf32>,
    } else {
    }
    return
  }
  func.func @transform_0(%arg0: i32, %arg1: i32, %arg2: i32) -> (i32, i32) {
    %c0_i32 = arith.constant 0 : i32
    return %arg0, %arg2 : i32, i32
  }
  func.func @transform_1(%arg0: i32, %arg1: i32, %arg2: i32) -> (i32, i32) {
    %c0_i32 = arith.constant 0 : i32
    return %arg2, %arg1 : i32, i32
  }
  func.func @transform_2(%arg0: i32, %arg1: i32, %arg2: i32) -> (i32, i32) {
    %c0_i32 = arith.constant 0 : i32
    %c0_i32_0 = arith.constant 0 : i32
    return %c0_i32, %arg1 : i32, i32
  }
  func.func @transform_3(%arg0: i32, %arg1: i32, %arg2: i32) -> (i32, i32) {
    %c0_i32 = arith.constant 0 : i32
    return %arg0, %arg1 : i32, i32
  }
  func.func @transform_4(%arg0: i32, %arg1: i32, %arg2: i32) -> (i32, i32) {
    %c0_i32 = arith.constant 0 : i32
    return %arg0, %arg1 : i32, i32
  }
}

module attributes {stable_mosaic.version = 11 : i64} {
  func.func @_ln_linear_kernel(%arg0: i32, %arg1: i32, %arg2: memref<32x32xf32, #tpu.memory_space<vmem>>, %arg3: memref<1x32xf32, #tpu.memory_space<vmem>>, %arg4: memref<1x32xf32, #tpu.memory_space<vmem>>, %arg5: memref<32x128xf32, #tpu.memory_space<vmem>>, %arg6: memref<1x128xf32, #tpu.memory_space<vmem>>, %arg7: memref<32x128xf32, #tpu.memory_space<vmem>>) attributes {dimension_semantics = [#tpu.dimension_semantics<parallel>, #tpu.dimension_semantics<parallel>], iteration_bounds = array<i64: 1, 1>, scalar_prefetch = 0 : i64, scratch_operands = 0 : i64, tpu.core_type = #tpu.core_type<tc>, window_params = [{transform_indices = @transform_0, window_bounds = array<i64: 32, 32>}, {pipeline_mode = #tpu.pipeline_mode<synchronous>, transform_indices = @transform_1, window_bounds = array<i64: 1, 32>}, {pipeline_mode = #tpu.pipeline_mode<synchronous>, transform_indices = @transform_2, window_bounds = array<i64: 1, 32>}, {transform_indices = @transform_3, window_bounds = array<i64: 32, 128>}, {transform_indices = @transform_4, window_bounds = array<i64: 1, 128>}, {transform_indices = @transform_5, window_bounds = array<i64: 32, 128>}]} {
    %c0 = arith.constant 0 : index
    %c0_0 = arith.constant 0 : index
    %0 = vector.load %arg2[%c0, %c0_0] : memref<32x32xf32, #tpu.memory_space<vmem>>, vector<32x32xf32>
    %cst = arith.constant dense<0.000000e+00> : vector<32xf32>
    %1 = vector.multi_reduction <add>, %0, %cst [1] : vector<32x32xf32> to vector<32xf32>
    %2 = vector.shape_cast %1 : vector<32xf32> to vector<32x1xf32>
    %cst_1 = arith.constant 3.200000e+01 : f32
    %3 = vector.broadcast %cst_1 : f32 to vector<32x1xf32>
    %4 = arith.divf %2, %3 : vector<32x1xf32>
    %5 = vector.broadcast %4 : vector<32x1xf32> to vector<32x32xf32>
    %6 = arith.subf %0, %5 : vector<32x32xf32>
    %7 = arith.mulf %6, %6 : vector<32x32xf32>
    %cst_2 = arith.constant dense<0.000000e+00> : vector<32xf32>
    %8 = vector.multi_reduction <add>, %7, %cst_2 [1] : vector<32x32xf32> to vector<32xf32>
    %9 = vector.shape_cast %8 : vector<32xf32> to vector<32x1xf32>
    %cst_3 = arith.constant 3.200000e+01 : f32
    %10 = vector.broadcast %cst_3 : f32 to vector<32x1xf32>
    %11 = arith.divf %9, %10 : vector<32x1xf32>
    %cst_4 = arith.constant 9.99999974E-6 : f32
    %12 = vector.broadcast %cst_4 : f32 to vector<32x1xf32>
    %13 = arith.addf %11, %12 : vector<32x1xf32>
    %14 = math.rsqrt %13 : vector<32x1xf32>
    %15 = vector.broadcast %14 : vector<32x1xf32> to vector<32x32xf32>
    %16 = arith.mulf %6, %15 : vector<32x32xf32>
    %c0_5 = arith.constant 0 : index
    %c0_6 = arith.constant 0 : index
    %17 = vector.load %arg3[%c0_5, %c0_6] : memref<1x32xf32, #tpu.memory_space<vmem>>, vector<1x32xf32>
    %18 = vector.broadcast %17 : vector<1x32xf32> to vector<32x32xf32>
    %19 = arith.mulf %16, %18 : vector<32x32xf32>
    %c0_7 = arith.constant 0 : index
    %c0_8 = arith.constant 0 : index
    %20 = vector.load %arg4[%c0_7, %c0_8] : memref<1x32xf32, #tpu.memory_space<vmem>>, vector<1x32xf32>
    %21 = vector.broadcast %20 : vector<1x32xf32> to vector<32x32xf32>
    %22 = arith.addf %19, %21 : vector<32x32xf32>
    %23 = arith.truncf %22 : vector<32x32xf32> to vector<32x32xbf16>
    %c0_9 = arith.constant 0 : index
    %c0_10 = arith.constant 0 : index
    %24 = vector.load %arg5[%c0_9, %c0_10] : memref<32x128xf32, #tpu.memory_space<vmem>>, vector<32x128xf32>
    %25 = arith.truncf %24 : vector<32x128xf32> to vector<32x128xbf16>
    %cst_11 = arith.constant dense<0.000000e+00> : vector<32x128xf32>
    %26 = tpu.matmul %23, %25, %cst_11 {dimension_numbers = #tpu.dot_dimension_numbers<[1], [0], [0], [1], [0, 0, 1, 1], [], []>} : vector<32x32xbf16>, vector<32x128xbf16>, vector<32x128xf32> -> vector<32x128xf32>
    %c0_12 = arith.constant 0 : index
    %c0_13 = arith.constant 0 : index
    %27 = vector.load %arg6[%c0_12, %c0_13] : memref<1x128xf32, #tpu.memory_space<vmem>>, vector<1x128xf32>
    %28 = vector.broadcast %27 : vector<1x128xf32> to vector<32x128xf32>
    %29 = arith.addf %26, %28 : vector<32x128xf32>
    %cst_14 = arith.constant 5.000000e-01 : f32
    %30 = vector.broadcast %cst_14 : f32 to vector<32x128xf32>
    %31 = arith.mulf %30, %29 : vector<32x128xf32>
    %cst_15 = arith.constant 0.707106769 : f32
    %32 = vector.broadcast %cst_15 : f32 to vector<32x128xf32>
    %33 = arith.mulf %29, %32 : vector<32x128xf32>
    %34 = math.absf %33 : vector<32x128xf32>
    %cst_16 = arith.constant 0.327591091 : f32
    %35 = vector.broadcast %cst_16 : f32 to vector<32x128xf32>
    %36 = arith.mulf %35, %34 : vector<32x128xf32>
    %cst_17 = arith.constant 1.000000e+00 : f32
    %37 = vector.broadcast %cst_17 : f32 to vector<32x128xf32>
    %38 = arith.addf %37, %36 : vector<32x128xf32>
    %cst_18 = arith.constant 1.000000e+00 : f32
    %39 = vector.broadcast %cst_18 : f32 to vector<32x128xf32>
    %40 = arith.divf %39, %38 : vector<32x128xf32>
    %cst_19 = arith.constant 1.06140542 : f32
    %41 = vector.broadcast %cst_19 : f32 to vector<32x128xf32>
    %42 = arith.mulf %41, %40 : vector<32x128xf32>
    %cst_20 = arith.constant -1.45315206 : f32
    %43 = vector.broadcast %cst_20 : f32 to vector<32x128xf32>
    %44 = arith.addf %42, %43 : vector<32x128xf32>
    %45 = arith.mulf %44, %40 : vector<32x128xf32>
    %cst_21 = arith.constant 1.42141378 : f32
    %46 = vector.broadcast %cst_21 : f32 to vector<32x128xf32>
    %47 = arith.addf %45, %46 : vector<32x128xf32>
    %48 = arith.mulf %47, %40 : vector<32x128xf32>
    %cst_22 = arith.constant -0.284496725 : f32
    %49 = vector.broadcast %cst_22 : f32 to vector<32x128xf32>
    %50 = arith.addf %48, %49 : vector<32x128xf32>
    %51 = arith.mulf %50, %40 : vector<32x128xf32>
    %cst_23 = arith.constant 0.254829586 : f32
    %52 = vector.broadcast %cst_23 : f32 to vector<32x128xf32>
    %53 = arith.addf %51, %52 : vector<32x128xf32>
    %54 = arith.mulf %53, %40 : vector<32x128xf32>
    %cst_24 = arith.constant 0.000000e+00 : f32
    %55 = vector.broadcast %cst_24 : f32 to vector<32x128xf32>
    %56 = arith.subf %55, %34 : vector<32x128xf32>
    %57 = arith.mulf %56, %34 : vector<32x128xf32>
    %58 = math.exp %57 : vector<32x128xf32>
    %59 = arith.mulf %54, %58 : vector<32x128xf32>
    %cst_25 = arith.constant 1.000000e+00 : f32
    %60 = vector.broadcast %cst_25 : f32 to vector<32x128xf32>
    %61 = arith.subf %60, %59 : vector<32x128xf32>
    %cst_26 = arith.constant 0.000000e+00 : f32
    %62 = vector.broadcast %cst_26 : f32 to vector<32x128xf32>
    %63 = arith.cmpf oge, %33, %62 : vector<32x128xf32>
    %cst_27 = arith.constant 0.000000e+00 : f32
    %64 = vector.broadcast %cst_27 : f32 to vector<32x128xf32>
    %65 = arith.subf %64, %61 : vector<32x128xf32>
    %66 = arith.select %63, %61, %65 : vector<32x128xi1>, vector<32x128xf32>
    %cst_28 = arith.constant 1.000000e+00 : f32
    %67 = vector.broadcast %cst_28 : f32 to vector<32x128xf32>
    %68 = arith.addf %67, %66 : vector<32x128xf32>
    %69 = arith.mulf %31, %68 : vector<32x128xf32>
    %c0_29 = arith.constant 0 : index
    %c0_30 = arith.constant 0 : index
    %70 = vector.load %arg7[%c0_29, %c0_30] : memref<32x128xf32, #tpu.memory_space<vmem>>, vector<32x128xf32>
    tpu.vector_store %arg7[%c0_29, %c0_30], %69 {strides = array<i32>} : memref<32x128xf32, #tpu.memory_space<vmem>>, vector<32x128xf32>,
    return
  }
  func.func @transform_0(%arg0: i32, %arg1: i32) -> (i32, i32) {
    %c0_i32 = arith.constant 0 : i32
    %c0_i32_0 = arith.constant 0 : i32
    return %arg0, %c0_i32 : i32, i32
  }
  func.func @transform_1(%arg0: i32, %arg1: i32) -> (i32, i32) {
    %c0_i32 = arith.constant 0 : i32
    %c0_i32_0 = arith.constant 0 : i32
    %c0_i32_1 = arith.constant 0 : i32
    return %c0_i32, %c0_i32_0 : i32, i32
  }
  func.func @transform_2(%arg0: i32, %arg1: i32) -> (i32, i32) {
    %c0_i32 = arith.constant 0 : i32
    %c0_i32_0 = arith.constant 0 : i32
    %c0_i32_1 = arith.constant 0 : i32
    return %c0_i32, %c0_i32_0 : i32, i32
  }
  func.func @transform_3(%arg0: i32, %arg1: i32) -> (i32, i32) {
    %c0_i32 = arith.constant 0 : i32
    %c0_i32_0 = arith.constant 0 : i32
    return %c0_i32, %arg1 : i32, i32
  }
  func.func @transform_4(%arg0: i32, %arg1: i32) -> (i32, i32) {
    %c0_i32 = arith.constant 0 : i32
    %c0_i32_0 = arith.constant 0 : i32
    return %c0_i32, %arg1 : i32, i32
  }
  func.func @transform_5(%arg0: i32, %arg1: i32) -> (i32, i32) {
    %c0_i32 = arith.constant 0 : i32
    return %arg0, %arg1 : i32, i32
  }
}

module attributes {stable_mosaic.version = 11 : i64} {
  func.func @_linear_residual_kernel(%arg0: i32, %arg1: i32, %arg2: i32, %arg3: memref<32x128xf32, #tpu.memory_space<vmem>>, %arg4: memref<128x32xf32, #tpu.memory_space<vmem>>, %arg5: memref<1x32xf32, #tpu.memory_space<vmem>>, %arg6: memref<32x32xf32, #tpu.memory_space<vmem>>, %arg7: memref<32x32xf32, #tpu.memory_space<vmem>>, %arg8: memref<32x32xf32, #tpu.memory_space<vmem>>) attributes {dimension_semantics = [#tpu.dimension_semantics<parallel>, #tpu.dimension_semantics<parallel>, #tpu.dimension_semantics<arbitrary>], iteration_bounds = array<i64: 1, 1, 1>, scalar_prefetch = 0 : i64, scratch_operands = 1 : i64, tpu.core_type = #tpu.core_type<tc>, window_params = [{transform_indices = @transform_0, window_bounds = array<i64: 32, 128>}, {transform_indices = @transform_1, window_bounds = array<i64: 128, 32>}, {transform_indices = @transform_2, window_bounds = array<i64: 1, 32>}, {transform_indices = @transform_3, window_bounds = array<i64: 32, 32>}, {transform_indices = @transform_4, window_bounds = array<i64: 32, 32>}]} {
    %c0_i32 = arith.constant 0 : i32
    %0 = arith.cmpi eq, %arg2, %c0_i32 : i32
    %1 = arith.extui %0 : i1 to i32
    %c0_i32_0 = arith.constant 0 : i32
    %2 = arith.cmpi ne, %1, %c0_i32_0 : i32
    scf.if %2 {
      %cst_10 = arith.constant 0.000000e+00 : f32
      %14 = vector.broadcast %cst_10 : f32 to vector<32x32xf32>
      %c0_11 = arith.constant 0 : index
      %c0_12 = arith.constant 0 : index
      %15 = vector.load %arg8[%c0_11, %c0_12] : memref<32x32xf32, #tpu.memory_space<vmem>>, vector<32x32xf32>
      tpu.vector_store %arg8[%c0_11, %c0_12], %14 {strides = array<i32>} : memref<32x32xf32, #tpu.memory_space<vmem>>, vector<32x32xf32>,
    } else {
    }
    %c0 = arith.constant 0 : index
    %c0_1 = arith.constant 0 : index
    %3 = vector.load %arg8[%c0, %c0_1] : memref<32x32xf32, #tpu.memory_space<vmem>>, vector<32x32xf32>
    %c0_2 = arith.constant 0 : index
    %c0_3 = arith.constant 0 : index
    %4 = vector.load %arg3[%c0_2, %c0_3] : memref<32x128xf32, #tpu.memory_space<vmem>>, vector<32x128xf32>
    %5 = arith.truncf %4 : vector<32x128xf32> to vector<32x128xbf16>
    %c0_4 = arith.constant 0 : index
    %c0_5 = arith.constant 0 : index
    %6 = vector.load %arg4[%c0_4, %c0_5] : memref<128x32xf32, #tpu.memory_space<vmem>>, vector<128x32xf32>
    %7 = arith.truncf %6 : vector<128x32xf32> to vector<128x32xbf16>
    %cst = arith.constant dense<0.000000e+00> : vector<32x32xf32>
    %8 = tpu.matmul %5, %7, %cst {dimension_numbers = #tpu.dot_dimension_numbers<[1], [0], [0], [1], [0, 0, 1, 1], [], []>} : vector<32x128xbf16>, vector<128x32xbf16>, vector<32x32xf32> -> vector<32x32xf32>
    %9 = arith.addf %3, %8 : vector<32x32xf32>
    %c0_6 = arith.constant 0 : index
    %c0_7 = arith.constant 0 : index
    %10 = vector.load %arg8[%c0_6, %c0_7] : memref<32x32xf32, #tpu.memory_space<vmem>>, vector<32x32xf32>
    tpu.vector_store %arg8[%c0_6, %c0_7], %9 {strides = array<i32>} : memref<32x32xf32, #tpu.memory_space<vmem>>, vector<32x32xf32>,
    %c0_i32_8 = arith.constant 0 : i32
    %11 = arith.cmpi eq, %arg2, %c0_i32_8 : i32
    %12 = arith.extui %11 : i1 to i32
    %c0_i32_9 = arith.constant 0 : i32
    %13 = arith.cmpi ne, %12, %c0_i32_9 : i32
    scf.if %13 {
      %c0_10 = arith.constant 0 : index
      %c0_11 = arith.constant 0 : index
      %14 = vector.load %arg8[%c0_10, %c0_11] : memref<32x32xf32, #tpu.memory_space<vmem>>, vector<32x32xf32>
      %c0_12 = arith.constant 0 : index
      %c0_13 = arith.constant 0 : index
      %15 = vector.load %arg5[%c0_12, %c0_13] : memref<1x32xf32, #tpu.memory_space<vmem>>, vector<1x32xf32>
      %16 = vector.broadcast %15 : vector<1x32xf32> to vector<32x32xf32>
      %17 = arith.addf %14, %16 : vector<32x32xf32>
      %c0_14 = arith.constant 0 : index
      %c0_15 = arith.constant 0 : index
      %18 = vector.load %arg6[%c0_14, %c0_15] : memref<32x32xf32, #tpu.memory_space<vmem>>, vector<32x32xf32>
      %19 = arith.addf %17, %18 : vector<32x32xf32>
      %c0_16 = arith.constant 0 : index
      %c0_17 = arith.constant 0 : index
      %20 = vector.load %arg7[%c0_16, %c0_17] : memref<32x32xf32, #tpu.memory_space<vmem>>, vector<32x32xf32>
      tpu.vector_store %arg7[%c0_16, %c0_17], %19 {strides = array<i32>} : memref<32x32xf32, #tpu.memory_space<vmem>>, vector<32x32xf32>,
    } else {
    }
    return
  }
  func.func @transform_0(%arg0: i32, %arg1: i32, %arg2: i32) -> (i32, i32) {
    %c0_i32 = arith.constant 0 : i32
    return %arg0, %arg2 : i32, i32
  }
  func.func @transform_1(%arg0: i32, %arg1: i32, %arg2: i32) -> (i32, i32) {
    %c0_i32 = arith.constant 0 : i32
    return %arg2, %arg1 : i32, i32
  }
  func.func @transform_2(%arg0: i32, %arg1: i32, %arg2: i32) -> (i32, i32) {
    %c0_i32 = arith.constant 0 : i32
    %c0_i32_0 = arith.constant 0 : i32
    return %c0_i32, %arg1 : i32, i32
  }
  func.func @transform_3(%arg0: i32, %arg1: i32, %arg2: i32) -> (i32, i32) {
    %c0_i32 = arith.constant 0 : i32
    return %arg0, %arg1 : i32, i32
  }
  func.func @transform_4(%arg0: i32, %arg1: i32, %arg2: i32) -> (i32, i32) {
    %c0_i32 = arith.constant 0 : i32
    return %arg0, %arg1 : i32, i32
  }
}

module attributes {stable_mosaic.version = 11 : i64} {
  func.func @_ln_linear_kernel(%arg0: i32, %arg1: i32, %arg2: memref<32x32xf32, #tpu.memory_space<vmem>>, %arg3: memref<1x32xf32, #tpu.memory_space<vmem>>, %arg4: memref<1x32xf32, #tpu.memory_space<vmem>>, %arg5: memref<32x32xf32, #tpu.memory_space<vmem>>, %arg6: memref<1x32xf32, #tpu.memory_space<vmem>>, %arg7: memref<32x32xf32, #tpu.memory_space<vmem>>) attributes {dimension_semantics = [#tpu.dimension_semantics<parallel>, #tpu.dimension_semantics<parallel>], iteration_bounds = array<i64: 1, 1>, scalar_prefetch = 0 : i64, scratch_operands = 0 : i64, tpu.core_type = #tpu.core_type<tc>, window_params = [{transform_indices = @transform_0, window_bounds = array<i64: 32, 32>}, {pipeline_mode = #tpu.pipeline_mode<synchronous>, transform_indices = @transform_1, window_bounds = array<i64: 1, 32>}, {pipeline_mode = #tpu.pipeline_mode<synchronous>, transform_indices = @transform_2, window_bounds = array<i64: 1, 32>}, {transform_indices = @transform_3, window_bounds = array<i64: 32, 32>}, {transform_indices = @transform_4, window_bounds = array<i64: 1, 32>}, {transform_indices = @transform_5, window_bounds = array<i64: 32, 32>}]} {
    %c0 = arith.constant 0 : index
    %c0_0 = arith.constant 0 : index
    %0 = vector.load %arg2[%c0, %c0_0] : memref<32x32xf32, #tpu.memory_space<vmem>>, vector<32x32xf32>
    %cst = arith.constant dense<0.000000e+00> : vector<32xf32>
    %1 = vector.multi_reduction <add>, %0, %cst [1] : vector<32x32xf32> to vector<32xf32>
    %2 = vector.shape_cast %1 : vector<32xf32> to vector<32x1xf32>
    %cst_1 = arith.constant 3.200000e+01 : f32
    %3 = vector.broadcast %cst_1 : f32 to vector<32x1xf32>
    %4 = arith.divf %2, %3 : vector<32x1xf32>
    %5 = vector.broadcast %4 : vector<32x1xf32> to vector<32x32xf32>
    %6 = arith.subf %0, %5 : vector<32x32xf32>
    %7 = arith.mulf %6, %6 : vector<32x32xf32>
    %cst_2 = arith.constant dense<0.000000e+00> : vector<32xf32>
    %8 = vector.multi_reduction <add>, %7, %cst_2 [1] : vector<32x32xf32> to vector<32xf32>
    %9 = vector.shape_cast %8 : vector<32xf32> to vector<32x1xf32>
    %cst_3 = arith.constant 3.200000e+01 : f32
    %10 = vector.broadcast %cst_3 : f32 to vector<32x1xf32>
    %11 = arith.divf %9, %10 : vector<32x1xf32>
    %cst_4 = arith.constant 9.99999974E-6 : f32
    %12 = vector.broadcast %cst_4 : f32 to vector<32x1xf32>
    %13 = arith.addf %11, %12 : vector<32x1xf32>
    %14 = math.rsqrt %13 : vector<32x1xf32>
    %15 = vector.broadcast %14 : vector<32x1xf32> to vector<32x32xf32>
    %16 = arith.mulf %6, %15 : vector<32x32xf32>
    %c0_5 = arith.constant 0 : index
    %c0_6 = arith.constant 0 : index
    %17 = vector.load %arg3[%c0_5, %c0_6] : memref<1x32xf32, #tpu.memory_space<vmem>>, vector<1x32xf32>
    %18 = vector.broadcast %17 : vector<1x32xf32> to vector<32x32xf32>
    %19 = arith.mulf %16, %18 : vector<32x32xf32>
    %c0_7 = arith.constant 0 : index
    %c0_8 = arith.constant 0 : index
    %20 = vector.load %arg4[%c0_7, %c0_8] : memref<1x32xf32, #tpu.memory_space<vmem>>, vector<1x32xf32>
    %21 = vector.broadcast %20 : vector<1x32xf32> to vector<32x32xf32>
    %22 = arith.addf %19, %21 : vector<32x32xf32>
    %23 = arith.truncf %22 : vector<32x32xf32> to vector<32x32xbf16>
    %c0_9 = arith.constant 0 : index
    %c0_10 = arith.constant 0 : index
    %24 = vector.load %arg5[%c0_9, %c0_10] : memref<32x32xf32, #tpu.memory_space<vmem>>, vector<32x32xf32>
    %25 = arith.truncf %24 : vector<32x32xf32> to vector<32x32xbf16>
    %cst_11 = arith.constant dense<0.000000e+00> : vector<32x32xf32>
    %26 = tpu.matmul %23, %25, %cst_11 {dimension_numbers = #tpu.dot_dimension_numbers<[1], [0], [0], [1], [0, 0, 1, 1], [], []>} : vector<32x32xbf16>, vector<32x32xbf16>, vector<32x32xf32> -> vector<32x32xf32>
    %c0_12 = arith.constant 0 : index
    %c0_13 = arith.constant 0 : index
    %27 = vector.load %arg6[%c0_12, %c0_13] : memref<1x32xf32, #tpu.memory_space<vmem>>, vector<1x32xf32>
    %28 = vector.broadcast %27 : vector<1x32xf32> to vector<32x32xf32>
    %29 = arith.addf %26, %28 : vector<32x32xf32>
    %30 = arith.cmpf one, %29, %29 : vector<32x32xf32>
    %cst_14 = arith.constant 0.000000e+00 : f32
    %31 = vector.broadcast %cst_14 : f32 to vector<32x32xf32>
    %32 = arith.select %30, %31, %29 : vector<32x32xi1>, vector<32x32xf32>
    %cst_15 = arith.constant 0.000000e+00 : f32
    %cst_16 = arith.constant 3.40282347E+38 : f32
    %33 = arith.subf %cst_15, %cst_16 : f32
    %cst_17 = arith.constant 3.40282347E+38 : f32
    %34 = vector.broadcast %33 : f32 to vector<32x32xf32>
    %35 = arith.maximumf %34, %32 : vector<32x32xf32>
    %36 = vector.broadcast %cst_17 : f32 to vector<32x32xf32>
    %37 = arith.minimumf %36, %35 : vector<32x32xf32>
    %c0_18 = arith.constant 0 : index
    %c0_19 = arith.constant 0 : index
    %38 = vector.load %arg7[%c0_18, %c0_19] : memref<32x32xf32, #tpu.memory_space<vmem>>, vector<32x32xf32>
    tpu.vector_store %arg7[%c0_18, %c0_19], %37 {strides = array<i32>} : memref<32x32xf32, #tpu.memory_space<vmem>>, vector<32x32xf32>,
    return
  }
  func.func @transform_0(%arg0: i32, %arg1: i32) -> (i32, i32) {
    %c0_i32 = arith.constant 0 : i32
    %c0_i32_0 = arith.constant 0 : i32
    return %arg0, %c0_i32 : i32, i32
  }
  func.func @transform_1(%arg0: i32, %arg1: i32) -> (i32, i32) {
    %c0_i32 = arith.constant 0 : i32
    %c0_i32_0 = arith.constant 0 : i32
    %c0_i32_1 = arith.constant 0 : i32
    return %c0_i32, %c0_i32_0 : i32, i32
  }
  func.func @transform_2(%arg0: i32, %arg1: i32) -> (i32, i32) {
    %c0_i32 = arith.constant 0 : i32
    %c0_i32_0 = arith.constant 0 : i32
    %c0_i32_1 = arith.constant 0 : i32
    return %c0_i32, %c0_i32_0 : i32, i32
  }
  func.func @transform_3(%arg0: i32, %arg1: i32) -> (i32, i32) {
    %c0_i32 = arith.constant 0 : i32
    %c0_i32_0 = arith.constant 0 : i32
    return %c0_i32, %arg1 : i32, i32
  }
  func.func @transform_4(%arg0: i32, %arg1: i32) -> (i32, i32) {
    %c0_i32 = arith.constant 0 : i32
    %c0_i32_0 = arith.constant 0 : i32
    return %c0_i32, %arg1 : i32, i32
  }
  func.func @transform_5(%arg0: i32, %arg1: i32) -> (i32, i32) {
    %c0_i32 = arith.constant 0 : i32
    return %arg0, %arg1 : i32, i32
  }
}

</mosaic_0001>

<llo_original>
// kernel: climax_forward.13
$region0: #{climax_forward.13}
  #allocation0 [shape = 'u32[]', space=smem, size = 0x4, offset = 0x4, fixed_abs, tag = 'smem constant byte address 0x4 - core index']
  #allocation1 [shape = 'u32[72,128]{1,0:T(1,128)}', space=vmem, size = 0x9000, scoped, tag = 'internal scratch']
  %s0 = inlined_call_operand.vmem [shape: f32[32,32], index: 0, kind: input, shape index: {}]
  %s1 = inlined_call_operand.vmem [shape: f32[1,32], index: 1, kind: input, shape index: {}]
  %s2 = inlined_call_operand.vmem [shape: f32[1,32], index: 2, kind: input, shape index: {}]
  %s3 = inlined_call_operand.vmem [shape: f32[32,96], index: 3, kind: input, shape index: {}]
  %s4 = inlined_call_operand.vmem [shape: f32[1,96], index: 4, kind: input, shape index: {}]
  %s5 = inlined_call_operand.vmem [shape: f32[32,96], index: 5, kind: output, shape index: {}]
  %s6 = sld [smem:[#allocation0]]
  $region30: #{climax_forward.13} parent=0
    _
  %s8 = ssub.s32 1, %s6
  %s9 = scalar_select 0, %s8, %s6
  // Predicated region
  $region2: #{climax_forward.13} parent=0 // pred_check
    _
  $region3: #{climax_forward.13} parent=0 // pred_check_branch
    %11 = sbr.rel (0) target = $region5
  $region4: #{climax_forward.13} parent=0 // pred_region
    _
  $region5: #{climax_forward.13} parent=0 // pred_fallthru
    _
  // Predicated region
  $region6: #{climax_forward.13} parent=0 // pred_check
    _
  $region7: #{climax_forward.13} parent=0 // pred_check_branch
    %13 = sbr.rel (0) target = $region9
  $region8: #{climax_forward.13} parent=0 // pred_region
    _
  $region9: #{climax_forward.13} parent=0 // pred_fallthru
    _
  // Predicated region
  $region10: #{climax_forward.13} parent=0 // pred_check
    _
  $region11: #{climax_forward.13} parent=0 // pred_check_branch
    %15 = sbr.rel (0) target = $region13
  $region12: #{climax_forward.13} parent=0 // pred_region
    _
  $region13: #{climax_forward.13} parent=0 // pred_fallthru
    _
  // Predicated region
  $region14: #{climax_forward.13} parent=0 // pred_check
    _
  $region15: #{climax_forward.13} parent=0 // pred_check_branch
    %17 = sbr.rel (0) target = $region17
  $region16: #{climax_forward.13} parent=0 // pred_region
    _
  $region17: #{climax_forward.13} parent=0 // pred_fallthru
    _
  // Predicated region
  $region18: #{climax_forward.13} parent=0 // pred_check
    _
  $region19: #{climax_forward.13} parent=0 // pred_check_branch
    %19 = sbr.rel (0) target = $region21
  $region20: #{climax_forward.13} parent=0 // pred_region
    _
  $region21: #{climax_forward.13} parent=0 // pred_fallthru
    _
  %v21 = vld [vmem:[%s0] sm:$0xff]
  %v22 = vld [vmem:[%s0 + $0x8] sm:$0xff]
  %v23 = vld [vmem:[%s0 + $0x10] sm:$0xff]
  %v24 = vld [vmem:[%s0 + $0x18] sm:$0xff]
  %vm25 = vcmask 261120
  %v26 = vsel %vm25, %v21, 0.0
  %27 = vadd.xlane.f32.xlu0 %v26
  %v28 = vpop.xlane.xlu0 %27
  %v29 = vsel %vm25, %v22, 0.0
  %30 = vadd.xlane.f32.xlu0 %v29
  %v31 = vpop.xlane.xlu0 %30
  %v32 = vsel %vm25, %v23, 0.0
  %33 = vadd.xlane.f32.xlu0 %v32
  %v34 = vpop.xlane.xlu0 %33
  %v35 = vsel %vm25, %v24, 0.0
  %36 = vadd.xlane.f32.xlu0 %v35
  %v37 = vpop.xlane.xlu0 %36
  %v38 = vrcp.pop 32.0
  %v39 = vmul.f32 32.0, %v38
  %v40 = vsub.f32 1.0, %v39
  %v41 = vmul.f32 %v38, %v40
  %v42 = vadd.f32 %v38, %v41
  %vm43 = vweird.f32 %v38
  %v44 = vsel %vm43, %v38, %v42
  %v45 = vmul.f32 %v28, %v44
  %v46 = vmul.f32 %v31, %v44
  %v47 = vmul.f32 %v34, %v44
  %v48 = vmul.f32 %v37, %v44
  %v49 = vsub.f32 %v21, %v45
  %v50 = vsub.f32 %v22, %v46
  %v51 = vsub.f32 %v23, %v47
  %v52 = vsub.f32 %v24, %v48
  %v53 = vmul.f32 %v49, %v49
  %v54 = vmul.f32 %v50, %v50
  %v55 = vmul.f32 %v51, %v51
  %v56 = vmul.f32 %v52, %v52
  %v57 = vsel %vm25, %v53, 0.0
  %58 = vadd.xlane.f32.xlu0 %v57
  %v59 = vpop.xlane.xlu0 %58
  %v60 = vsel %vm25, %v54, 0.0
  %61 = vadd.xlane.f32.xlu0 %v60
  %v62 = vpop.xlane.xlu0 %61
  %v63 = vsel %vm25, %v55, 0.0
  %64 = vadd.xlane.f32.xlu0 %v63
  %v65 = vpop.xlane.xlu0 %64
  %v66 = vsel %vm25, %v56, 0.0
  %67 = vadd.xlane.f32.xlu0 %v66
  %v68 = vpop.xlane.xlu0 %67
  %v69 = vmul.f32 %v59, %v44
  %v70 = vmul.f32 %v62, %v44
  %v71 = vmul.f32 %v65, %v44
  %v72 = vmul.f32 %v68, %v44
  %v73 = vadd.f32 %v69, 1e-05
  %v74 = vadd.f32 %v70, 1e-05
  %v75 = vadd.f32 %v71, 1e-05
  %v76 = vadd.f32 %v72, 1e-05
  %v77 = vrsqrt.pop %v73
  %v78 = vmul.f32 %v77, %v73
  %v79 = vmul.f32 %v78, %v77
  %v80 = vmul.f32 0.5, %v79
  %v81 = vsub.f32 1.5, %v80
  %v82 = vmul.f32 %v77, %v81
  %vm83 = vweird.f32 %v73
  %vm84 = vweird.f32 %v77
  %vm85 = vmor %vm83, %vm84
  %v86 = vsel %vm85, %v77, %v82
  %v87 = vrsqrt.pop %v74
  %v88 = vmul.f32 %v87, %v74
  %v89 = vmul.f32 %v88, %v87
  %v90 = vmul.f32 0.5, %v89
  %v91 = vsub.f32 1.5, %v90
  %v92 = vmul.f32 %v87, %v91
  %vm93 = vweird.f32 %v74
  %vm94 = vweird.f32 %v87
  %vm95 = vmor %vm93, %vm94
  %v96 = vsel %vm95, %v87, %v92
  %v97 = vrsqrt.pop %v75
  %v98 = vmul.f32 %v97, %v75
  %v99 = vmul.f32 %v98, %v97
  %v100 = vmul.f32 0.5, %v99
  %v101 = vsub.f32 1.5, %v100
  %v102 = vmul.f32 %v97, %v101
  %vm103 = vweird.f32 %v75
  %vm104 = vweird.f32 %v97
  %vm105 = vmor %vm103, %vm104
  %v106 = vsel %vm105, %v97, %v102
  %v107 = vrsqrt.pop %v76
  %v108 = vmul.f32 %v107, %v76
  %v109 = vmul.f32 %v108, %v107
  %v110 = vmul.f32 0.5, %v109
  %v111 = vsub.f32 1.5, %v110
  %v112 = vmul.f32 %v107, %v111
  %vm113 = vweird.f32 %v76
  %vm114 = vweird.f32 %v107
  %vm115 = vmor %vm113, %vm114
  %v116 = vsel %vm115, %v107, %v112
  %v117 = vmul.f32 %v49, %v86
  %v118 = vmul.f32 %v50, %v96
  %v119 = vmul.f32 %v51, %v106
  %v120 = vmul.f32 %v52, %v116
  %v121 = vld [vmem:[%s1] sm:$0x1]
  %v123 = vperm.slane %v121, 0
  %v125 = vmul.f32 %v117, %v123
  %v126 = vmul.f32 %v118, %v123
  %v127 = vmul.f32 %v119, %v123
  %v128 = vmul.f32 %v120, %v123
  %v129 = vld [vmem:[%s2] sm:$0x1]
  %v131 = vperm.slane %v129, 0
  %v133 = vadd.f32 %v125, %v131
  %v134 = vadd.f32 %v126, %v131
  %v135 = vadd.f32 %v127, %v131
  %v136 = vadd.f32 %v128, %v131
  %v137 = vpack.c.bf16 %v134, %v133
  %v138 = vpack.c.bf16 %v136, %v135
  %v139 = vld [vmem:[%s3] sm:$0xff]
  %v140 = vld [vmem:[%s3 + $0x8] sm:$0xff]
  %v141 = vld [vmem:[%s3 + $0x10] sm:$0xff]
  %v142 = vld [vmem:[%s3 + $0x18] sm:$0xff]
  %v143 = vpack.c.bf16 %v140, %v139
  %v144 = vpack.c.bf16 %v142, %v141
  %v145 = vld [vmem:[%s4] sm:$0x1]
  %v147 = vperm.slane %v145, 0
  %v150 = vsel %vm25, %v137, 0
  %v153 = vsel %vm25, %v138, 0
  %155 = vmatpush.bf16.msra.mxu0 0
  %156 = vmatpush.bf16.msra.mxu0 0
  %157 = vmatpush.bf16.msra.mxu0 0
  %158 = vmatpush.bf16.msra.mxu0 0
  %159 = vmatpush.bf16.msra.mxu0 0
  %160 = vmatpush.bf16.msra.mxu0 0
  %161 = vmatpush.bf16.msra.mxu0 %v144
  %162 = vmatpush.bf16.msra.mxu0 %v143
  %163 = vmatmul.bf16.gmra.mxu0 %v150
  %v164 = vpop.f32.mrf.mxu0
  %v165 = vadd.f32 %v147, %v164
  %v166 = vpop.f32.mrf.mxu0
  %v167 = vadd.f32 %v147, %v166
  %168 = vmatmul.bf16.gmra.mxu0 %v153
  %v169 = vpop.f32.mrf.mxu0
  %v170 = vadd.f32 %v147, %v169
  %v171 = vpop.f32.mrf.mxu0
  %v172 = vadd.f32 %v147, %v171
  %173 = vdwg.mxu0
  %vm174 = vcmask 785408
  %175 = vst.msk [vmem:[%s5] sm:$0xff] %vm174, %v165
  %176 = vst.msk [vmem:[%s5 + $0x8] sm:$0xff] %vm174, %v167
  %177 = vst.msk [vmem:[%s5 + $0x10] sm:$0xff] %vm174, %v170
  %178 = vst.msk [vmem:[%s5 + $0x18] sm:$0xff] %vm174, %v172
  // Predicated region
  $region22: #{climax_forward.13} parent=0 // pred_check
    _
  $region23: #{climax_forward.13} parent=0 // pred_check_branch
    %180 = sbr.rel (0) target = $region25
  $region24: #{climax_forward.13} parent=0 // pred_region
    _
  $region25: #{climax_forward.13} parent=0 // pred_fallthru
    _
  // Predicated region
  $region26: #{climax_forward.13} parent=0 // pred_check
    _
  $region27: #{climax_forward.13} parent=0 // pred_check_branch
    %182 = sbr.rel (0) target = $region29
  $region28: #{climax_forward.13} parent=0 // pred_region
    _
  $region29: #{climax_forward.13} parent=0 // pred_fallthru
    _

// kernel: climax_forward.12
$region0: #{climax_forward.12}
  #allocation0 [shape = 'u32[]', space=smem, size = 0x4, offset = 0x4, fixed_abs, tag = 'smem constant byte address 0x4 - core index']
  #allocation1 [shape = 'u32[72,128]{1,0:T(1,128)}', space=vmem, size = 0x9000, scoped, tag = 'internal scratch']
  %s0 = inlined_call_operand.vmem [shape: f32[2,16,64], index: 0, kind: input, shape index: {}]
  %s1 = inlined_call_operand.vmem [shape: f32[64,32], index: 1, kind: input, shape index: {}]
  %s2 = inlined_call_operand.vmem [shape: f32[16,32], index: 2, kind: input, shape index: {}]
  %s3 = inlined_call_operand.vmem [shape: f32[2,1,32], index: 3, kind: input, shape index: {}]
  %s4 = inlined_call_operand.vmem [shape: f32[2,16,32], index: 4, kind: output, shape index: {}]
  %s5 = sld [smem:[#allocation0]]
  $region49: #{climax_forward.12} parent=0
    _
  %s7 = ssub.s32 1, %s5
  %s8 = scalar_select 0, %s7, %s5
  loop: start=0, step=1, limit=4
  $region2: #{climax_forward.12} parent=0 // loop_pre_header
    _
  $region3: #{climax_forward.12} parent=0 // loop_header
    %s10 = sphi 0, %s14
    %p11 = scmp.ge.s32.totalorder %s10, 4
    %s20 = sphi 0, %s22
    %s23 = sphi 0, %s20
    %s24 = sphi 0, %s23
    %s40 = sphi 0, %s24
    %s44 = sphi 0, %s44
    %s46 = sphi 0, %s44
    %s47 = sphi 0, %s46
    %s61 = sphi 0, %s47
    %s65 = sphi 0, %s65
    %s67 = sphi 0, %s65
    %s68 = sphi 0, %s67
    %s82 = sphi 0, %s68
    %s88 = sphi 0, %s90
    %s91 = sphi 0, %s88
    %s92 = sphi 0, %s91
    %s108 = sphi 0, %s92
    %s114 = sphi 0, %s116
    %s117 = sphi 0, %s114
    %s118 = sphi 0, %s117
    %s134 = sphi 0, %s118
  $region4: #{climax_forward.12} parent=0 // loop_header_branch
    %13 = sbr.rel (%p11) target = $region8
  $region5: #{climax_forward.12} parent=0 // loop_body
    %s15 = ssub.s32 %s10, 1
    %s16 = ssub.s32 %s10, 2
    %s17 = sadd.s32 %s10, 1
    %s18 = ssub.s32 %s10, %s17
    %p19 = scmp.eq.s32.totalorder %s18, 0
    %s21 = sadd.s32 %s20, 1
    %s22 = scalar_select %p19, %s20, %s21
    %p25 = pneg %p19
    %p26 = scmp.eq.s32.totalorder %s10, 1
    %p27 = por %p25, %p26
    %p28 = scmp.ne.s32.totalorder %s20, %s23
    %p29 = scmp.eq.s32.totalorder %s10, 0
    %p30 = por %p28, %p29
    %p31 = scmp.ne.s32.totalorder %s20, %s23
    %p32 = scmp.eq.s32.totalorder %s15, 1
    %p33 = por %p31, %p32
    %p34 = scmp.ne.s32.totalorder %s23, %s24
    %p35 = scmp.eq.s32.totalorder %s15, 0
    %p36 = por %p34, %p35
    %p37 = scmp.ne.s32.totalorder %s23, %s24
    %p38 = scmp.eq.s32.totalorder %s16, 1
    %p39 = por %p37, %p38
    %p41 = scmp.ne.s32.totalorder %s24, %s40
    %p42 = scmp.eq.s32.totalorder %s16, 0
    %p43 = por %p41, %p42
    %s45 = sadd.s32 %s44, 1
    %p48 = scmp.eq.s32.totalorder %s10, 1
    %p49 = scmp.ne.s32.totalorder %s44, %s46
    %p50 = scmp.eq.s32.totalorder %s10, 0
    %p51 = por %p49, %p50
    %p52 = scmp.ne.s32.totalorder %s44, %s46
    %p53 = scmp.eq.s32.totalorder %s15, 1
    %p54 = por %p52, %p53
    %p55 = scmp.ne.s32.totalorder %s46, %s47
    %p56 = scmp.eq.s32.totalorder %s15, 0
    %p57 = por %p55, %p56
    %p58 = scmp.ne.s32.totalorder %s46, %s47
    %p59 = scmp.eq.s32.totalorder %s16, 1
    %p60 = por %p58, %p59
    %p62 = scmp.ne.s32.totalorder %s47, %s61
    %p63 = scmp.eq.s32.totalorder %s16, 0
    %p64 = por %p62, %p63
    %s66 = sadd.s32 %s65, 1
    %p69 = scmp.eq.s32.totalorder %s10, 1
    %p70 = scmp.ne.s32.totalorder %s65, %s67
    %p71 = scmp.eq.s32.totalorder %s10, 0
    %p72 = por %p70, %p71
    %p73 = scmp.ne.s32.totalorder %s65, %s67
    %p74 = scmp.eq.s32.totalorder %s15, 1
    %p75 = por %p73, %p74
    %p76 = scmp.ne.s32.totalorder %s67, %s68
    %p77 = scmp.eq.s32.totalorder %s15, 0
    %p78 = por %p76, %p77
    %p79 = scmp.ne.s32.totalorder %s67, %s68
    %p80 = scmp.eq.s32.totalorder %s16, 1
    %p81 = por %p79, %p80
    %p83 = scmp.ne.s32.totalorder %s68, %s82
    %p84 = scmp.eq.s32.totalorder %s16, 0
    %p85 = por %p83, %p84
    %s86 = ssub.s32 %s10, %s17
    %p87 = scmp.eq.s32.totalorder %s86, 0
    %s89 = sadd.s32 %s88, 1
    %s90 = scalar_select %p87, %s88, %s89
    %p93 = pneg %p87
    %p94 = scmp.eq.s32.totalorder %s10, 1
    %p95 = por %p93, %p94
    %p96 = scmp.ne.s32.totalorder %s88, %s91
    %p97 = scmp.eq.s32.totalorder %s10, 0
    %p98 = por %p96, %p97
    %p99 = scmp.ne.s32.totalorder %s88, %s91
    %p100 = scmp.eq.s32.totalorder %s15, 1
    %p101 = por %p99, %p100
    %p102 = scmp.ne.s32.totalorder %s91, %s92
    %p103 = scmp.eq.s32.totalorder %s15, 0
    %p104 = por %p102, %p103
    %p105 = scmp.ne.s32.totalorder %s91, %s92
    %p106 = scmp.eq.s32.totalorder %s16, 1
    %p107 = por %p105, %p106
    %p109 = scmp.ne.s32.totalorder %s92, %s108
    %p110 = scmp.eq.s32.totalorder %s16, 0
    %p111 = por %p109, %p110
    %s112 = ssub.s32 %s10, %s17
    %p113 = scmp.eq.s32.totalorder %s112, 0
    %s115 = sadd.s32 %s114, 1
    %s116 = scalar_select %p113, %s114, %s115
    %p119 = pneg %p113
    %p120 = scmp.eq.s32.totalorder %s10, 1
    %p121 = por %p119, %p120
    %p122 = scmp.ne.s32.totalorder %s114, %s117
    %p123 = scmp.eq.s32.totalorder %s10, 0
    %p124 = por %p122, %p123
    %p125 = scmp.ne.s32.totalorder %s114, %s117
    %p126 = scmp.eq.s32.totalorder %s15, 1
    %p127 = por %p125, %p126
    %p128 = scmp.ne.s32.totalorder %s117, %s118
    %p129 = scmp.eq.s32.totalorder %s15, 0
    %p130 = por %p128, %p129
    %p131 = scmp.ne.s32.totalorder %s117, %s118
    %p132 = scmp.eq.s32.totalorder %s16, 1
    %p133 = por %p131, %p132
    %p135 = scmp.ne.s32.totalorder %s118, %s134
    %p136 = scmp.eq.s32.totalorder %s16, 0
    %p137 = por %p135, %p136
    %p138 = scmp.le.s32.totalorder 1, %s10
    %p139 = scmp.lt.s32.totalorder %s10, 3
    %p140 = pnand %p138, %p139
    %p141 = pneg %p140
    // Predicated region
    $region9: #{climax_forward.12} parent=5 // pred_check
      _
    $region10: #{climax_forward.12} parent=5 // pred_check_branch
      %143 = sbr.rel (%p140) target = $region12
    $region11: #{climax_forward.12} parent=5 // pred_region
      %s144 = ssub.s32 %s10, 1
      // Predicated region
      $region13: #{climax_forward.12} parent=11 // pred_check
        %p145 = pneg %p57
      $region14: #{climax_forward.12} parent=11 // pred_check_branch
        %147 = sbr.rel (%p145) target = $region16
      $region15: #{climax_forward.12} parent=11 // pred_region
        _
      $region16: #{climax_forward.12} parent=11 // pred_fallthru
        _
      // Predicated region
      $region17: #{climax_forward.12} parent=11 // pred_check
        %p148 = pneg %p78
      $region18: #{climax_forward.12} parent=11 // pred_check_branch
        %150 = sbr.rel (%p148) target = $region20
      $region19: #{climax_forward.12} parent=11 // pred_region
        _
      $region20: #{climax_forward.12} parent=11 // pred_fallthru
        _
    $region12: #{climax_forward.12} parent=5 // pred_fallthru
      _
    %p151 = scmp.lt.s32.totalorder %s10, 2
    // Predicated region
    $region21: #{climax_forward.12} parent=5 // pred_check
      %p152 = pneg %p151
    $region22: #{climax_forward.12} parent=5 // pred_check_branch
      %154 = sbr.rel (%p152) target = $region24
    $region23: #{climax_forward.12} parent=5 // pred_region
      // Predicated region
      $region25: #{climax_forward.12} parent=23 // pred_check
        %p155 = pneg %p30
      $region26: #{climax_forward.12} parent=23 // pred_check_branch
        %157 = sbr.rel (%p155) target = $region28
      $region27: #{climax_forward.12} parent=23 // pred_region
        %p158 = scmp.lt.s32.totalorder %s10, 1
        %s159 = scalar_select %p158, %s10, 1
        %s160 = smul.addr %s159, 2
        %s161 = smul.addr %s160, 8
        %s162 = scalar_lea.vmem %s0, %s161
      $region28: #{climax_forward.12} parent=23 // pred_fallthru
        _
      // Predicated region
      $region29: #{climax_forward.12} parent=23 // pred_check
        %p163 = pneg %p98
      $region30: #{climax_forward.12} parent=23 // pred_check_branch
        %165 = sbr.rel (%p163) target = $region32
      $region31: #{climax_forward.12} parent=23 // pred_region
        %p166 = scmp.lt.s32.totalorder %s10, 1
        %s167 = scalar_select %p166, %s10, 1
        %s168 = scalar_lea.vmem %s3, %s167
      $region32: #{climax_forward.12} parent=23 // pred_fallthru
        _
    $region24: #{climax_forward.12} parent=5 // pred_fallthru
      _
    %p169 = scmp.le.s32.totalorder 1, %s10
    %p170 = scmp.lt.s32.totalorder %s10, 3
    %p171 = pnand %p169, %p170
    %p172 = pneg %p171
    // Predicated region
    $region33: #{climax_forward.12} parent=5 // pred_check
      _
    $region34: #{climax_forward.12} parent=5 // pred_check_branch
      %174 = sbr.rel (%p171) target = $region36
    $region35: #{climax_forward.12} parent=5 // pred_region
      %s175 = ssub.s32 %s10, 1
      %p176 = scmp.lt.s32.totalorder %s15, 1
      %s177 = scalar_select %p176, %s15, 1
      %s178 = smul.addr %s177, 2
      %s179 = smul.addr %s178, 8
      %s180 = scalar_lea.vmem %s0, %s179
      %p181 = pneg %p36
      %p182 = pneg %p33
      %p183 = pneg %p57
      %p184 = pneg %p54
      %p185 = pneg %p78
      %p186 = pneg %p75
      %p187 = scmp.lt.s32.totalorder %s15, 1
      %s188 = scalar_select %p187, %s15, 1
      %s189 = scalar_lea.vmem %s3, %s188
      %p190 = pneg %p104
      %p191 = pneg %p101
      %p192 = pneg %p130
      %p193 = pneg %p127
      %p194 = scmp.lt.s32.totalorder %s15, 1
      %s195 = scalar_select %p194, %s15, 1
      %s196 = smul.addr %s195, 2
      %s197 = smul.addr %s196, 8
      %s198 = scalar_lea.vmem %s4, %s197
      %p199 = scmp.lt.s32.totalorder %s15, 1
      %s200 = scalar_select %p199, %s15, 1
      %s201 = smul.addr %s200, 2
      %s202 = smul.addr %s201, 8
      %s203 = scalar_lea.vmem %s0, %s202
      %p204 = scmp.lt.s32.totalorder %s15, 1
      %s205 = scalar_select %p204, %s15, 1
      %s206 = scalar_lea.vmem %s3, %s205
      %p207 = scmp.lt.s32.totalorder %s15, 1
      %s208 = scalar_select %p207, %s15, 1
      %s209 = smul.addr %s208, 2
      %s210 = smul.addr %s209, 8
      %s211 = scalar_lea.vmem %s4, %s210
      %v213 = vld [vmem:[%s203] sm:$0xff]
      %v214 = vld [vmem:[%s203 + $0x8] sm:$0xff]
      %v215 = vpack.c.bf16 %v214, %v213
      %v216 = vld [vmem:[%s1] sm:$0xff]
      %v217 = vld [vmem:[%s1 + $0x8] sm:$0xff]
      %v218 = vld [vmem:[%s1 + $0x10] sm:$0xff]
      %v219 = vld [vmem:[%s1 + $0x18] sm:$0xff]
      %v220 = vld [vmem:[%s1 + $0x20] sm:$0xff]
      %v221 = vld [vmem:[%s1 + $0x28] sm:$0xff]
      %v222 = vld [vmem:[%s1 + $0x30] sm:$0xff]
      %v223 = vld [vmem:[%s1 + $0x38] sm:$0xff]
      %v224 = vpack.c.bf16 %v217, %v216
      %v225 = vpack.c.bf16 %v219, %v218
      %v226 = vpack.c.bf16 %v221, %v220
      %v227 = vpack.c.bf16 %v223, %v222
      %v228 = vld [vmem:[%s2] sm:$0xff]
      %v229 = vld [vmem:[%s2 + $0x8] sm:$0xff]
      %vm230 = vcmask 523264
      %v232 = vsel %vm230, %v215, 0
      %234 = vmatpush.bf16.msra.mxu0 0
      %235 = vmatpush.bf16.msra.mxu0 0
      %236 = vmatpush.bf16.msra.mxu0 0
      %237 = vmatpush.bf16.msra.mxu0 0
      %238 = vmatpush.bf16.msra.mxu0 %v227
      %239 = vmatpush.bf16.msra.mxu0 %v226
      %240 = vmatpush.bf16.msra.mxu0 %v225
      %241 = vmatpush.bf16.msra.mxu0 %v224
      %242 = vmatmul.bf16.gmra.mxu0 %v232
      %v243 = vpop.f32.mrf.mxu0
      %v244 = vadd.f32 %v228, %v243
      %v245 = vpop.f32.mrf.mxu0
      %v246 = vadd.f32 %v229, %v245
      %247 = vdwg.mxu0
      %v248 = vld [vmem:[%s206] sm:$0x1]
      %v250 = vperm.slane %v248, 0
      %v252 = vadd.f32 %v244, %v250
      %v253 = vadd.f32 %v246, %v250
      %vm254 = vcmask 261120
      %255 = vst.msk [vmem:[%s211] sm:$0xff] %vm254, %v252
      %256 = vst.msk [vmem:[%s211 + $0x8] sm:$0xff] %vm254, %v253
      %p257 = scmp.lt.s32.totalorder %s15, 1
      %s258 = scalar_select %p257, %s15, 1
      %s259 = smul.addr %s258, 2
      %s260 = smul.addr %s259, 8
      %s261 = scalar_lea.vmem %s4, %s260
      // Predicated region
      $region37: #{climax_forward.12} parent=35 // pred_check
        %p262 = pneg %p127
      $region38: #{climax_forward.12} parent=35 // pred_check_branch
        %264 = sbr.rel (%p262) target = $region40
      $region39: #{climax_forward.12} parent=35 // pred_region
        _
      $region40: #{climax_forward.12} parent=35 // pred_fallthru
        _
    $region36: #{climax_forward.12} parent=5 // pred_fallthru
      _
    %p265 = scmp.le.s32.totalorder 2, %s10
    // Predicated region
    $region41: #{climax_forward.12} parent=5 // pred_check
      %p266 = pneg %p265
    $region42: #{climax_forward.12} parent=5 // pred_check_branch
      %268 = sbr.rel (%p266) target = $region44
    $region43: #{climax_forward.12} parent=5 // pred_region
      %s269 = ssub.s32 %s10, 2
      // Predicated region
      $region45: #{climax_forward.12} parent=43 // pred_check
        %p270 = pneg %p133
      $region46: #{climax_forward.12} parent=43 // pred_check_branch
        %272 = sbr.rel (%p270) target = $region48
      $region47: #{climax_forward.12} parent=43 // pred_region
        %p273 = scmp.lt.s32.totalorder %s16, 1
        %s274 = scalar_select %p273, %s16, 1
        %s275 = smul.addr %s274, 2
        %s276 = smul.addr %s275, 8
        %s277 = scalar_lea.vmem %s4, %s276
      $region48: #{climax_forward.12} parent=43 // pred_fallthru
        _
    $region44: #{climax_forward.12} parent=5 // pred_fallthru
      _
  $region6: #{climax_forward.12} parent=0 // loop_footer
    %s14 = sadd.s32 1, %s10
  $region7: #{climax_forward.12} parent=0 // loop_footer_branch
    %9 = sbr.rel target = $region3
  $region8: #{climax_forward.12} parent=0 // loop_exit
    _

// kernel: climax_forward.15
$region0: #{climax_forward.15}
  #allocation0 [shape = 'u32[]', space=smem, size = 0x4, offset = 0x4, fixed_abs, tag = 'smem constant byte address 0x4 - core index']
  #allocation1 [shape = 'u32[72,128]{1,0:T(1,128)}', space=vmem, size = 0x9000, scoped, tag = 'internal scratch']
  #allocation2 [shape = 'f32[32,32]{1,0:T(8,128)}', space=vmem, size = 0x4000, scoped, tag = 'scratch operand']
  %s0 = inlined_call_operand.vmem [shape: f32[32,32], index: 0, kind: input, shape index: {}]
  %s1 = inlined_call_operand.vmem [shape: f32[32,32], index: 1, kind: input, shape index: {}]
  %s2 = inlined_call_operand.vmem [shape: f32[1,32], index: 2, kind: input, shape index: {}]
  %s3 = inlined_call_operand.vmem [shape: f32[32,32], index: 3, kind: input, shape index: {}]
  %s4 = inlined_call_operand.vmem [shape: f32[32,32], index: 4, kind: output, shape index: {}]
  %s5 = sld [smem:[#allocation0]]
  $region34: #{climax_forward.15} parent=0
    _
  %s7 = ssub.s32 1, %s5
  %s8 = scalar_select 0, %s7, %s5
  // Predicated region
  $region2: #{climax_forward.15} parent=0 // pred_check
    _
  $region3: #{climax_forward.15} parent=0 // pred_check_branch
    %10 = sbr.rel (0) target = $region5
  $region4: #{climax_forward.15} parent=0 // pred_region
    _
  $region5: #{climax_forward.15} parent=0 // pred_fallthru
    _
  // Predicated region
  $region6: #{climax_forward.15} parent=0 // pred_check
    _
  $region7: #{climax_forward.15} parent=0 // pred_check_branch
    %12 = sbr.rel (0) target = $region9
  $region8: #{climax_forward.15} parent=0 // pred_region
    _
  $region9: #{climax_forward.15} parent=0 // pred_fallthru
    _
  // Predicated region
  $region10: #{climax_forward.15} parent=0 // pred_check
    _
  $region11: #{climax_forward.15} parent=0 // pred_check_branch
    %14 = sbr.rel (0) target = $region13
  $region12: #{climax_forward.15} parent=0 // pred_region
    _
  $region13: #{climax_forward.15} parent=0 // pred_fallthru
    _
  // Predicated region
  $region14: #{climax_forward.15} parent=0 // pred_check
    _
  $region15: #{climax_forward.15} parent=0 // pred_check_branch
    %16 = sbr.rel (0) target = $region17
  $region16: #{climax_forward.15} parent=0 // pred_region
    _
  $region17: #{climax_forward.15} parent=0 // pred_fallthru
    _
  %p18 = scmp.eq.s32.totalorder 0, 0
  // Predicated region
  $region18: #{climax_forward.15} parent=0 // pred_check
    %p19 = pneg %p18
  $region19: #{climax_forward.15} parent=0 // pred_check_branch
    %21 = sbr.rel (%p19) target = $region21
  $region20: #{climax_forward.15} parent=0 // pred_region
    %vm22 = vcmask 261120
    %23 = vst.msk [vmem:[#allocation2] sm:$0xff] %vm22, 0.0
    %24 = vst.msk [vmem:[#allocation2 + $0x8] sm:$0xff] %vm22, 0.0
    %25 = vst.msk [vmem:[#allocation2 + $0x10] sm:$0xff] %vm22, 0.0
    %26 = vst.msk [vmem:[#allocation2 + $0x18] sm:$0xff] %vm22, 0.0
  $region21: #{climax_forward.15} parent=0 // pred_fallthru
    _
  %v27 = vld [vmem:[#allocation2] sm:$0xff]
  %v28 = vld [vmem:[#allocation2 + $0x8] sm:$0xff]
  %v29 = vld [vmem:[#allocation2 + $0x10] sm:$0xff]
  %v30 = vld [vmem:[#allocation2 + $0x18] sm:$0xff]
  %v31 = vld [vmem:[%s0] sm:$0xff]
  %v32 = vld [vmem:[%s0 + $0x8] sm:$0xff]
  %v33 = vld [vmem:[%s0 + $0x10] sm:$0xff]
  %v34 = vld [vmem:[%s0 + $0x18] sm:$0xff]
  %v35 = vpack.c.bf16 %v32, %v31
  %v36 = vpack.c.bf16 %v34, %v33
  %v37 = vld [vmem:[%s1] sm:$0xff]
  %v38 = vld [vmem:[%s1 + $0x8] sm:$0xff]
  %v39 = vld [vmem:[%s1 + $0x10] sm:$0xff]
  %v40 = vld [vmem:[%s1 + $0x18] sm:$0xff]
  %v41 = vpack.c.bf16 %v38, %v37
  %v42 = vpack.c.bf16 %v40, %v39
  %vm43 = vcmask 261120
  %v45 = vsel %vm43, %v35, 0
  %v48 = vsel %vm43, %v36, 0
  %50 = vmatpush.bf16.msra.mxu0 0
  %51 = vmatpush.bf16.msra.mxu0 0
  %52 = vmatpush.bf16.msra.mxu0 0
  %53 = vmatpush.bf16.msra.mxu0 0
  %54 = vmatpush.bf16.msra.mxu0 0
  %55 = vmatpush.bf16.msra.mxu0 0
  %56 = vmatpush.bf16.msra.mxu0 %v42
  %57 = vmatpush.bf16.msra.mxu0 %v41
  %58 = vmatmul.bf16.gmra.mxu0 %v45
  %v59 = vpop.f32.mrf.mxu0
  %v60 = vadd.f32 0.0, %v59
  %v61 = vpop.f32.mrf.mxu0
  %v62 = vadd.f32 0.0, %v61
  %63 = vmatmul.bf16.gmra.mxu0 %v48
  %v64 = vpop.f32.mrf.mxu0
  %v65 = vadd.f32 0.0, %v64
  %v66 = vpop.f32.mrf.mxu0
  %v67 = vadd.f32 0.0, %v66
  %68 = vdwg.mxu0
  %v69 = vadd.f32 %v27, %v60
  %v70 = vadd.f32 %v28, %v62
  %v71 = vadd.f32 %v29, %v65
  %v72 = vadd.f32 %v30, %v67
  %73 = vst.msk [vmem:[#allocation2] sm:$0xff] %vm43, %v69
  %74 = vst.msk [vmem:[#allocation2 + $0x8] sm:$0xff] %vm43, %v70
  %75 = vst.msk [vmem:[#allocation2 + $0x10] sm:$0xff] %vm43, %v71
  %76 = vst.msk [vmem:[#allocation2 + $0x18] sm:$0xff] %vm43, %v72
  // Predicated region
  $region22: #{climax_forward.15} parent=0 // pred_check
    %p77 = pneg %p18
  $region23: #{climax_forward.15} parent=0 // pred_check_branch
    %79 = sbr.rel (%p77) target = $region25
  $region24: #{climax_forward.15} parent=0 // pred_region
    %v80 = vld [vmem:[#allocation2] sm:$0xff]
    %v81 = vld [vmem:[#allocation2 + $0x8] sm:$0xff]
    %v82 = vld [vmem:[#allocation2 + $0x10] sm:$0xff]
    %v83 = vld [vmem:[#allocation2 + $0x18] sm:$0xff]
    %v84 = vld [vmem:[%s2] sm:$0x1]
    %v86 = vperm.slane %v84, 0
    %v88 = vadd.f32 %v80, %v86
    %v89 = vadd.f32 %v81, %v86
    %v90 = vadd.f32 %v82, %v86
    %v91 = vadd.f32 %v83, %v86
    %v92 = vld [vmem:[%s3] sm:$0xff]
    %v93 = vld [vmem:[%s3 + $0x8] sm:$0xff]
    %v94 = vld [vmem:[%s3 + $0x10] sm:$0xff]
    %v95 = vld [vmem:[%s3 + $0x18] sm:$0xff]
    %v96 = vadd.f32 %v88, %v92
    %v97 = vadd.f32 %v89, %v93
    %v98 = vadd.f32 %v90, %v94
    %v99 = vadd.f32 %v91, %v95
    %100 = vst.msk [vmem:[%s4] sm:$0xff] %vm43, %v96
    %101 = vst.msk [vmem:[%s4 + $0x8] sm:$0xff] %vm43, %v97
    %102 = vst.msk [vmem:[%s4 + $0x10] sm:$0xff] %vm43, %v98
    %103 = vst.msk [vmem:[%s4 + $0x18] sm:$0xff] %vm43, %v99
  $region25: #{climax_forward.15} parent=0 // pred_fallthru
    _
  // Predicated region
  $region26: #{climax_forward.15} parent=0 // pred_check
    _
  $region27: #{climax_forward.15} parent=0 // pred_check_branch
    %105 = sbr.rel (0) target = $region29
  $region28: #{climax_forward.15} parent=0 // pred_region
    _
  $region29: #{climax_forward.15} parent=0 // pred_fallthru
    _
  // Predicated region
  $region30: #{climax_forward.15} parent=0 // pred_check
    _
  $region31: #{climax_forward.15} parent=0 // pred_check_branch
    %107 = sbr.rel (0) target = $region33
  $region32: #{climax_forward.15} parent=0 // pred_region
    _
  $region33: #{climax_forward.15} parent=0 // pred_fallthru
    _

// kernel: climax_forward.23
$region0: #{climax_forward.23}
  #allocation0 [shape = 'u32[]', space=smem, size = 0x4, offset = 0x4, fixed_abs, tag = 'smem constant byte address 0x4 - core index']
  #allocation1 [shape = 'u32[72,128]{1,0:T(1,128)}', space=vmem, size = 0x9000, scoped, tag = 'internal scratch']
  %s0 = inlined_call_operand.vmem [shape: f32[32,32], index: 0, kind: input, shape index: {}]
  %s1 = inlined_call_operand.vmem [shape: f32[1,32], index: 1, kind: input, shape index: {}]
  %s2 = inlined_call_operand.vmem [shape: f32[1,32], index: 2, kind: input, shape index: {}]
  %s3 = inlined_call_operand.vmem [shape: f32[32,32], index: 3, kind: input, shape index: {}]
  %s4 = inlined_call_operand.vmem [shape: f32[1,32], index: 4, kind: input, shape index: {}]
  %s5 = inlined_call_operand.vmem [shape: f32[32,32], index: 5, kind: output, shape index: {}]
  %s6 = sld [smem:[#allocation0]]
  $region30: #{climax_forward.23} parent=0
    _
  %s8 = ssub.s32 1, %s6
  %s9 = scalar_select 0, %s8, %s6
  // Predicated region
  $region2: #{climax_forward.23} parent=0 // pred_check
    _
  $region3: #{climax_forward.23} parent=0 // pred_check_branch
    %11 = sbr.rel (0) target = $region5
  $region4: #{climax_forward.23} parent=0 // pred_region
    _
  $region5: #{climax_forward.23} parent=0 // pred_fallthru
    _
  // Predicated region
  $region6: #{climax_forward.23} parent=0 // pred_check
    _
  $region7: #{climax_forward.23} parent=0 // pred_check_branch
    %13 = sbr.rel (0) target = $region9
  $region8: #{climax_forward.23} parent=0 // pred_region
    _
  $region9: #{climax_forward.23} parent=0 // pred_fallthru
    _
  // Predicated region
  $region10: #{climax_forward.23} parent=0 // pred_check
    _
  $region11: #{climax_forward.23} parent=0 // pred_check_branch
    %15 = sbr.rel (0) target = $region13
  $region12: #{climax_forward.23} parent=0 // pred_region
    _
  $region13: #{climax_forward.23} parent=0 // pred_fallthru
    _
  // Predicated region
  $region14: #{climax_forward.23} parent=0 // pred_check
    _
  $region15: #{climax_forward.23} parent=0 // pred_check_branch
    %17 = sbr.rel (0) target = $region17
  $region16: #{climax_forward.23} parent=0 // pred_region
    _
  $region17: #{climax_forward.23} parent=0 // pred_fallthru
    _
  // Predicated region
  $region18: #{climax_forward.23} parent=0 // pred_check
    _
  $region19: #{climax_forward.23} parent=0 // pred_check_branch
    %19 = sbr.rel (0) target = $region21
  $region20: #{climax_forward.23} parent=0 // pred_region
    _
  $region21: #{climax_forward.23} parent=0 // pred_fallthru
    _
  %v21 = vld [vmem:[%s0] sm:$0xff]
  %v22 = vld [vmem:[%s0 + $0x8] sm:$0xff]
  %v23 = vld [vmem:[%s0 + $0x10] sm:$0xff]
  %v24 = vld [vmem:[%s0 + $0x18] sm:$0xff]
  %vm25 = vcmask 261120
  %v26 = vsel %vm25, %v21, 0.0
  %27 = vadd.xlane.f32.xlu0 %v26
  %v28 = vpop.xlane.xlu0 %27
  %v29 = vsel %vm25, %v22, 0.0
  %30 = vadd.xlane.f32.xlu0 %v29
  %v31 = vpop.xlane.xlu0 %30
  %v32 = vsel %vm25, %v23, 0.0
  %33 = vadd.xlane.f32.xlu0 %v32
  %v34 = vpop.xlane.xlu0 %33
  %v35 = vsel %vm25, %v24, 0.0
  %36 = vadd.xlane.f32.xlu0 %v35
  %v37 = vpop.xlane.xlu0 %36
  %v38 = vrcp.pop 32.0
  %v39 = vmul.f32 32.0, %v38
  %v40 = vsub.f32 1.0, %v39
  %v41 = vmul.f32 %v38, %v40
  %v42 = vadd.f32 %v38, %v41
  %vm43 = vweird.f32 %v38
  %v44 = vsel %vm43, %v38, %v42
  %v45 = vmul.f32 %v28, %v44
  %v46 = vmul.f32 %v31, %v44
  %v47 = vmul.f32 %v34, %v44
  %v48 = vmul.f32 %v37, %v44
  %v49 = vsub.f32 %v21, %v45
  %v50 = vsub.f32 %v22, %v46
  %v51 = vsub.f32 %v23, %v47
  %v52 = vsub.f32 %v24, %v48
  %v53 = vmul.f32 %v49, %v49
  %v54 = vmul.f32 %v50, %v50
  %v55 = vmul.f32 %v51, %v51
  %v56 = vmul.f32 %v52, %v52
  %v57 = vsel %vm25, %v53, 0.0
  %58 = vadd.xlane.f32.xlu0 %v57
  %v59 = vpop.xlane.xlu0 %58
  %v60 = vsel %vm25, %v54, 0.0
  %61 = vadd.xlane.f32.xlu0 %v60
  %v62 = vpop.xlane.xlu0 %61
  %v63 = vsel %vm25, %v55, 0.0
  %64 = vadd.xlane.f32.xlu0 %v63
  %v65 = vpop.xlane.xlu0 %64
  %v66 = vsel %vm25, %v56, 0.0
  %67 = vadd.xlane.f32.xlu0 %v66
  %v68 = vpop.xlane.xlu0 %67
  %v69 = vmul.f32 %v59, %v44
  %v70 = vmul.f32 %v62, %v44
  %v71 = vmul.f32 %v65, %v44
  %v72 = vmul.f32 %v68, %v44
  %v73 = vadd.f32 %v69, 1e-05
  %v74 = vadd.f32 %v70, 1e-05
  %v75 = vadd.f32 %v71, 1e-05
  %v76 = vadd.f32 %v72, 1e-05
  %v77 = vrsqrt.pop %v73
  %v78 = vmul.f32 %v77, %v73
  %v79 = vmul.f32 %v78, %v77
  %v80 = vmul.f32 0.5, %v79
  %v81 = vsub.f32 1.5, %v80
  %v82 = vmul.f32 %v77, %v81
  %vm83 = vweird.f32 %v73
  %vm84 = vweird.f32 %v77
  %vm85 = vmor %vm83, %vm84
  %v86 = vsel %vm85, %v77, %v82
  %v87 = vrsqrt.pop %v74
  %v88 = vmul.f32 %v87, %v74
  %v89 = vmul.f32 %v88, %v87
  %v90 = vmul.f32 0.5, %v89
  %v91 = vsub.f32 1.5, %v90
  %v92 = vmul.f32 %v87, %v91
  %vm93 = vweird.f32 %v74
  %vm94 = vweird.f32 %v87
  %vm95 = vmor %vm93, %vm94
  %v96 = vsel %vm95, %v87, %v92
  %v97 = vrsqrt.pop %v75
  %v98 = vmul.f32 %v97, %v75
  %v99 = vmul.f32 %v98, %v97
  %v100 = vmul.f32 0.5, %v99
  %v101 = vsub.f32 1.5, %v100
  %v102 = vmul.f32 %v97, %v101
  %vm103 = vweird.f32 %v75
  %vm104 = vweird.f32 %v97
  %vm105 = vmor %vm103, %vm104
  %v106 = vsel %vm105, %v97, %v102
  %v107 = vrsqrt.pop %v76
  %v108 = vmul.f32 %v107, %v76
  %v109 = vmul.f32 %v108, %v107
  %v110 = vmul.f32 0.5, %v109
  %v111 = vsub.f32 1.5, %v110
  %v112 = vmul.f32 %v107, %v111
  %vm113 = vweird.f32 %v76
  %vm114 = vweird.f32 %v107
  %vm115 = vmor %vm113, %vm114
  %v116 = vsel %vm115, %v107, %v112
  %v117 = vmul.f32 %v49, %v86
  %v118 = vmul.f32 %v50, %v96
  %v119 = vmul.f32 %v51, %v106
  %v120 = vmul.f32 %v52, %v116
  %v121 = vld [vmem:[%s1] sm:$0x1]
  %v123 = vperm.slane %v121, 0
  %v125 = vmul.f32 %v117, %v123
  %v126 = vmul.f32 %v118, %v123
  %v127 = vmul.f32 %v119, %v123
  %v128 = vmul.f32 %v120, %v123
  %v129 = vld [vmem:[%s2] sm:$0x1]
  %v131 = vperm.slane %v129, 0
  %v133 = vadd.f32 %v125, %v131
  %v134 = vadd.f32 %v126, %v131
  %v135 = vadd.f32 %v127, %v131
  %v136 = vadd.f32 %v128, %v131
  %v137 = vpack.c.bf16 %v134, %v133
  %v138 = vpack.c.bf16 %v136, %v135
  %v139 = vld [vmem:[%s3] sm:$0xff]
  %v140 = vld [vmem:[%s3 + $0x8] sm:$0xff]
  %v141 = vld [vmem:[%s3 + $0x10] sm:$0xff]
  %v142 = vld [vmem:[%s3 + $0x18] sm:$0xff]
  %v143 = vpack.c.bf16 %v140, %v139
  %v144 = vpack.c.bf16 %v142, %v141
  %v145 = vld [vmem:[%s4] sm:$0x1]
  %v147 = vperm.slane %v145, 0
  %v150 = vsel %vm25, %v137, 0
  %v153 = vsel %vm25, %v138, 0
  %155 = vmatpush.bf16.msra.mxu0 0
  %156 = vmatpush.bf16.msra.mxu0 0
  %157 = vmatpush.bf16.msra.mxu0 0
  %158 = vmatpush.bf16.msra.mxu0 0
  %159 = vmatpush.bf16.msra.mxu0 0
  %160 = vmatpush.bf16.msra.mxu0 0
  %161 = vmatpush.bf16.msra.mxu0 %v144
  %162 = vmatpush.bf16.msra.mxu0 %v143
  %163 = vmatmul.bf16.gmra.mxu0 %v150
  %v164 = vpop.f32.mrf.mxu0
  %v165 = vadd.f32 %v147, %v164
  %v166 = vpop.f32.mrf.mxu0
  %v167 = vadd.f32 %v147, %v166
  %168 = vmatmul.bf16.gmra.mxu0 %v153
  %v169 = vpop.f32.mrf.mxu0
  %v170 = vadd.f32 %v147, %v169
  %v171 = vpop.f32.mrf.mxu0
  %v172 = vadd.f32 %v147, %v171
  %173 = vdwg.mxu0
  %vm174 = vcmp.ne.f32.partialorder %v165, %v165
  %vm175 = vcmp.ne.f32.partialorder %v167, %v167
  %vm176 = vcmp.ne.f32.partialorder %v170, %v170
  %vm177 = vcmp.ne.f32.partialorder %v172, %v172
  %v178 = vsel %vm174, 0.0, %v165
  %v179 = vsel %vm175, 0.0, %v167
  %v180 = vsel %vm176, 0.0, %v170
  %v181 = vsel %vm177, 0.0, %v172
  %v182 = vmax.f32 %v178, -3.4028235e+38
  %v183 = vmax.f32 %v179, -3.4028235e+38
  %v184 = vmax.f32 %v180, -3.4028235e+38
  %v185 = vmax.f32 %v181, -3.4028235e+38
  %v186 = vmin.f32 %v182, 3.4028235e+38
  %v187 = vmin.f32 %v183, 3.4028235e+38
  %v188 = vmin.f32 %v184, 3.4028235e+38
  %v189 = vmin.f32 %v185, 3.4028235e+38
  %190 = vst.msk [vmem:[%s5] sm:$0xff] %vm25, %v186
  %191 = vst.msk [vmem:[%s5 + $0x8] sm:$0xff] %vm25, %v187
  %192 = vst.msk [vmem:[%s5 + $0x10] sm:$0xff] %vm25, %v188
  %193 = vst.msk [vmem:[%s5 + $0x18] sm:$0xff] %vm25, %v189
  // Predicated region
  $region22: #{climax_forward.23} parent=0 // pred_check
    _
  $region23: #{climax_forward.23} parent=0 // pred_check_branch
    %195 = sbr.rel (0) target = $region25
  $region24: #{climax_forward.23} parent=0 // pred_region
    _
  $region25: #{climax_forward.23} parent=0 // pred_fallthru
    _
  // Predicated region
  $region26: #{climax_forward.23} parent=0 // pred_check
    _
  $region27: #{climax_forward.23} parent=0 // pred_check_branch
    %197 = sbr.rel (0) target = $region29
  $region28: #{climax_forward.23} parent=0 // pred_region
    _
  $region29: #{climax_forward.23} parent=0 // pred_fallthru
    _

// kernel: climax_forward.17
$region0: #{climax_forward.17}
  #allocation0 [shape = 'u32[]', space=smem, size = 0x4, offset = 0x4, fixed_abs, tag = 'smem constant byte address 0x4 - core index']
  #allocation1 [shape = 'u32[72,128]{1,0:T(1,128)}', space=vmem, size = 0x9000, scoped, tag = 'internal scratch']
  #allocation2 [shape = 'f32[32,32]{1,0:T(8,128)}', space=vmem, size = 0x4000, scoped, tag = 'scratch operand']
  %s0 = inlined_call_operand.vmem [shape: f32[32,128], index: 0, kind: input, shape index: {}]
  %s1 = inlined_call_operand.vmem [shape: f32[128,32], index: 1, kind: input, shape index: {}]
  %s2 = inlined_call_operand.vmem [shape: f32[1,32], index: 2, kind: input, shape index: {}]
  %s3 = inlined_call_operand.vmem [shape: f32[32,32], index: 3, kind: input, shape index: {}]
  %s4 = inlined_call_operand.vmem [shape: f32[32,32], index: 4, kind: output, shape index: {}]
  %s5 = sld [smem:[#allocation0]]
  $region34: #{climax_forward.17} parent=0
    _
  %s7 = ssub.s32 1, %s5
  %s8 = scalar_select 0, %s7, %s5
  // Predicated region
  $region2: #{climax_forward.17} parent=0 // pred_check
    _
  $region3: #{climax_forward.17} parent=0 // pred_check_branch
    %10 = sbr.rel (0) target = $region5
  $region4: #{climax_forward.17} parent=0 // pred_region
    _
  $region5: #{climax_forward.17} parent=0 // pred_fallthru
    _
  // Predicated region
  $region6: #{climax_forward.17} parent=0 // pred_check
    _
  $region7: #{climax_forward.17} parent=0 // pred_check_branch
    %12 = sbr.rel (0) target = $region9
  $region8: #{climax_forward.17} parent=0 // pred_region
    _
  $region9: #{climax_forward.17} parent=0 // pred_fallthru
    _
  // Predicated region
  $region10: #{climax_forward.17} parent=0 // pred_check
    _
  $region11: #{climax_forward.17} parent=0 // pred_check_branch
    %14 = sbr.rel (0) target = $region13
  $region12: #{climax_forward.17} parent=0 // pred_region
    _
  $region13: #{climax_forward.17} parent=0 // pred_fallthru
    _
  // Predicated region
  $region14: #{climax_forward.17} parent=0 // pred_check
    _
  $region15: #{climax_forward.17} parent=0 // pred_check_branch
    %16 = sbr.rel (0) target = $region17
  $region16: #{climax_forward.17} parent=0 // pred_region
    _
  $region17: #{climax_forward.17} parent=0 // pred_fallthru
    _
  %p17 = scmp.eq.s32.totalorder 0, 0
  // Predicated region
  $region18: #{climax_forward.17} parent=0 // pred_check
    %p18 = pneg %p17
  $region19: #{climax_forward.17} parent=0 // pred_check_branch
    %20 = sbr.rel (%p18) target = $region21
  $region20: #{climax_forward.17} parent=0 // pred_region
    %vm21 = vcmask 261120
    %22 = vst.msk [vmem:[#allocation2] sm:$0xff] %vm21, 0.0
    %23 = vst.msk [vmem:[#allocation2 + $0x8] sm:$0xff] %vm21, 0.0
    %24 = vst.msk [vmem:[#allocation2 + $0x10] sm:$0xff] %vm21, 0.0
    %25 = vst.msk [vmem:[#allocation2 + $0x18] sm:$0xff] %vm21, 0.0
  $region21: #{climax_forward.17} parent=0 // pred_fallthru
    _
  %v26 = vld [vmem:[#allocation2] sm:$0xff]
  %v27 = vld [vmem:[#allocation2 + $0x8] sm:$0xff]
  %v28 = vld [vmem:[#allocation2 + $0x10] sm:$0xff]
  %v29 = vld [vmem:[#allocation2 + $0x18] sm:$0xff]
  %v30 = vld [vmem:[%s0] sm:$0xff]
  %v31 = vld [vmem:[%s0 + $0x8] sm:$0xff]
  %v32 = vld [vmem:[%s0 + $0x10] sm:$0xff]
  %v33 = vld [vmem:[%s0 + $0x18] sm:$0xff]
  %v34 = vpack.c.bf16 %v31, %v30
  %v35 = vpack.c.bf16 %v33, %v32
  %v36 = vld [vmem:[%s1] sm:$0xff]
  %v37 = vld [vmem:[%s1 + $0x8] sm:$0xff]
  %v38 = vld [vmem:[%s1 + $0x10] sm:$0xff]
  %v39 = vld [vmem:[%s1 + $0x18] sm:$0xff]
  %v40 = vld [vmem:[%s1 + $0x20] sm:$0xff]
  %v41 = vld [vmem:[%s1 + $0x28] sm:$0xff]
  %v42 = vld [vmem:[%s1 + $0x30] sm:$0xff]
  %v43 = vld [vmem:[%s1 + $0x38] sm:$0xff]
  %v44 = vld [vmem:[%s1 + $0x40] sm:$0xff]
  %v45 = vld [vmem:[%s1 + $0x48] sm:$0xff]
  %v46 = vld [vmem:[%s1 + $0x50] sm:$0xff]
  %v47 = vld [vmem:[%s1 + $0x58] sm:$0xff]
  %v48 = vld [vmem:[%s1 + $0x60] sm:$0xff]
  %v49 = vld [vmem:[%s1 + $0x68] sm:$0xff]
  %v50 = vld [vmem:[%s1 + $0x70] sm:$0xff]
  %v51 = vld [vmem:[%s1 + $0x78] sm:$0xff]
  %v52 = vpack.c.bf16 %v37, %v36
  %v53 = vpack.c.bf16 %v39, %v38
  %v54 = vpack.c.bf16 %v41, %v40
  %v55 = vpack.c.bf16 %v43, %v42
  %v56 = vpack.c.bf16 %v45, %v44
  %v57 = vpack.c.bf16 %v47, %v46
  %v58 = vpack.c.bf16 %v49, %v48
  %v59 = vpack.c.bf16 %v51, %v50
  %60 = vmatpush.bf16.msra.mxu0 %v59
  %61 = vmatpush.bf16.msra.mxu0 %v58
  %62 = vmatpush.bf16.msra.mxu0 %v57
  %63 = vmatpush.bf16.msra.mxu0 %v56
  %64 = vmatpush.bf16.msra.mxu0 %v55
  %65 = vmatpush.bf16.msra.mxu0 %v54
  %66 = vmatpush.bf16.msra.mxu0 %v53
  %67 = vmatpush.bf16.msra.mxu0 %v52
  %68 = vmatmul.bf16.gmra.mxu0 %v34
  %v69 = vpop.f32.mrf.mxu0
  %v70 = vadd.f32 0.0, %v69
  %v71 = vpop.f32.mrf.mxu0
  %v72 = vadd.f32 0.0, %v71
  %73 = vmatmul.bf16.gmra.mxu0 %v35
  %v74 = vpop.f32.mrf.mxu0
  %v75 = vadd.f32 0.0, %v74
  %v76 = vpop.f32.mrf.mxu0
  %v77 = vadd.f32 0.0, %v76
  %78 = vdwg.mxu0
  %v79 = vadd.f32 %v26, %v70
  %v80 = vadd.f32 %v27, %v72
  %v81 = vadd.f32 %v28, %v75
  %v82 = vadd.f32 %v29, %v77
  %vm83 = vcmask 261120
  %84 = vst.msk [vmem:[#allocation2] sm:$0xff] %vm83, %v79
  %85 = vst.msk [vmem:[#allocation2 + $0x8] sm:$0xff] %vm83, %v80
  %86 = vst.msk [vmem:[#allocation2 + $0x10] sm:$0xff] %vm83, %v81
  %87 = vst.msk [vmem:[#allocation2 + $0x18] sm:$0xff] %vm83, %v82
  // Predicated region
  $region22: #{climax_forward.17} parent=0 // pred_check
    %p88 = pneg %p17
  $region23: #{climax_forward.17} parent=0 // pred_check_branch
    %90 = sbr.rel (%p88) target = $region25
  $region24: #{climax_forward.17} parent=0 // pred_region
    %v91 = vld [vmem:[#allocation2] sm:$0xff]
    %v92 = vld [vmem:[#allocation2 + $0x8] sm:$0xff]
    %v93 = vld [vmem:[#allocation2 + $0x10] sm:$0xff]
    %v94 = vld [vmem:[#allocation2 + $0x18] sm:$0xff]
    %v95 = vld [vmem:[%s2] sm:$0x1]
    %v97 = vperm.slane %v95, 0
    %v99 = vadd.f32 %v91, %v97
    %v100 = vadd.f32 %v92, %v97
    %v101 = vadd.f32 %v93, %v97
    %v102 = vadd.f32 %v94, %v97
    %v103 = vld [vmem:[%s3] sm:$0xff]
    %v104 = vld [vmem:[%s3 + $0x8] sm:$0xff]
    %v105 = vld [vmem:[%s3 + $0x10] sm:$0xff]
    %v106 = vld [vmem:[%s3 + $0x18] sm:$0xff]
    %v107 = vadd.f32 %v99, %v103
    %v108 = vadd.f32 %v100, %v104
    %v109 = vadd.f32 %v101, %v105
    %v110 = vadd.f32 %v102, %v106
    %111 = vst.msk [vmem:[%s4] sm:$0xff] %vm83, %v107
    %112 = vst.msk [vmem:[%s4 + $0x8] sm:$0xff] %vm83, %v108
    %113 = vst.msk [vmem:[%s4 + $0x10] sm:$0xff] %vm83, %v109
    %114 = vst.msk [vmem:[%s4 + $0x18] sm:$0xff] %vm83, %v110
  $region25: #{climax_forward.17} parent=0 // pred_fallthru
    _
  // Predicated region
  $region26: #{climax_forward.17} parent=0 // pred_check
    _
  $region27: #{climax_forward.17} parent=0 // pred_check_branch
    %116 = sbr.rel (0) target = $region29
  $region28: #{climax_forward.17} parent=0 // pred_region
    _
  $region29: #{climax_forward.17} parent=0 // pred_fallthru
    _
  // Predicated region
  $region30: #{climax_forward.17} parent=0 // pred_check
    _
  $region31: #{climax_forward.17} parent=0 // pred_check_branch
    %118 = sbr.rel (0) target = $region33
  $region32: #{climax_forward.17} parent=0 // pred_region
    _
  $region33: #{climax_forward.17} parent=0 // pred_fallthru
    _

// kernel: climax_forward.16
$region0: #{climax_forward.16}
  #allocation0 [shape = 'u32[]', space=smem, size = 0x4, offset = 0x4, fixed_abs, tag = 'smem constant byte address 0x4 - core index']
  #allocation1 [shape = 'u32[72,128]{1,0:T(1,128)}', space=vmem, size = 0x9000, scoped, tag = 'internal scratch']
  %s0 = inlined_call_operand.vmem [shape: f32[32,32], index: 0, kind: input, shape index: {}]
  %s1 = inlined_call_operand.vmem [shape: f32[1,32], index: 1, kind: input, shape index: {}]
  %s2 = inlined_call_operand.vmem [shape: f32[1,32], index: 2, kind: input, shape index: {}]
  %s3 = inlined_call_operand.vmem [shape: f32[32,128], index: 3, kind: input, shape index: {}]
  %s4 = inlined_call_operand.vmem [shape: f32[1,128], index: 4, kind: input, shape index: {}]
  %s5 = inlined_call_operand.vmem [shape: f32[32,128], index: 5, kind: output, shape index: {}]
  %s6 = sld [smem:[#allocation0]]
  $region30: #{climax_forward.16} parent=0
    _
  %s8 = ssub.s32 1, %s6
  %s9 = scalar_select 0, %s8, %s6
  // Predicated region
  $region2: #{climax_forward.16} parent=0 // pred_check
    _
  $region3: #{climax_forward.16} parent=0 // pred_check_branch
    %11 = sbr.rel (0) target = $region5
  $region4: #{climax_forward.16} parent=0 // pred_region
    _
  $region5: #{climax_forward.16} parent=0 // pred_fallthru
    _
  // Predicated region
  $region6: #{climax_forward.16} parent=0 // pred_check
    _
  $region7: #{climax_forward.16} parent=0 // pred_check_branch
    %13 = sbr.rel (0) target = $region9
  $region8: #{climax_forward.16} parent=0 // pred_region
    _
  $region9: #{climax_forward.16} parent=0 // pred_fallthru
    _
  // Predicated region
  $region10: #{climax_forward.16} parent=0 // pred_check
    _
  $region11: #{climax_forward.16} parent=0 // pred_check_branch
    %15 = sbr.rel (0) target = $region13
  $region12: #{climax_forward.16} parent=0 // pred_region
    _
  $region13: #{climax_forward.16} parent=0 // pred_fallthru
    _
  // Predicated region
  $region14: #{climax_forward.16} parent=0 // pred_check
    _
  $region15: #{climax_forward.16} parent=0 // pred_check_branch
    %17 = sbr.rel (0) target = $region17
  $region16: #{climax_forward.16} parent=0 // pred_region
    _
  $region17: #{climax_forward.16} parent=0 // pred_fallthru
    _
  // Predicated region
  $region18: #{climax_forward.16} parent=0 // pred_check
    _
  $region19: #{climax_forward.16} parent=0 // pred_check_branch
    %19 = sbr.rel (0) target = $region21
  $region20: #{climax_forward.16} parent=0 // pred_region
    _
  $region21: #{climax_forward.16} parent=0 // pred_fallthru
    _
  %v21 = vld [vmem:[%s0] sm:$0xff]
  %v22 = vld [vmem:[%s0 + $0x8] sm:$0xff]
  %v23 = vld [vmem:[%s0 + $0x10] sm:$0xff]
  %v24 = vld [vmem:[%s0 + $0x18] sm:$0xff]
  %vm25 = vcmask 261120
  %v26 = vsel %vm25, %v21, 0.0
  %27 = vadd.xlane.f32.xlu0 %v26
  %v28 = vpop.xlane.xlu0 %27
  %v29 = vsel %vm25, %v22, 0.0
  %30 = vadd.xlane.f32.xlu0 %v29
  %v31 = vpop.xlane.xlu0 %30
  %v32 = vsel %vm25, %v23, 0.0
  %33 = vadd.xlane.f32.xlu0 %v32
  %v34 = vpop.xlane.xlu0 %33
  %v35 = vsel %vm25, %v24, 0.0
  %36 = vadd.xlane.f32.xlu0 %v35
  %v37 = vpop.xlane.xlu0 %36
  %v38 = vrcp.pop 32.0
  %v39 = vmul.f32 32.0, %v38
  %v40 = vsub.f32 1.0, %v39
  %v41 = vmul.f32 %v38, %v40
  %v42 = vadd.f32 %v38, %v41
  %vm43 = vweird.f32 %v38
  %v44 = vsel %vm43, %v38, %v42
  %v45 = vmul.f32 %v28, %v44
  %v46 = vmul.f32 %v31, %v44
  %v47 = vmul.f32 %v34, %v44
  %v48 = vmul.f32 %v37, %v44
  %v49 = vsub.f32 %v21, %v45
  %v50 = vsub.f32 %v22, %v46
  %v51 = vsub.f32 %v23, %v47
  %v52 = vsub.f32 %v24, %v48
  %v53 = vmul.f32 %v49, %v49
  %v54 = vmul.f32 %v50, %v50
  %v55 = vmul.f32 %v51, %v51
  %v56 = vmul.f32 %v52, %v52
  %v57 = vsel %vm25, %v53, 0.0
  %58 = vadd.xlane.f32.xlu0 %v57
  %v59 = vpop.xlane.xlu0 %58
  %v60 = vsel %vm25, %v54, 0.0
  %61 = vadd.xlane.f32.xlu0 %v60
  %v62 = vpop.xlane.xlu0 %61
  %v63 = vsel %vm25, %v55, 0.0
  %64 = vadd.xlane.f32.xlu0 %v63
  %v65 = vpop.xlane.xlu0 %64
  %v66 = vsel %vm25, %v56, 0.0
  %67 = vadd.xlane.f32.xlu0 %v66
  %v68 = vpop.xlane.xlu0 %67
  %v69 = vmul.f32 %v59, %v44
  %v70 = vmul.f32 %v62, %v44
  %v71 = vmul.f32 %v65, %v44
  %v72 = vmul.f32 %v68, %v44
  %v73 = vadd.f32 %v69, 1e-05
  %v74 = vadd.f32 %v70, 1e-05
  %v75 = vadd.f32 %v71, 1e-05
  %v76 = vadd.f32 %v72, 1e-05
  %v77 = vrsqrt.pop %v73
  %v78 = vmul.f32 %v77, %v73
  %v79 = vmul.f32 %v78, %v77
  %v80 = vmul.f32 0.5, %v79
  %v81 = vsub.f32 1.5, %v80
  %v82 = vmul.f32 %v77, %v81
  %vm83 = vweird.f32 %v73
  %vm84 = vweird.f32 %v77
  %vm85 = vmor %vm83, %vm84
  %v86 = vsel %vm85, %v77, %v82
  %v87 = vrsqrt.pop %v74
  %v88 = vmul.f32 %v87, %v74
  %v89 = vmul.f32 %v88, %v87
  %v90 = vmul.f32 0.5, %v89
  %v91 = vsub.f32 1.5, %v90
  %v92 = vmul.f32 %v87, %v91
  %vm93 = vweird.f32 %v74
  %vm94 = vweird.f32 %v87
  %vm95 = vmor %vm93, %vm94
  %v96 = vsel %vm95, %v87, %v92
  %v97 = vrsqrt.pop %v75
  %v98 = vmul.f32 %v97, %v75
  %v99 = vmul.f32 %v98, %v97
  %v100 = vmul.f32 0.5, %v99
  %v101 = vsub.f32 1.5, %v100
  %v102 = vmul.f32 %v97, %v101
  %vm103 = vweird.f32 %v75
  %vm104 = vweird.f32 %v97
  %vm105 = vmor %vm103, %vm104
  %v106 = vsel %vm105, %v97, %v102
  %v107 = vrsqrt.pop %v76
  %v108 = vmul.f32 %v107, %v76
  %v109 = vmul.f32 %v108, %v107
  %v110 = vmul.f32 0.5, %v109
  %v111 = vsub.f32 1.5, %v110
  %v112 = vmul.f32 %v107, %v111
  %vm113 = vweird.f32 %v76
  %vm114 = vweird.f32 %v107
  %vm115 = vmor %vm113, %vm114
  %v116 = vsel %vm115, %v107, %v112
  %v117 = vmul.f32 %v49, %v86
  %v118 = vmul.f32 %v50, %v96
  %v119 = vmul.f32 %v51, %v106
  %v120 = vmul.f32 %v52, %v116
  %v121 = vld [vmem:[%s1] sm:$0x1]
  %v123 = vperm.slane %v121, 0
  %v125 = vmul.f32 %v117, %v123
  %v126 = vmul.f32 %v118, %v123
  %v127 = vmul.f32 %v119, %v123
  %v128 = vmul.f32 %v120, %v123
  %v129 = vld [vmem:[%s2] sm:$0x1]
  %v131 = vperm.slane %v129, 0
  %v133 = vadd.f32 %v125, %v131
  %v134 = vadd.f32 %v126, %v131
  %v135 = vadd.f32 %v127, %v131
  %v136 = vadd.f32 %v128, %v131
  %v137 = vpack.c.bf16 %v134, %v133
  %v138 = vpack.c.bf16 %v136, %v135
  %v139 = vld [vmem:[%s3] sm:$0xff]
  %v140 = vld [vmem:[%s3 + $0x8] sm:$0xff]
  %v141 = vld [vmem:[%s3 + $0x10] sm:$0xff]
  %v142 = vld [vmem:[%s3 + $0x18] sm:$0xff]
  %v143 = vpack.c.bf16 %v140, %v139
  %v144 = vpack.c.bf16 %v142, %v141
  %v145 = vld [vmem:[%s4] sm:$0x1]
  %v147 = vperm.slane %v145, 0
  %v150 = vsel %vm25, %v137, 0
  %v153 = vsel %vm25, %v138, 0
  %155 = vmatpush.bf16.msra.mxu0 0
  %156 = vmatpush.bf16.msra.mxu0 0
  %157 = vmatpush.bf16.msra.mxu0 0
  %158 = vmatpush.bf16.msra.mxu0 0
  %159 = vmatpush.bf16.msra.mxu0 0
  %160 = vmatpush.bf16.msra.mxu0 0
  %161 = vmatpush.bf16.msra.mxu0 %v144
  %162 = vmatpush.bf16.msra.mxu0 %v143
  %163 = vmatmul.bf16.gmra.mxu0 %v150
  %v164 = vpop.f32.mrf.mxu0
  %v165 = vadd.f32 %v147, %v164
  %v166 = vpop.f32.mrf.mxu0
  %v167 = vadd.f32 %v147, %v166
  %168 = vmatmul.bf16.gmra.mxu0 %v153
  %v169 = vpop.f32.mrf.mxu0
  %v170 = vadd.f32 %v147, %v169
  %v171 = vpop.f32.mrf.mxu0
  %v172 = vadd.f32 %v147, %v171
  %173 = vdwg.mxu0
  %v174 = vmul.f32 %v165, 0.5
  %v175 = vmul.f32 %v167, 0.5
  %v176 = vmul.f32 %v170, 0.5
  %v177 = vmul.f32 %v172, 0.5
  %v178 = vmul.f32 %v165, 0.70710677
  %v179 = vmul.f32 %v167, 0.70710677
  %v180 = vmul.f32 %v170, 0.70710677
  %v181 = vmul.f32 %v172, 0.70710677
  %v182 = vand.u32 2147483647, %v178
  %v183 = vand.u32 2147483647, %v179
  %v184 = vand.u32 2147483647, %v180
  %v185 = vand.u32 2147483647, %v181
  %v186 = vmul.f32 %v182, 0.3275911
  %v187 = vmul.f32 %v183, 0.3275911
  %v188 = vmul.f32 %v184, 0.3275911
  %v189 = vmul.f32 %v185, 0.3275911
  %v190 = vadd.f32 %v186, 1.0
  %v191 = vadd.f32 %v187, 1.0
  %v192 = vadd.f32 %v188, 1.0
  %v193 = vadd.f32 %v189, 1.0
  %v194 = vrcp.pop %v190
  %v195 = vmul.f32 %v190, %v194
  %v196 = vsub.f32 1.0, %v195
  %v197 = vmul.f32 %v194, %v196
  %v198 = vadd.f32 %v194, %v197
  %vm199 = vweird.f32 %v190
  %vm200 = vweird.f32 %v194
  %vm201 = vmor %vm199, %vm200
  %v202 = vsel %vm201, %v194, %v198
  %v203 = vand.u32 2147483647, %v190
  %vm204 = vcmp.eq.f32.partialorder %v203, 8.507059e+37
  %v205 = vand.u32 %v190, 2147483648
  %v206 = vor.u32 1.1754944e-38, %v205
  %v207 = vsel %vm204, %v206, %v202
  %v208 = vmul.f32 1.0, %v207
  %v209 = vrcp.pop %v191
  %v210 = vmul.f32 %v191, %v209
  %v211 = vsub.f32 1.0, %v210
  %v212 = vmul.f32 %v209, %v211
  %v213 = vadd.f32 %v209, %v212
  %vm214 = vweird.f32 %v191
  %vm215 = vweird.f32 %v209
  %vm216 = vmor %vm214, %vm215
  %v217 = vsel %vm216, %v209, %v213
  %v218 = vand.u32 2147483647, %v191
  %vm219 = vcmp.eq.f32.partialorder %v218, 8.507059e+37
  %v220 = vand.u32 %v191, 2147483648
  %v221 = vor.u32 1.1754944e-38, %v220
  %v222 = vsel %vm219, %v221, %v217
  %v223 = vmul.f32 1.0, %v222
  %v224 = vrcp.pop %v192
  %v225 = vmul.f32 %v192, %v224
  %v226 = vsub.f32 1.0, %v225
  %v227 = vmul.f32 %v224, %v226
  %v228 = vadd.f32 %v224, %v227
  %vm229 = vweird.f32 %v192
  %vm230 = vweird.f32 %v224
  %vm231 = vmor %vm229, %vm230
  %v232 = vsel %vm231, %v224, %v228
  %v233 = vand.u32 2147483647, %v192
  %vm234 = vcmp.eq.f32.partialorder %v233, 8.507059e+37
  %v235 = vand.u32 %v192, 2147483648
  %v236 = vor.u32 1.1754944e-38, %v235
  %v237 = vsel %vm234, %v236, %v232
  %v238 = vmul.f32 1.0, %v237
  %v239 = vrcp.pop %v193
  %v240 = vmul.f32 %v193, %v239
  %v241 = vsub.f32 1.0, %v240
  %v242 = vmul.f32 %v239, %v241
  %v243 = vadd.f32 %v239, %v242
  %vm244 = vweird.f32 %v193
  %vm245 = vweird.f32 %v239
  %vm246 = vmor %vm244, %vm245
  %v247 = vsel %vm246, %v239, %v243
  %v248 = vand.u32 2147483647, %v193
  %vm249 = vcmp.eq.f32.partialorder %v248, 8.507059e+37
  %v250 = vand.u32 %v193, 2147483648
  %v251 = vor.u32 1.1754944e-38, %v250
  %v252 = vsel %vm249, %v251, %v247
  %v253 = vmul.f32 1.0, %v252
  %v254 = vmul.f32 %v208, 1.0614054
  %v255 = vmul.f32 %v223, 1.0614054
  %v256 = vmul.f32 %v238, 1.0614054
  %v257 = vmul.f32 %v253, 1.0614054
  %v258 = vadd.f32 %v254, -1.4531521
  %v259 = vadd.f32 %v255, -1.4531521
  %v260 = vadd.f32 %v256, -1.4531521
  %v261 = vadd.f32 %v257, -1.4531521
  %v262 = vmul.f32 %v258, %v208
  %v263 = vmul.f32 %v259, %v223
  %v264 = vmul.f32 %v260, %v238
  %v265 = vmul.f32 %v261, %v253
  %v266 = vadd.f32 %v262, 1.4214138
  %v267 = vadd.f32 %v263, 1.4214138
  %v268 = vadd.f32 %v264, 1.4214138
  %v269 = vadd.f32 %v265, 1.4214138
  %v270 = vmul.f32 %v266, %v208
  %v271 = vmul.f32 %v267, %v223
  %v272 = vmul.f32 %v268, %v238
  %v273 = vmul.f32 %v269, %v253
  %v274 = vadd.f32 %v270, -0.28449672
  %v275 = vadd.f32 %v271, -0.28449672
  %v276 = vadd.f32 %v272, -0.28449672
  %v277 = vadd.f32 %v273, -0.28449672
  %v278 = vmul.f32 %v274, %v208
  %v279 = vmul.f32 %v275, %v223
  %v280 = vmul.f32 %v276, %v238
  %v281 = vmul.f32 %v277, %v253
  %v282 = vadd.f32 %v278, 0.2548296
  %v283 = vadd.f32 %v279, 0.2548296
  %v284 = vadd.f32 %v280, 0.2548296
  %v285 = vadd.f32 %v281, 0.2548296
  %v286 = vmul.f32 %v282, %v208
  %v287 = vmul.f32 %v283, %v223
  %v288 = vmul.f32 %v284, %v238
  %v289 = vmul.f32 %v285, %v253
  %v290 = vsub.f32 0.0, %v182
  %v291 = vsub.f32 0.0, %v183
  %v292 = vsub.f32 0.0, %v184
  %v293 = vsub.f32 0.0, %v185
  %v294 = vmul.f32 %v290, %v182
  %v295 = vmul.f32 %v291, %v183
  %v296 = vmul.f32 %v292, %v184
  %v297 = vmul.f32 %v293, %v185
  %v298 = vmul.f32 %v294, 1.442695
  %v299 = vpow.pop %v298
  %v300 = vmul.f32 %v295, 1.442695
  %v301 = vpow.pop %v300
  %v302 = vmul.f32 %v296, 1.442695
  %v303 = vpow.pop %v302
  %v304 = vmul.f32 %v297, 1.442695
  %v305 = vpow.pop %v304
  %v306 = vmul.f32 %v286, %v299
  %v307 = vmul.f32 %v287, %v301
  %v308 = vmul.f32 %v288, %v303
  %v309 = vmul.f32 %v289, %v305
  %v310 = vsub.f32 1.0, %v306
  %v311 = vsub.f32 1.0, %v307
  %v312 = vsub.f32 1.0, %v308
  %v313 = vsub.f32 1.0, %v309
  %vm314 = vcmp.ge.f32.partialorder %v178, 0.0
  %vm315 = vcmp.ge.f32.partialorder %v179, 0.0
  %vm316 = vcmp.ge.f32.partialorder %v180, 0.0
  %vm317 = vcmp.ge.f32.partialorder %v181, 0.0
  %v318 = vsub.f32 0.0, %v310
  %v319 = vsub.f32 0.0, %v311
  %v320 = vsub.f32 0.0, %v312
  %v321 = vsub.f32 0.0, %v313
  %v322 = vsel %vm314, %v310, %v318
  %v323 = vsel %vm315, %v311, %v319
  %v324 = vsel %vm316, %v312, %v320
  %v325 = vsel %vm317, %v313, %v321
  %v326 = vadd.f32 %v322, 1.0
  %v327 = vadd.f32 %v323, 1.0
  %v328 = vadd.f32 %v324, 1.0
  %v329 = vadd.f32 %v325, 1.0
  %v330 = vmul.f32 %v174, %v326
  %v331 = vmul.f32 %v175, %v327
  %v332 = vmul.f32 %v176, %v328
  %v333 = vmul.f32 %v177, %v329
  %334 = vst [vmem:[%s5] sm:$0xff] %v330
  %335 = vst [vmem:[%s5 + $0x8] sm:$0xff] %v331
  %336 = vst [vmem:[%s5 + $0x10] sm:$0xff] %v332
  %337 = vst [vmem:[%s5 + $0x18] sm:$0xff] %v333
  // Predicated region
  $region22: #{climax_forward.16} parent=0 // pred_check
    _
  $region23: #{climax_forward.16} parent=0 // pred_check_branch
    %339 = sbr.rel (0) target = $region25
  $region24: #{climax_forward.16} parent=0 // pred_region
    _
  $region25: #{climax_forward.16} parent=0 // pred_fallthru
    _
  // Predicated region
  $region26: #{climax_forward.16} parent=0 // pred_check
    _
  $region27: #{climax_forward.16} parent=0 // pred_check_branch
    %341 = sbr.rel (0) target = $region29
  $region28: #{climax_forward.16} parent=0 // pred_region
    _
  $region29: #{climax_forward.16} parent=0 // pred_fallthru
    _

// kernel: climax_forward.14
$region0: #{climax_forward.14}
  #allocation0 [shape = 'u32[]', space=smem, size = 0x4, offset = 0x4, fixed_abs, tag = 'smem constant byte address 0x4 - core index']
  #allocation1 [shape = 'u32[72,128]{1,0:T(1,128)}', space=vmem, size = 0x9000, scoped, tag = 'internal scratch']
  %s0 = inlined_call_operand.vmem [shape: f32[2,16,3,4,8], index: 0, kind: input, shape index: {}, may-alias: {0,1,2}]
  %s1 = inlined_call_operand.vmem [shape: f32[2,16,3,4,8], index: 1, kind: input, shape index: {}, may-alias: {0,1,2}]
  %s2 = inlined_call_operand.vmem [shape: f32[2,16,3,4,8], index: 2, kind: input, shape index: {}, may-alias: {0,1,2}]
  %s3 = inlined_call_operand.vmem [shape: f32[2,16,32], index: 3, kind: output, shape index: {}]
  %s4 = sld [smem:[#allocation0]]
  $region168: #{climax_forward.14} parent=0
    _
  %s6 = ssub.s32 1, %s4
  %s7 = scalar_select 0, %s6, %s4
  $region1: #{climax_forward.14} parent=0
    #allocation2 [shape = 'u8[65536]{0}', space=vmem, size = 0x10000, scoped, tag = 'input window, operand 0']
    #allocation3 [shape = 'u8[65536]{0}', space=vmem, size = 0x10000, scoped, tag = 'input window, operand 1']
    #allocation4 [shape = 'u8[65536]{0}', space=vmem, size = 0x10000, scoped, tag = 'input window, operand 2']
    loop: start=0, step=1, limit=4
    $region2: #{climax_forward.14} parent=1 // loop_pre_header
      _
    $region3: #{climax_forward.14} parent=1 // loop_header
      %s9 = sphi 0, %s13
      %p10 = scmp.ge.s32.totalorder %s9, 4
      %s16 = sphi 0, %s28
      %s17 = sphi 0, %s24
      %s18 = sphi 0, %s16
      %s19 = sphi 0, %s17
      %s20 = sphi 0, %s18
      %s21 = sphi 0, %s19
      %s33 = sphi 0, %s35
      %s36 = sphi 0, %s33
      %s37 = sphi 0, %s36
      %s53 = sphi 0, %s37
      %s59 = sphi 0, %s61
      %s62 = sphi 0, %s59
      %s63 = sphi 0, %s62
      %s79 = sphi 0, %s63
      %s85 = sphi 0, %s87
      %s88 = sphi 0, %s85
      %s89 = sphi 0, %s88
      %s105 = sphi 0, %s89
      %s113 = sphi 0, %s115
      %s116 = sphi 0, %s113
      %s117 = sphi 0, %s116
      %s133 = sphi 0, %s117
    $region4: #{climax_forward.14} parent=1 // loop_header_branch
      %12 = sbr.rel (%p10) target = $region8
    $region5: #{climax_forward.14} parent=1 // loop_body
      %s14 = ssub.s32 %s9, 1
      %s15 = ssub.s32 %s9, 2
      %s22 = sadd.s32 1, %s17
      %p23 = scmp.ge.s32.totalorder %s22, 1
      %s24 = scalar_select %p23, 0, %s22
      %s25 = sadd.s32 1, %s16
      %s26 = scalar_select %p23, %s25, %s16
      %p27 = scmp.ge.s32.totalorder %s26, 2
      %s28 = scalar_select %p27, 0, %s26
      %s29 = ssub.s32 %s16, %s28
      %s30 = ssub.s32 %s17, %s24
      %s31 = sor.u32 %s29, %s30
      %p32 = scmp.eq.s32.totalorder %s31, 0
      %s34 = sadd.s32 %s33, 1
      %s35 = scalar_select %p32, %s33, %s34
      %p38 = pneg %p32
      %p39 = scmp.eq.s32.totalorder %s9, 1
      %p40 = por %p38, %p39
      %p41 = scmp.ne.s32.totalorder %s33, %s36
      %p42 = scmp.eq.s32.totalorder %s9, 0
      %p43 = por %p41, %p42
      %p44 = scmp.ne.s32.totalorder %s33, %s36
      %p45 = scmp.eq.s32.totalorder %s14, 1
      %p46 = por %p44, %p45
      %p47 = scmp.ne.s32.totalorder %s36, %s37
      %p48 = scmp.eq.s32.totalorder %s14, 0
      %p49 = por %p47, %p48
      %p50 = scmp.ne.s32.totalorder %s36, %s37
      %p51 = scmp.eq.s32.totalorder %s15, 1
      %p52 = por %p50, %p51
      %p54 = scmp.ne.s32.totalorder %s37, %s53
      %p55 = scmp.eq.s32.totalorder %s15, 0
      %p56 = por %p54, %p55
      %s57 = ssub.s32 %s16, %s28
      %p58 = scmp.eq.s32.totalorder %s57, 0
      %s60 = sadd.s32 %s59, 1
      %s61 = scalar_select %p58, %s59, %s60
      %p64 = pneg %p58
      %p65 = scmp.eq.s32.totalorder %s9, 1
      %p66 = por %p64, %p65
      %p67 = scmp.ne.s32.totalorder %s59, %s62
      %p68 = scmp.eq.s32.totalorder %s9, 0
      %p69 = por %p67, %p68
      %p70 = scmp.ne.s32.totalorder %s59, %s62
      %p71 = scmp.eq.s32.totalorder %s14, 1
      %p72 = por %p70, %p71
      %p73 = scmp.ne.s32.totalorder %s62, %s63
      %p74 = scmp.eq.s32.totalorder %s14, 0
      %p75 = por %p73, %p74
      %p76 = scmp.ne.s32.totalorder %s62, %s63
      %p77 = scmp.eq.s32.totalorder %s15, 1
      %p78 = por %p76, %p77
      %p80 = scmp.ne.s32.totalorder %s63, %s79
      %p81 = scmp.eq.s32.totalorder %s15, 0
      %p82 = por %p80, %p81
      %s83 = ssub.s32 %s16, %s28
      %p84 = scmp.eq.s32.totalorder %s83, 0
      %s86 = sadd.s32 %s85, 1
      %s87 = scalar_select %p84, %s85, %s86
      %p90 = pneg %p84
      %p91 = scmp.eq.s32.totalorder %s9, 1
      %p92 = por %p90, %p91
      %p93 = scmp.ne.s32.totalorder %s85, %s88
      %p94 = scmp.eq.s32.totalorder %s9, 0
      %p95 = por %p93, %p94
      %p96 = scmp.ne.s32.totalorder %s85, %s88
      %p97 = scmp.eq.s32.totalorder %s14, 1
      %p98 = por %p96, %p97
      %p99 = scmp.ne.s32.totalorder %s88, %s89
      %p100 = scmp.eq.s32.totalorder %s14, 0
      %p101 = por %p99, %p100
      %p102 = scmp.ne.s32.totalorder %s88, %s89
      %p103 = scmp.eq.s32.totalorder %s15, 1
      %p104 = por %p102, %p103
      %p106 = scmp.ne.s32.totalorder %s89, %s105
      %p107 = scmp.eq.s32.totalorder %s15, 0
      %p108 = por %p106, %p107
      %s109 = ssub.s32 %s16, %s28
      %s110 = ssub.s32 %s17, %s24
      %s111 = sor.u32 %s109, %s110
      %p112 = scmp.eq.s32.totalorder %s111, 0
      %s114 = sadd.s32 %s113, 1
      %s115 = scalar_select %p112, %s113, %s114
      %p118 = pneg %p112
      %p119 = scmp.eq.s32.totalorder %s9, 1
      %p120 = por %p118, %p119
      %p121 = scmp.ne.s32.totalorder %s113, %s116
      %p122 = scmp.eq.s32.totalorder %s9, 0
      %p123 = por %p121, %p122
      %p124 = scmp.ne.s32.totalorder %s113, %s116
      %p125 = scmp.eq.s32.totalorder %s14, 1
      %p126 = por %p124, %p125
      %p127 = scmp.ne.s32.totalorder %s116, %s117
      %p128 = scmp.eq.s32.totalorder %s14, 0
      %p129 = por %p127, %p128
      %p130 = scmp.ne.s32.totalorder %s116, %s117
      %p131 = scmp.eq.s32.totalorder %s15, 1
      %p132 = por %p130, %p131
      %p134 = scmp.ne.s32.totalorder %s117, %s133
      %p135 = scmp.eq.s32.totalorder %s15, 0
      %p136 = por %p134, %p135
      %p137 = scmp.le.s32.totalorder 1, %s9
      %p138 = scmp.lt.s32.totalorder %s9, 3
      %p139 = pnand %p137, %p138
      %p140 = pneg %p139
      // Predicated region
      $region9: #{climax_forward.14} parent=5 // pred_check
        _
      $region10: #{climax_forward.14} parent=5 // pred_check_branch
        %142 = sbr.rel (%p139) target = $region12
      $region11: #{climax_forward.14} parent=5 // pred_region
        %s143 = ssub.s32 %s9, 1
      $region12: #{climax_forward.14} parent=5 // pred_fallthru
        _
      %p144 = scmp.lt.s32.totalorder %s9, 2
      // Predicated region
      $region13: #{climax_forward.14} parent=5 // pred_check
        %p145 = pneg %p144
      $region14: #{climax_forward.14} parent=5 // pred_check_branch
        %147 = sbr.rel (%p145) target = $region16
      $region15: #{climax_forward.14} parent=5 // pred_region
        // Predicated region
        $region17: #{climax_forward.14} parent=15 // pred_check
          %p148 = pneg %p43
        $region18: #{climax_forward.14} parent=15 // pred_check_branch
          %150 = sbr.rel (%p148) target = $region20
        $region19: #{climax_forward.14} parent=15 // pred_region
          %s151 = sand.u32 %s33, 1
          %s152 = sand.u32 %s33, 1
          %s153 = smul.addr %s152, 64
          %s154 = scalar_lea.vmem [#allocation2], %s153
          %s155 = smul.u32 16, %s17
          %s156 = smul.addr %s155, 3
          %s157 = smul.addr %s16, 48
          %s158 = sadd.s32 %s156, %s157
          %s159 = smul.addr %s158, 4
          %s160 = scalar_lea.vmem %s0, %s159
          // Predicated region
          $region21: #{climax_forward.14} parent=19 // pred_check
            _
          $region22: #{climax_forward.14} parent=19 // pred_check_branch
            %162 = sbr.rel (0) target = $region24
          $region23: #{climax_forward.14} parent=19 // pred_region
            // Predicated region
            $region25: #{climax_forward.14} parent=23 // pred_check
              _
            $region26: #{climax_forward.14} parent=23 // pred_check_branch
              %164 = sbr.rel target = $region28
            $region27: #{climax_forward.14} parent=23 // pred_region
              // Predicated region
              $region40: #{climax_forward.14} parent=27 // pred_check
                _
              $region41: #{climax_forward.14} parent=27 // pred_check_branch
                %210 = sbr.rel (0) target = $region43
              $region42: #{climax_forward.14} parent=27 // pred_region
                loop: start=0, step=1, limit=1
                $region44: #{climax_forward.14} parent=42 // loop_pre_header
                  _
                $region45: #{climax_forward.14} parent=42 // loop_header
                  %s212 = sphi 0, %s216
                  %p213 = scmp.ge.s32.totalorder %s212, 1
                  %s217 = sphi %s160, %s160
                  %s218 = sphi %s154, %s154
                $region46: #{climax_forward.14} parent=42 // loop_header_branch
                  %215 = sbr.rel (%p213) target = $region50
                $region47: #{climax_forward.14} parent=42 // loop_body
                  _
                $region48: #{climax_forward.14} parent=42 // loop_footer
                  %s216 = sadd.s32 1, %s212
                $region49: #{climax_forward.14} parent=42 // loop_footer_branch
                  %211 = sbr.rel target = $region45
                $region50: #{climax_forward.14} parent=42 // loop_exit
                  _
                %s220 = ssub.s32 16, 1
                loop: start=0, step=1, limit=1
                $region51: #{climax_forward.14} parent=42 // loop_pre_header
                  _
                $region52: #{climax_forward.14} parent=42 // loop_header
                  %s222 = sphi 0, %s226
                  %p223 = scmp.ge.s32.totalorder %s222, 1
                  %s227 = sphi %s160, %s160
                  %s228 = sphi %s154, %s154
                $region53: #{climax_forward.14} parent=42 // loop_header_branch
                  %225 = sbr.rel (%p223) target = $region57
                $region54: #{climax_forward.14} parent=42 // loop_body
                  %v229 = vld [vmem:[%s227] sm:%s220]
                  %230 = vst [vmem:[%s228] sm:%s220] %v229
                  %v231 = vld [vmem:[%s227 + $0xc] sm:%s220]
                  %232 = vst [vmem:[%s228 + $0x4] sm:%s220] %v231
                  %v233 = vld [vmem:[%s227 + $0x18] sm:%s220]
                  %234 = vst [vmem:[%s228 + $0x8] sm:%s220] %v233
                  %v235 = vld [vmem:[%s227 + $0x24] sm:%s220]
                  %236 = vst [vmem:[%s228 + $0xc] sm:%s220] %v235
                  %v237 = vld [vmem:[%s227 + $0x30] sm:%s220]
                  %238 = vst [vmem:[%s228 + $0x10] sm:%s220] %v237
                  %v239 = vld [vmem:[%s227 + $0x3c] sm:%s220]
                  %240 = vst [vmem:[%s228 + $0x14] sm:%s220] %v239
                  %v241 = vld [vmem:[%s227 + $0x48] sm:%s220]
                  %242 = vst [vmem:[%s228 + $0x18] sm:%s220] %v241
                  %v243 = vld [vmem:[%s227 + $0x54] sm:%s220]
                  %244 = vst [vmem:[%s228 + $0x1c] sm:%s220] %v243
                  %v245 = vld [vmem:[%s227 + $0x60] sm:%s220]
                  %246 = vst [vmem:[%s228 + $0x20] sm:%s220] %v245
                  %v247 = vld [vmem:[%s227 + $0x6c] sm:%s220]
                  %248 = vst [vmem:[%s228 + $0x24] sm:%s220] %v247
                  %v249 = vld [vmem:[%s227 + $0x78] sm:%s220]
                  %250 = vst [vmem:[%s228 + $0x28] sm:%s220] %v249
                  %v251 = vld [vmem:[%s227 + $0x84] sm:%s220]
                  %252 = vst [vmem:[%s228 + $0x2c] sm:%s220] %v251
                  %v253 = vld [vmem:[%s227 + $0x90] sm:%s220]
                  %254 = vst [vmem:[%s228 + $0x30] sm:%s220] %v253
                  %v255 = vld [vmem:[%s227 + $0x9c] sm:%s220]
                  %256 = vst [vmem:[%s228 + $0x34] sm:%s220] %v255
                  %v257 = vld [vmem:[%s227 + $0xa8] sm:%s220]
                  %258 = vst [vmem:[%s228 + $0x38] sm:%s220] %v257
                  %v259 = vld [vmem:[%s227 + $0xb4] sm:%s220]
                  %260 = vst [vmem:[%s228 + $0x3c] sm:%s220] %v259
                $region55: #{climax_forward.14} parent=42 // loop_footer
                  %s226 = sadd.s32 1, %s222
                $region56: #{climax_forward.14} parent=42 // loop_footer_branch
                  %221 = sbr.rel target = $region52
                $region57: #{climax_forward.14} parent=42 // loop_exit
                  _
              $region43: #{climax_forward.14} parent=27 // pred_fallthru
                _
            $region28: #{climax_forward.14} parent=23 // pred_fallthru
              _
            // Predicated region
            $region29: #{climax_forward.14} parent=23 // pred_check
              _
            $region30: #{climax_forward.14} parent=23 // pred_check_branch
              %166 = sbr.rel (0) target = $region32
            $region31: #{climax_forward.14} parent=23 // pred_region
              %s168 = ssub.s32 16, 1
              loop: start=0, step=1, limit=1
              $region33: #{climax_forward.14} parent=31 // loop_pre_header
                _
              $region34: #{climax_forward.14} parent=31 // loop_header
                %s170 = sphi 0, %s174
                %p171 = scmp.ge.s32.totalorder %s170, 1
                %s175 = sphi %s160, %s160
                %s176 = sphi %s154, %s154
              $region35: #{climax_forward.14} parent=31 // loop_header_branch
                %173 = sbr.rel (%p171) target = $region39
              $region36: #{climax_forward.14} parent=31 // loop_body
                %v177 = vld [vmem:[%s175] sm:%s168]
                %178 = vst [vmem:[%s176] sm:%s168] %v177
                %v179 = vld [vmem:[%s175 + $0xc] sm:%s168]
                %180 = vst [vmem:[%s176 + $0x4] sm:%s168] %v179
                %v181 = vld [vmem:[%s175 + $0x18] sm:%s168]
                %182 = vst [vmem:[%s176 + $0x8] sm:%s168] %v181
                %v183 = vld [vmem:[%s175 + $0x24] sm:%s168]
                %184 = vst [vmem:[%s176 + $0xc] sm:%s168] %v183
                %v185 = vld [vmem:[%s175 + $0x30] sm:%s168]
                %186 = vst [vmem:[%s176 + $0x10] sm:%s168] %v185
                %v187 = vld [vmem:[%s175 + $0x3c] sm:%s168]
                %188 = vst [vmem:[%s176 + $0x14] sm:%s168] %v187
                %v189 = vld [vmem:[%s175 + $0x48] sm:%s168]
                %190 = vst [vmem:[%s176 + $0x18] sm:%s168] %v189
                %v191 = vld [vmem:[%s175 + $0x54] sm:%s168]
                %192 = vst [vmem:[%s176 + $0x1c] sm:%s168] %v191
                %v193 = vld [vmem:[%s175 + $0x60] sm:%s168]
                %194 = vst [vmem:[%s176 + $0x20] sm:%s168] %v193
                %v195 = vld [vmem:[%s175 + $0x6c] sm:%s168]
                %196 = vst [vmem:[%s176 + $0x24] sm:%s168] %v195
                %v197 = vld [vmem:[%s175 + $0x78] sm:%s168]
                %198 = vst [vmem:[%s176 + $0x28] sm:%s168] %v197
                %v199 = vld [vmem:[%s175 + $0x84] sm:%s168]
                %200 = vst [vmem:[%s176 + $0x2c] sm:%s168] %v199
                %v201 = vld [vmem:[%s175 + $0x90] sm:%s168]
                %202 = vst [vmem:[%s176 + $0x30] sm:%s168] %v201
                %v203 = vld [vmem:[%s175 + $0x9c] sm:%s168]
                %204 = vst [vmem:[%s176 + $0x34] sm:%s168] %v203
                %v205 = vld [vmem:[%s175 + $0xa8] sm:%s168]
                %206 = vst [vmem:[%s176 + $0x38] sm:%s168] %v205
                %v207 = vld [vmem:[%s175 + $0xb4] sm:%s168]
                %208 = vst [vmem:[%s176 + $0x3c] sm:%s168] %v207
              $region37: #{climax_forward.14} parent=31 // loop_footer
                %s174 = sadd.s32 1, %s170
              $region38: #{climax_forward.14} parent=31 // loop_footer_branch
                %169 = sbr.rel target = $region34
              $region39: #{climax_forward.14} parent=31 // loop_exit
                _
            $region32: #{climax_forward.14} parent=23 // pred_fallthru
              _
          $region24: #{climax_forward.14} parent=19 // pred_fallthru
            _
          %261 = vnop
        $region20: #{climax_forward.14} parent=15 // pred_fallthru
          _
        // Predicated region
        $region58: #{climax_forward.14} parent=15 // pred_check
          %p262 = pneg %p69
        $region59: #{climax_forward.14} parent=15 // pred_check_branch
          %264 = sbr.rel (%p262) target = $region61
        $region60: #{climax_forward.14} parent=15 // pred_region
          %s265 = sand.u32 %s59, 1
          %s266 = sand.u32 %s59, 1
          %s267 = smul.addr %s266, 64
          %s268 = scalar_lea.vmem [#allocation3], %s267
          %s269 = smul.addr %s16, 48
          %s270 = sadd.s32 1, %s269
          %s271 = smul.addr %s270, 4
          %s272 = scalar_lea.vmem %s1, %s271
          // Predicated region
          $region62: #{climax_forward.14} parent=60 // pred_check
            _
          $region63: #{climax_forward.14} parent=60 // pred_check_branch
            %274 = sbr.rel (0) target = $region65
          $region64: #{climax_forward.14} parent=60 // pred_region
            // Predicated region
            $region66: #{climax_forward.14} parent=64 // pred_check
              _
            $region67: #{climax_forward.14} parent=64 // pred_check_branch
              %276 = sbr.rel target = $region69
            $region68: #{climax_forward.14} parent=64 // pred_region
              // Predicated region
              $region81: #{climax_forward.14} parent=68 // pred_check
                _
              $region82: #{climax_forward.14} parent=68 // pred_check_branch
                %322 = sbr.rel (0) target = $region84
              $region83: #{climax_forward.14} parent=68 // pred_region
                loop: start=0, step=1, limit=1
                $region85: #{climax_forward.14} parent=83 // loop_pre_header
                  _
                $region86: #{climax_forward.14} parent=83 // loop_header
                  %s324 = sphi 0, %s328
                  %p325 = scmp.ge.s32.totalorder %s324, 1
                  %s329 = sphi %s272, %s272
                  %s330 = sphi %s268, %s268
                $region87: #{climax_forward.14} parent=83 // loop_header_branch
                  %327 = sbr.rel (%p325) target = $region91
                $region88: #{climax_forward.14} parent=83 // loop_body
                  _
                $region89: #{climax_forward.14} parent=83 // loop_footer
                  %s328 = sadd.s32 1, %s324
                $region90: #{climax_forward.14} parent=83 // loop_footer_branch
                  %323 = sbr.rel target = $region86
                $region91: #{climax_forward.14} parent=83 // loop_exit
                  _
                %s332 = ssub.s32 16, 1
                loop: start=0, step=1, limit=1
                $region92: #{climax_forward.14} parent=83 // loop_pre_header
                  _
                $region93: #{climax_forward.14} parent=83 // loop_header
                  %s334 = sphi 0, %s338
                  %p335 = scmp.ge.s32.totalorder %s334, 1
                  %s339 = sphi %s272, %s272
                  %s340 = sphi %s268, %s268
                $region94: #{climax_forward.14} parent=83 // loop_header_branch
                  %337 = sbr.rel (%p335) target = $region98
                $region95: #{climax_forward.14} parent=83 // loop_body
                  %v341 = vld [vmem:[%s339] sm:%s332]
                  %342 = vst [vmem:[%s340] sm:%s332] %v341
                  %v343 = vld [vmem:[%s339 + $0xc] sm:%s332]
                  %344 = vst [vmem:[%s340 + $0x4] sm:%s332] %v343
                  %v345 = vld [vmem:[%s339 + $0x18] sm:%s332]
                  %346 = vst [vmem:[%s340 + $0x8] sm:%s332] %v345
                  %v347 = vld [vmem:[%s339 + $0x24] sm:%s332]
                  %348 = vst [vmem:[%s340 + $0xc] sm:%s332] %v347
                  %v349 = vld [vmem:[%s339 + $0x30] sm:%s332]
                  %350 = vst [vmem:[%s340 + $0x10] sm:%s332] %v349
                  %v351 = vld [vmem:[%s339 + $0x3c] sm:%s332]
                  %352 = vst [vmem:[%s340 + $0x14] sm:%s332] %v351
                  %v353 = vld [vmem:[%s339 + $0x48] sm:%s332]
                  %354 = vst [vmem:[%s340 + $0x18] sm:%s332] %v353
                  %v355 = vld [vmem:[%s339 + $0x54] sm:%s332]
                  %356 = vst [vmem:[%s340 + $0x1c] sm:%s332] %v355
                  %v357 = vld [vmem:[%s339 + $0x60] sm:%s332]
                  %358 = vst [vmem:[%s340 + $0x20] sm:%s332] %v357
                  %v359 = vld [vmem:[%s339 + $0x6c] sm:%s332]
                  %360 = vst [vmem:[%s340 + $0x24] sm:%s332] %v359
                  %v361 = vld [vmem:[%s339 + $0x78] sm:%s332]
                  %362 = vst [vmem:[%s340 + $0x28] sm:%s332] %v361
                  %v363 = vld [vmem:[%s339 + $0x84] sm:%s332]
                  %364 = vst [vmem:[%s340 + $0x2c] sm:%s332] %v363
                  %v365 = vld [vmem:[%s339 + $0x90] sm:%s332]
                  %366 = vst [vmem:[%s340 + $0x30] sm:%s332] %v365
                  %v367 = vld [vmem:[%s339 + $0x9c] sm:%s332]
                  %368 = vst [vmem:[%s340 + $0x34] sm:%s332] %v367
                  %v369 = vld [vmem:[%s339 + $0xa8] sm:%s332]
                  %370 = vst [vmem:[%s340 + $0x38] sm:%s332] %v369
                  %v371 = vld [vmem:[%s339 + $0xb4] sm:%s332]
                  %372 = vst [vmem:[%s340 + $0x3c] sm:%s332] %v371
                $region96: #{climax_forward.14} parent=83 // loop_footer
                  %s338 = sadd.s32 1, %s334
                $region97: #{climax_forward.14} parent=83 // loop_footer_branch
                  %333 = sbr.rel target = $region93
                $region98: #{climax_forward.14} parent=83 // loop_exit
                  _
              $region84: #{climax_forward.14} parent=68 // pred_fallthru
                _
            $region69: #{climax_forward.14} parent=64 // pred_fallthru
              _
            // Predicated region
            $region70: #{climax_forward.14} parent=64 // pred_check
              _
            $region71: #{climax_forward.14} parent=64 // pred_check_branch
              %278 = sbr.rel (0) target = $region73
            $region72: #{climax_forward.14} parent=64 // pred_region
              %s280 = ssub.s32 16, 1
              loop: start=0, step=1, limit=1
              $region74: #{climax_forward.14} parent=72 // loop_pre_header
                _
              $region75: #{climax_forward.14} parent=72 // loop_header
                %s282 = sphi 0, %s286
                %p283 = scmp.ge.s32.totalorder %s282, 1
                %s287 = sphi %s272, %s272
                %s288 = sphi %s268, %s268
              $region76: #{climax_forward.14} parent=72 // loop_header_branch
                %285 = sbr.rel (%p283) target = $region80
              $region77: #{climax_forward.14} parent=72 // loop_body
                %v289 = vld [vmem:[%s287] sm:%s280]
                %290 = vst [vmem:[%s288] sm:%s280] %v289
                %v291 = vld [vmem:[%s287 + $0xc] sm:%s280]
                %292 = vst [vmem:[%s288 + $0x4] sm:%s280] %v291
                %v293 = vld [vmem:[%s287 + $0x18] sm:%s280]
                %294 = vst [vmem:[%s288 + $0x8] sm:%s280] %v293
                %v295 = vld [vmem:[%s287 + $0x24] sm:%s280]
                %296 = vst [vmem:[%s288 + $0xc] sm:%s280] %v295
                %v297 = vld [vmem:[%s287 + $0x30] sm:%s280]
                %298 = vst [vmem:[%s288 + $0x10] sm:%s280] %v297
                %v299 = vld [vmem:[%s287 + $0x3c] sm:%s280]
                %300 = vst [vmem:[%s288 + $0x14] sm:%s280] %v299
                %v301 = vld [vmem:[%s287 + $0x48] sm:%s280]
                %302 = vst [vmem:[%s288 + $0x18] sm:%s280] %v301
                %v303 = vld [vmem:[%s287 + $0x54] sm:%s280]
                %304 = vst [vmem:[%s288 + $0x1c] sm:%s280] %v303
                %v305 = vld [vmem:[%s287 + $0x60] sm:%s280]
                %306 = vst [vmem:[%s288 + $0x20] sm:%s280] %v305
                %v307 = vld [vmem:[%s287 + $0x6c] sm:%s280]
                %308 = vst [vmem:[%s288 + $0x24] sm:%s280] %v307
                %v309 = vld [vmem:[%s287 + $0x78] sm:%s280]
                %310 = vst [vmem:[%s288 + $0x28] sm:%s280] %v309
                %v311 = vld [vmem:[%s287 + $0x84] sm:%s280]
                %312 = vst [vmem:[%s288 + $0x2c] sm:%s280] %v311
                %v313 = vld [vmem:[%s287 + $0x90] sm:%s280]
                %314 = vst [vmem:[%s288 + $0x30] sm:%s280] %v313
                %v315 = vld [vmem:[%s287 + $0x9c] sm:%s280]
                %316 = vst [vmem:[%s288 + $0x34] sm:%s280] %v315
                %v317 = vld [vmem:[%s287 + $0xa8] sm:%s280]
                %318 = vst [vmem:[%s288 + $0x38] sm:%s280] %v317
                %v319 = vld [vmem:[%s287 + $0xb4] sm:%s280]
                %320 = vst [vmem:[%s288 + $0x3c] sm:%s280] %v319
              $region78: #{climax_forward.14} parent=72 // loop_footer
                %s286 = sadd.s32 1, %s282
              $region79: #{climax_forward.14} parent=72 // loop_footer_branch
                %281 = sbr.rel target = $region75
              $region80: #{climax_forward.14} parent=72 // loop_exit
                _
            $region73: #{climax_forward.14} parent=64 // pred_fallthru
              _
          $region65: #{climax_forward.14} parent=60 // pred_fallthru
            _
          %373 = vnop
        $region61: #{climax_forward.14} parent=15 // pred_fallthru
          _
        // Predicated region
        $region99: #{climax_forward.14} parent=15 // pred_check
          %p374 = pneg %p95
        $region100: #{climax_forward.14} parent=15 // pred_check_branch
          %376 = sbr.rel (%p374) target = $region102
        $region101: #{climax_forward.14} parent=15 // pred_region
          %s377 = sand.u32 %s85, 1
          %s378 = sand.u32 %s85, 1
          %s379 = smul.addr %s378, 64
          %s380 = scalar_lea.vmem [#allocation4], %s379
          %s381 = smul.addr %s16, 48
          %s382 = sadd.s32 2, %s381
          %s383 = smul.addr %s382, 4
          %s384 = scalar_lea.vmem %s2, %s383
          // Predicated region
          $region103: #{climax_forward.14} parent=101 // pred_check
            _
          $region104: #{climax_forward.14} parent=101 // pred_check_branch
            %386 = sbr.rel (0) target = $region106
          $region105: #{climax_forward.14} parent=101 // pred_region
            // Predicated region
            $region107: #{climax_forward.14} parent=105 // pred_check
              _
            $region108: #{climax_forward.14} parent=105 // pred_check_branch
              %388 = sbr.rel target = $region110
            $region109: #{climax_forward.14} parent=105 // pred_region
              // Predicated region
              $region122: #{climax_forward.14} parent=109 // pred_check
                _
              $region123: #{climax_forward.14} parent=109 // pred_check_branch
                %434 = sbr.rel (0) target = $region125
              $region124: #{climax_forward.14} parent=109 // pred_region
                loop: start=0, step=1, limit=1
                $region126: #{climax_forward.14} parent=124 // loop_pre_header
                  _
                $region127: #{climax_forward.14} parent=124 // loop_header
                  %s436 = sphi 0, %s440
                  %p437 = scmp.ge.s32.totalorder %s436, 1
                  %s441 = sphi %s384, %s384
                  %s442 = sphi %s380, %s380
                $region128: #{climax_forward.14} parent=124 // loop_header_branch
                  %439 = sbr.rel (%p437) target = $region132
                $region129: #{climax_forward.14} parent=124 // loop_body
                  _
                $region130: #{climax_forward.14} parent=124 // loop_footer
                  %s440 = sadd.s32 1, %s436
                $region131: #{climax_forward.14} parent=124 // loop_footer_branch
                  %435 = sbr.rel target = $region127
                $region132: #{climax_forward.14} parent=124 // loop_exit
                  _
                %s444 = ssub.s32 16, 1
                loop: start=0, step=1, limit=1
                $region133: #{climax_forward.14} parent=124 // loop_pre_header
                  _
                $region134: #{climax_forward.14} parent=124 // loop_header
                  %s446 = sphi 0, %s450
                  %p447 = scmp.ge.s32.totalorder %s446, 1
                  %s451 = sphi %s384, %s384
                  %s452 = sphi %s380, %s380
                $region135: #{climax_forward.14} parent=124 // loop_header_branch
                  %449 = sbr.rel (%p447) target = $region139
                $region136: #{climax_forward.14} parent=124 // loop_body
                  %v453 = vld [vmem:[%s451] sm:%s444]
                  %454 = vst [vmem:[%s452] sm:%s444] %v453
                  %v455 = vld [vmem:[%s451 + $0xc] sm:%s444]
                  %456 = vst [vmem:[%s452 + $0x4] sm:%s444] %v455
                  %v457 = vld [vmem:[%s451 + $0x18] sm:%s444]
                  %458 = vst [vmem:[%s452 + $0x8] sm:%s444] %v457
                  %v459 = vld [vmem:[%s451 + $0x24] sm:%s444]
                  %460 = vst [vmem:[%s452 + $0xc] sm:%s444] %v459
                  %v461 = vld [vmem:[%s451 + $0x30] sm:%s444]
                  %462 = vst [vmem:[%s452 + $0x10] sm:%s444] %v461
                  %v463 = vld [vmem:[%s451 + $0x3c] sm:%s444]
                  %464 = vst [vmem:[%s452 + $0x14] sm:%s444] %v463
                  %v465 = vld [vmem:[%s451 + $0x48] sm:%s444]
                  %466 = vst [vmem:[%s452 + $0x18] sm:%s444] %v465
                  %v467 = vld [vmem:[%s451 + $0x54] sm:%s444]
                  %468 = vst [vmem:[%s452 + $0x1c] sm:%s444] %v467
                  %v469 = vld [vmem:[%s451 + $0x60] sm:%s444]
                  %470 = vst [vmem:[%s452 + $0x20] sm:%s444] %v469
                  %v471 = vld [vmem:[%s451 + $0x6c] sm:%s444]
                  %472 = vst [vmem:[%s452 + $0x24] sm:%s444] %v471
                  %v473 = vld [vmem:[%s451 + $0x78] sm:%s444]
                  %474 = vst [vmem:[%s452 + $0x28] sm:%s444] %v473
                  %v475 = vld [vmem:[%s451 + $0x84] sm:%s444]
                  %476 = vst [vmem:[%s452 + $0x2c] sm:%s444] %v475
                  %v477 = vld [vmem:[%s451 + $0x90] sm:%s444]
                  %478 = vst [vmem:[%s452 + $0x30] sm:%s444] %v477
                  %v479 = vld [vmem:[%s451 + $0x9c] sm:%s444]
                  %480 = vst [vmem:[%s452 + $0x34] sm:%s444] %v479
                  %v481 = vld [vmem:[%s451 + $0xa8] sm:%s444]
                  %482 = vst [vmem:[%s452 + $0x38] sm:%s444] %v481
                  %v483 = vld [vmem:[%s451 + $0xb4] sm:%s444]
                  %484 = vst [vmem:[%s452 + $0x3c] sm:%s444] %v483
                $region137: #{climax_forward.14} parent=124 // loop_footer
                  %s450 = sadd.s32 1, %s446
                $region138: #{climax_forward.14} parent=124 // loop_footer_branch
                  %445 = sbr.rel target = $region134
                $region139: #{climax_forward.14} parent=124 // loop_exit
                  _
              $region125: #{climax_forward.14} parent=109 // pred_fallthru
                _
            $region110: #{climax_forward.14} parent=105 // pred_fallthru
              _
            // Predicated region
            $region111: #{climax_forward.14} parent=105 // pred_check
              _
            $region112: #{climax_forward.14} parent=105 // pred_check_branch
              %390 = sbr.rel (0) target = $region114
            $region113: #{climax_forward.14} parent=105 // pred_region
              %s392 = ssub.s32 16, 1
              loop: start=0, step=1, limit=1
              $region115: #{climax_forward.14} parent=113 // loop_pre_header
                _
              $region116: #{climax_forward.14} parent=113 // loop_header
                %s394 = sphi 0, %s398
                %p395 = scmp.ge.s32.totalorder %s394, 1
                %s399 = sphi %s384, %s384
                %s400 = sphi %s380, %s380
              $region117: #{climax_forward.14} parent=113 // loop_header_branch
                %397 = sbr.rel (%p395) target = $region121
              $region118: #{climax_forward.14} parent=113 // loop_body
                %v401 = vld [vmem:[%s399] sm:%s392]
                %402 = vst [vmem:[%s400] sm:%s392] %v401
                %v403 = vld [vmem:[%s399 + $0xc] sm:%s392]
                %404 = vst [vmem:[%s400 + $0x4] sm:%s392] %v403
                %v405 = vld [vmem:[%s399 + $0x18] sm:%s392]
                %406 = vst [vmem:[%s400 + $0x8] sm:%s392] %v405
                %v407 = vld [vmem:[%s399 + $0x24] sm:%s392]
                %408 = vst [vmem:[%s400 + $0xc] sm:%s392] %v407
                %v409 = vld [vmem:[%s399 + $0x30] sm:%s392]
                %410 = vst [vmem:[%s400 + $0x10] sm:%s392] %v409
                %v411 = vld [vmem:[%s399 + $0x3c] sm:%s392]
                %412 = vst [vmem:[%s400 + $0x14] sm:%s392] %v411
                %v413 = vld [vmem:[%s399 + $0x48] sm:%s392]
                %414 = vst [vmem:[%s400 + $0x18] sm:%s392] %v413
                %v415 = vld [vmem:[%s399 + $0x54] sm:%s392]
                %416 = vst [vmem:[%s400 + $0x1c] sm:%s392] %v415
                %v417 = vld [vmem:[%s399 + $0x60] sm:%s392]
                %418 = vst [vmem:[%s400 + $0x20] sm:%s392] %v417
                %v419 = vld [vmem:[%s399 + $0x6c] sm:%s392]
                %420 = vst [vmem:[%s400 + $0x24] sm:%s392] %v419
                %v421 = vld [vmem:[%s399 + $0x78] sm:%s392]
                %422 = vst [vmem:[%s400 + $0x28] sm:%s392] %v421
                %v423 = vld [vmem:[%s399 + $0x84] sm:%s392]
                %424 = vst [vmem:[%s400 + $0x2c] sm:%s392] %v423
                %v425 = vld [vmem:[%s399 + $0x90] sm:%s392]
                %426 = vst [vmem:[%s400 + $0x30] sm:%s392] %v425
                %v427 = vld [vmem:[%s399 + $0x9c] sm:%s392]
                %428 = vst [vmem:[%s400 + $0x34] sm:%s392] %v427
                %v429 = vld [vmem:[%s399 + $0xa8] sm:%s392]
                %430 = vst [vmem:[%s400 + $0x38] sm:%s392] %v429
                %v431 = vld [vmem:[%s399 + $0xb4] sm:%s392]
                %432 = vst [vmem:[%s400 + $0x3c] sm:%s392] %v431
              $region119: #{climax_forward.14} parent=113 // loop_footer
                %s398 = sadd.s32 1, %s394
              $region120: #{climax_forward.14} parent=113 // loop_footer_branch
                %393 = sbr.rel target = $region116
              $region121: #{climax_forward.14} parent=113 // loop_exit
                _
            $region114: #{climax_forward.14} parent=105 // pred_fallthru
              _
          $region106: #{climax_forward.14} parent=101 // pred_fallthru
            _
          %485 = vnop
        $region102: #{climax_forward.14} parent=15 // pred_fallthru
          _
      $region16: #{climax_forward.14} parent=5 // pred_fallthru
        _
      %p486 = scmp.le.s32.totalorder 1, %s9
      %p487 = scmp.lt.s32.totalorder %s9, 3
      %p488 = pnand %p486, %p487
      %p489 = pneg %p488
      // Predicated region
      $region140: #{climax_forward.14} parent=5 // pred_check
        _
      $region141: #{climax_forward.14} parent=5 // pred_check_branch
        %491 = sbr.rel (%p488) target = $region143
      $region142: #{climax_forward.14} parent=5 // pred_region
        %s492 = ssub.s32 %s9, 1
        %s493 = sand.u32 %s36, 1
        %s494 = sand.u32 %s36, 1
        %s495 = smul.addr %s494, 64
        %s496 = scalar_lea.vmem [#allocation2], %s495
        // Predicated region
        $region144: #{climax_forward.14} parent=142 // pred_check
          %p497 = pneg %p49
        $region145: #{climax_forward.14} parent=142 // pred_check_branch
          %499 = sbr.rel (%p497) target = $region147
        $region146: #{climax_forward.14} parent=142 // pred_region
          _
        $region147: #{climax_forward.14} parent=142 // pred_fallthru
          _
        %s500 = sand.u32 %s62, 1
        %s501 = sand.u32 %s62, 1
        %s502 = smul.addr %s501, 64
        %s503 = scalar_lea.vmem [#allocation3], %s502
        // Predicated region
        $region148: #{climax_forward.14} parent=142 // pred_check
          %p504 = pneg %p75
        $region149: #{climax_forward.14} parent=142 // pred_check_branch
          %506 = sbr.rel (%p504) target = $region151
        $region150: #{climax_forward.14} parent=142 // pred_region
          _
        $region151: #{climax_forward.14} parent=142 // pred_fallthru
          _
        %s507 = sand.u32 %s88, 1
        %s508 = sand.u32 %s88, 1
        %s509 = smul.addr %s508, 64
        %s510 = scalar_lea.vmem [#allocation4], %s509
        // Predicated region
        $region152: #{climax_forward.14} parent=142 // pred_check
          %p511 = pneg %p101
        $region153: #{climax_forward.14} parent=142 // pred_check_branch
          %513 = sbr.rel (%p511) target = $region155
        $region154: #{climax_forward.14} parent=142 // pred_region
          _
        $region155: #{climax_forward.14} parent=142 // pred_fallthru
          _
        %s514 = sand.u32 %s36, 1
        %s515 = sand.u32 %s36, 1
        %s516 = smul.addr %s515, 64
        %s517 = scalar_lea.vmem [#allocation2], %s516
        %p518 = pneg %p49
        %p519 = pneg %p46
        %s520 = sand.u32 %s62, 1
        %s521 = sand.u32 %s62, 1
        %s522 = smul.addr %s521, 64
        %s523 = scalar_lea.vmem [#allocation3], %s522
        %p524 = pneg %p75
        %p525 = pneg %p72
        %s526 = sand.u32 %s88, 1
        %s527 = sand.u32 %s88, 1
        %s528 = smul.addr %s527, 64
        %s529 = scalar_lea.vmem [#allocation4], %s528
        %p530 = pneg %p101
        %p531 = pneg %p98
        %p532 = pneg %p129
        %p533 = pneg %p126
        %s534 = smul.u32 2, %s19
        %p535 = scmp.lt.s32.totalorder %s18, 1
        %s536 = scalar_select %p535, %s18, 1
        %p537 = scmp.lt.s32.totalorder %s534, 1
        %s538 = scalar_select %p537, %s534, 1
        %s539 = smul.addr %s536, 2
        %s540 = sadd.s32 %s538, %s539
        %s541 = smul.addr %s540, 8
        %s542 = scalar_lea.vmem %s3, %s541
        %s543 = smul.u32 16, %s19
        %s544 = smul.u32 2, %s19
        %p545 = scmp.lt.s32.totalorder %s18, 1
        %s546 = scalar_select %p545, %s18, 1
        %p547 = scmp.lt.s32.totalorder %s544, 1
        %s548 = scalar_select %p547, %s544, 1
        %s549 = smul.addr %s546, 2
        %s550 = sadd.s32 %s548, %s549
        %s551 = smul.addr %s550, 8
        %s552 = scalar_lea.vmem %s3, %s551
        %s553 = smul.u32 2, %s19
        %v555 = vld [vmem:[%s496] sm:$0x1]
        %v556 = vld [vmem:[%s496 + $0x4] sm:$0x1]
        %v557 = vld [vmem:[%s496 + $0x8] sm:$0x1]
        %v558 = vld [vmem:[%s496 + $0xc] sm:$0x1]
        %v559 = vld [vmem:[%s496 + $0x10] sm:$0x1]
        %v560 = vld [vmem:[%s496 + $0x14] sm:$0x1]
        %v561 = vld [vmem:[%s496 + $0x18] sm:$0x1]
        %v562 = vld [vmem:[%s496 + $0x1c] sm:$0x1]
        %v563 = vld [vmem:[%s496 + $0x20] sm:$0x1]
        %v564 = vld [vmem:[%s496 + $0x24] sm:$0x1]
        %v565 = vld [vmem:[%s496 + $0x28] sm:$0x1]
        %v566 = vld [vmem:[%s496 + $0x2c] sm:$0x1]
        %v567 = vld [vmem:[%s496 + $0x30] sm:$0x1]
        %v568 = vld [vmem:[%s496 + $0x34] sm:$0x1]
        %v569 = vld [vmem:[%s496 + $0x38] sm:$0x1]
        %v570 = vld [vmem:[%s496 + $0x3c] sm:$0x1]
        %v571 = vmul.f32 %v555, 0.35355338
        %v572 = vmul.f32 %v556, 0.35355338
        %v573 = vmul.f32 %v557, 0.35355338
        %v574 = vmul.f32 %v558, 0.35355338
        %v575 = vmul.f32 %v559, 0.35355338
        %v576 = vmul.f32 %v560, 0.35355338
        %v577 = vmul.f32 %v561, 0.35355338
        %v578 = vmul.f32 %v562, 0.35355338
        %v579 = vmul.f32 %v563, 0.35355338
        %v580 = vmul.f32 %v564, 0.35355338
        %v581 = vmul.f32 %v565, 0.35355338
        %v582 = vmul.f32 %v566, 0.35355338
        %v583 = vmul.f32 %v567, 0.35355338
        %v584 = vmul.f32 %v568, 0.35355338
        %v585 = vmul.f32 %v569, 0.35355338
        %v586 = vmul.f32 %v570, 0.35355338
        %v587 = vpack.c.bf16 %v571, %v571
        %v588 = vpack.c.bf16 %v572, %v572
        %v589 = vpack.c.bf16 %v573, %v573
        %v590 = vpack.c.bf16 %v574, %v574
        %v591 = vpack.c.bf16 %v575, %v575
        %v592 = vpack.c.bf16 %v576, %v576
        %v593 = vpack.c.bf16 %v577, %v577
        %v594 = vpack.c.bf16 %v578, %v578
        %v595 = vpack.c.bf16 %v579, %v579
        %v596 = vpack.c.bf16 %v580, %v580
        %v597 = vpack.c.bf16 %v581, %v581
        %v598 = vpack.c.bf16 %v582, %v582
        %v599 = vpack.c.bf16 %v583, %v583
        %v600 = vpack.c.bf16 %v584, %v584
        %v601 = vpack.c.bf16 %v585, %v585
        %v602 = vpack.c.bf16 %v586, %v586
        %v603 = vld [vmem:[%s503] sm:$0x1]
        %v604 = vld [vmem:[%s503 + $0x4] sm:$0x1]
        %v605 = vld [vmem:[%s503 + $0x8] sm:$0x1]
        %v606 = vld [vmem:[%s503 + $0xc] sm:$0x1]
        %v607 = vld [vmem:[%s503 + $0x10] sm:$0x1]
        %v608 = vld [vmem:[%s503 + $0x14] sm:$0x1]
        %v609 = vld [vmem:[%s503 + $0x18] sm:$0x1]
        %v610 = vld [vmem:[%s503 + $0x1c] sm:$0x1]
        %v611 = vld [vmem:[%s503 + $0x20] sm:$0x1]
        %v612 = vld [vmem:[%s503 + $0x24] sm:$0x1]
        %v613 = vld [vmem:[%s503 + $0x28] sm:$0x1]
        %v614 = vld [vmem:[%s503 + $0x2c] sm:$0x1]
        %v615 = vld [vmem:[%s503 + $0x30] sm:$0x1]
        %v616 = vld [vmem:[%s503 + $0x34] sm:$0x1]
        %v617 = vld [vmem:[%s503 + $0x38] sm:$0x1]
        %v618 = vld [vmem:[%s503 + $0x3c] sm:$0x1]
        %v619 = vpack.c.bf16 %v603, %v603
        %v620 = vpack.c.bf16 %v604, %v604
        %v621 = vpack.c.bf16 %v605, %v605
        %v622 = vpack.c.bf16 %v606, %v606
        %v623 = vpack.c.bf16 %v607, %v607
        %v624 = vpack.c.bf16 %v608, %v608
        %v625 = vpack.c.bf16 %v609, %v609
        %v626 = vpack.c.bf16 %v610, %v610
        %v627 = vpack.c.bf16 %v611, %v611
        %v628 = vpack.c.bf16 %v612, %v612
        %v629 = vpack.c.bf16 %v613, %v613
        %v630 = vpack.c.bf16 %v614, %v614
        %v631 = vpack.c.bf16 %v615, %v615
        %v632 = vpack.c.bf16 %v616, %v616
        %v633 = vpack.c.bf16 %v617, %v617
        %v634 = vpack.c.bf16 %v618, %v618
        %v635 = vld [vmem:[%s510] sm:$0x1]
        %v636 = vld [vmem:[%s510 + $0x4] sm:$0x1]
        %v637 = vld [vmem:[%s510 + $0x8] sm:$0x1]
        %v638 = vld [vmem:[%s510 + $0xc] sm:$0x1]
        %v639 = vld [vmem:[%s510 + $0x10] sm:$0x1]
        %v640 = vld [vmem:[%s510 + $0x14] sm:$0x1]
        %v641 = vld [vmem:[%s510 + $0x18] sm:$0x1]
        %v642 = vld [vmem:[%s510 + $0x1c] sm:$0x1]
        %v643 = vld [vmem:[%s510 + $0x20] sm:$0x1]
        %v644 = vld [vmem:[%s510 + $0x24] sm:$0x1]
        %v645 = vld [vmem:[%s510 + $0x28] sm:$0x1]
        %v646 = vld [vmem:[%s510 + $0x2c] sm:$0x1]
        %v647 = vld [vmem:[%s510 + $0x30] sm:$0x1]
        %v648 = vld [vmem:[%s510 + $0x34] sm:$0x1]
        %v649 = vld [vmem:[%s510 + $0x38] sm:$0x1]
        %v650 = vld [vmem:[%s510 + $0x3c] sm:$0x1]
        %v651 = vpack.c.bf16 %v635, %v635
        %v652 = vpack.c.bf16 %v636, %v636
        %v653 = vpack.c.bf16 %v637, %v637
        %v654 = vpack.c.bf16 %v638, %v638
        %v655 = vpack.c.bf16 %v639, %v639
        %v656 = vpack.c.bf16 %v640, %v640
        %v657 = vpack.c.bf16 %v641, %v641
        %v658 = vpack.c.bf16 %v642, %v642
        %v659 = vpack.c.bf16 %v643, %v643
        %v660 = vpack.c.bf16 %v644, %v644
        %v661 = vpack.c.bf16 %v645, %v645
        %v662 = vpack.c.bf16 %v646, %v646
        %v663 = vpack.c.bf16 %v647, %v647
        %v664 = vpack.c.bf16 %v648, %v648
        %v665 = vpack.c.bf16 %v649, %v649
        %v666 = vpack.c.bf16 %v650, %v650
        %v683 = vunpack.c.l.b16 %v587
        %v684 = vunpack.c.l.b16 %v588
        %v685 = vunpack.c.l.b16 %v589
        %v686 = vunpack.c.l.b16 %v590
        %v687 = vunpack.c.l.b16 %v591
        %v688 = vunpack.c.l.b16 %v592
        %v689 = vunpack.c.l.b16 %v593
        %v690 = vunpack.c.l.b16 %v594
        %v691 = vunpack.c.l.b16 %v595
        %v692 = vunpack.c.l.b16 %v596
        %v693 = vunpack.c.l.b16 %v597
        %v694 = vunpack.c.l.b16 %v598
        %v695 = vunpack.c.l.b16 %v599
        %v696 = vunpack.c.l.b16 %v600
        %v697 = vunpack.c.l.b16 %v601
        %v698 = vunpack.c.l.b16 %v602
        %v699 = vrot.slane %v684, 7
        %vm700 = vcmask 1041409
        %v701 = vsel %vm700, %v699, %v683
        %v702 = vrot.slane %v685, 6
        %vm703 = vcmask 1042434
        %v704 = vsel %vm703, %v702, %v701
        %v705 = vrot.slane %v686, 5
        %vm706 = vcmask 1043459
        %v707 = vsel %vm706, %v705, %v704
        %v708 = vrot.slane %v687, 4
        %vm709 = vcmask 1044484
        %v710 = vsel %vm709, %v708, %v707
        %v711 = vrot.slane %v688, 3
        %vm712 = vcmask 1045509
        %v713 = vsel %vm712, %v711, %v710
        %v714 = vrot.slane %v689, 2
        %vm715 = vcmask 1046534
        %v716 = vsel %vm715, %v714, %v713
        %v717 = vrot.slane %v690, 1
        %vm718 = vcmask 1047559
        %v719 = vsel %vm718, %v717, %v716
        %v720 = vrot.slane %v692, 7
        %v721 = vsel %vm700, %v720, %v691
        %v722 = vrot.slane %v693, 6
        %v723 = vsel %vm703, %v722, %v721
        %v724 = vrot.slane %v694, 5
        %v725 = vsel %vm706, %v724, %v723
        %v726 = vrot.slane %v695, 4
        %v727 = vsel %vm709, %v726, %v725
        %v728 = vrot.slane %v696, 3
        %v729 = vsel %vm712, %v728, %v727
        %v730 = vrot.slane %v697, 2
        %v731 = vsel %vm715, %v730, %v729
        %v732 = vrot.slane %v698, 1
        %v733 = vsel %vm718, %v732, %v731
        %v734 = vpack.c.b16 %v733, %v719
        %v751 = vunpack.c.l.b16 %v619
        %v752 = vunpack.c.l.b16 %v620
        %v753 = vunpack.c.l.b16 %v621
        %v754 = vunpack.c.l.b16 %v622
        %v755 = vunpack.c.l.b16 %v623
        %v756 = vunpack.c.l.b16 %v624
        %v757 = vunpack.c.l.b16 %v625
        %v758 = vunpack.c.l.b16 %v626
        %v759 = vunpack.c.l.b16 %v627
        %v760 = vunpack.c.l.b16 %v628
        %v761 = vunpack.c.l.b16 %v629
        %v762 = vunpack.c.l.b16 %v630
        %v763 = vunpack.c.l.b16 %v631
        %v764 = vunpack.c.l.b16 %v632
        %v765 = vunpack.c.l.b16 %v633
        %v766 = vunpack.c.l.b16 %v634
        %v767 = vrot.slane %v752, 7
        %v768 = vsel %vm700, %v767, %v751
        %v769 = vrot.slane %v753, 6
        %v770 = vsel %vm703, %v769, %v768
        %v771 = vrot.slane %v754, 5
        %v772 = vsel %vm706, %v771, %v770
        %v773 = vrot.slane %v755, 4
        %v774 = vsel %vm709, %v773, %v772
        %v775 = vrot.slane %v756, 3
        %v776 = vsel %vm712, %v775, %v774
        %v777 = vrot.slane %v757, 2
        %v778 = vsel %vm715, %v777, %v776
        %v779 = vrot.slane %v758, 1
        %v780 = vsel %vm718, %v779, %v778
        %v781 = vrot.slane %v760, 7
        %v782 = vsel %vm700, %v781, %v759
        %v783 = vrot.slane %v761, 6
        %v784 = vsel %vm703, %v783, %v782
        %v785 = vrot.slane %v762, 5
        %v786 = vsel %vm706, %v785, %v784
        %v787 = vrot.slane %v763, 4
        %v788 = vsel %vm709, %v787, %v786
        %v789 = vrot.slane %v764, 3
        %v790 = vsel %vm712, %v789, %v788
        %v791 = vrot.slane %v765, 2
        %v792 = vsel %vm715, %v791, %v790
        %v793 = vrot.slane %v766, 1
        %v794 = vsel %vm718, %v793, %v792
        %v795 = vpack.c.b16 %v794, %v780
        %vm796 = vcmask 64512
        %v798 = vsel %vm796, %v734, 0
        %v801 = vsel %vm796, %v795, 0
        %803 = vmatpush.bf16.xpose.msra.mxu0 0
        %804 = vmatpush.bf16.xpose.msra.mxu0 0
        %805 = vmatpush.bf16.xpose.msra.mxu0 0
        %806 = vmatpush.bf16.xpose.msra.mxu0 0
        %807 = vmatpush.bf16.xpose.msra.mxu0 0
        %808 = vmatpush.bf16.xpose.msra.mxu0 0
        %809 = vmatpush.bf16.xpose.msra.mxu0 0
        %810 = vmatpush.bf16.xpose.msra.mxu0 %v801
        %811 = vmatmul.bf16.gmra.mxu0 %v798
        %v812 = vpop.f32.mrf.mxu0
        %v813 = vadd.f32 0.0, %v812
        %v814 = vpop.f32.mrf.mxu0
        %v815 = vadd.f32 0.0, %v814
        %816 = vdwg.mxu0
        %vm817 = vcmask 130048
        %v818 = vsel %vm817, %v813, -inf
        %819 = vmax.xlane.f32.xlu0 %v818
        %v820 = vpop.xlane.xlu0 %819
        %v821 = vsel %vm817, %v815, -inf
        %822 = vmax.xlane.f32.xlu0 %v821
        %v823 = vpop.xlane.xlu0 %822
        %v824 = vsub.f32 %v813, %v820
        %v825 = vsub.f32 %v815, %v823
        %v826 = vmul.f32 %v824, 1.442695
        %v827 = vpow.pop %v826
        %v828 = vmul.f32 %v825, 1.442695
        %v829 = vpow.pop %v828
        %v830 = vsel %vm817, %v827, 0.0
        %831 = vadd.xlane.f32.xlu0 %v830
        %v832 = vpop.xlane.xlu0 %831
        %v833 = vsel %vm817, %v829, 0.0
        %834 = vadd.xlane.f32.xlu0 %v833
        %v835 = vpop.xlane.xlu0 %834
        %v836 = vrcp.pop %v832
        %v837 = vrcp.pop %v835
        %v838 = vmul.f32 %v827, %v836
        %v839 = vmul.f32 %v829, %v837
        %v840 = vpack.c.bf16 %v839, %v838
        %v857 = vunpack.c.l.b16 %v651
        %v858 = vunpack.c.l.b16 %v652
        %v859 = vunpack.c.l.b16 %v653
        %v860 = vunpack.c.l.b16 %v654
        %v861 = vunpack.c.l.b16 %v655
        %v862 = vunpack.c.l.b16 %v656
        %v863 = vunpack.c.l.b16 %v657
        %v864 = vunpack.c.l.b16 %v658
        %v865 = vunpack.c.l.b16 %v659
        %v866 = vunpack.c.l.b16 %v660
        %v867 = vunpack.c.l.b16 %v661
        %v868 = vunpack.c.l.b16 %v662
        %v869 = vunpack.c.l.b16 %v663
        %v870 = vunpack.c.l.b16 %v664
        %v871 = vunpack.c.l.b16 %v665
        %v872 = vunpack.c.l.b16 %v666
        %v873 = vrot.slane %v858, 7
        %v874 = vsel %vm700, %v873, %v857
        %v875 = vrot.slane %v859, 6
        %v876 = vsel %vm703, %v875, %v874
        %v877 = vrot.slane %v860, 5
        %v878 = vsel %vm706, %v877, %v876
        %v879 = vrot.slane %v861, 4
        %v880 = vsel %vm709, %v879, %v878
        %v881 = vrot.slane %v862, 3
        %v882 = vsel %vm712, %v881, %v880
        %v883 = vrot.slane %v863, 2
        %v884 = vsel %vm715, %v883, %v882
        %v885 = vrot.slane %v864, 1
        %v886 = vsel %vm718, %v885, %v884
        %v887 = vrot.slane %v866, 7
        %v888 = vsel %vm700, %v887, %v865
        %v889 = vrot.slane %v867, 6
        %v890 = vsel %vm703, %v889, %v888
        %v891 = vrot.slane %v868, 5
        %v892 = vsel %vm706, %v891, %v890
        %v893 = vrot.slane %v869, 4
        %v894 = vsel %vm709, %v893, %v892
        %v895 = vrot.slane %v870, 3
        %v896 = vsel %vm712, %v895, %v894
        %v897 = vrot.slane %v871, 2
        %v898 = vsel %vm715, %v897, %v896
        %v899 = vrot.slane %v872, 1
        %v900 = vsel %vm718, %v899, %v898
        %v901 = vpack.c.b16 %v900, %v886
        %v904 = vsel %vm817, %v840, 0
        %906 = vmatpush.bf16.msra.mxu0 0
        %907 = vmatpush.bf16.msra.mxu0 0
        %908 = vmatpush.bf16.msra.mxu0 0
        %909 = vmatpush.bf16.msra.mxu0 0
        %910 = vmatpush.bf16.msra.mxu0 0
        %911 = vmatpush.bf16.msra.mxu0 0
        %912 = vmatpush.bf16.msra.mxu0 0
        %913 = vmatpush.bf16.msra.mxu0 %v901
        %914 = vmatmul.bf16.gmra.mxu0 %v904
        %v915 = vpop.f32.mrf.mxu0
        %v916 = vadd.f32 0.0, %v915
        %v917 = vpop.f32.mrf.mxu0
        %v918 = vadd.f32 0.0, %v917
        %919 = vdwg.mxu0
        %920 = vst.msk [vmem:[%s552] sm:$0xff] %vm796, %v916
        %921 = vst.msk [vmem:[%s552 + $0x8] sm:$0xff] %vm796, %v918
        %v922 = vld [vmem:[%s496 + $0x1] sm:$0x1]
        %v923 = vld [vmem:[%s496 + $0x5] sm:$0x1]
        %v924 = vld [vmem:[%s496 + $0x9] sm:$0x1]
        %v925 = vld [vmem:[%s496 + $0xd] sm:$0x1]
        %v926 = vld [vmem:[%s496 + $0x11] sm:$0x1]
        %v927 = vld [vmem:[%s496 + $0x15] sm:$0x1]
        %v928 = vld [vmem:[%s496 + $0x19] sm:$0x1]
        %v929 = vld [vmem:[%s496 + $0x1d] sm:$0x1]
        %v930 = vld [vmem:[%s496 + $0x21] sm:$0x1]
        %v931 = vld [vmem:[%s496 + $0x25] sm:$0x1]
        %v932 = vld [vmem:[%s496 + $0x29] sm:$0x1]
        %v933 = vld [vmem:[%s496 + $0x2d] sm:$0x1]
        %v934 = vld [vmem:[%s496 + $0x31] sm:$0x1]
        %v935 = vld [vmem:[%s496 + $0x35] sm:$0x1]
        %v936 = vld [vmem:[%s496 + $0x39] sm:$0x1]
        %v937 = vld [vmem:[%s496 + $0x3d] sm:$0x1]
        %v938 = vmul.f32 %v922, 0.35355338
        %v939 = vmul.f32 %v923, 0.35355338
        %v940 = vmul.f32 %v924, 0.35355338
        %v941 = vmul.f32 %v925, 0.35355338
        %v942 = vmul.f32 %v926, 0.35355338
        %v943 = vmul.f32 %v927, 0.35355338
        %v944 = vmul.f32 %v928, 0.35355338
        %v945 = vmul.f32 %v929, 0.35355338
        %v946 = vmul.f32 %v930, 0.35355338
        %v947 = vmul.f32 %v931, 0.35355338
        %v948 = vmul.f32 %v932, 0.35355338
        %v949 = vmul.f32 %v933, 0.35355338
        %v950 = vmul.f32 %v934, 0.35355338
        %v951 = vmul.f32 %v935, 0.35355338
        %v952 = vmul.f32 %v936, 0.35355338
        %v953 = vmul.f32 %v937, 0.35355338
        %v954 = vpack.c.bf16 %v938, %v938
        %v955 = vpack.c.bf16 %v939, %v939
        %v956 = vpack.c.bf16 %v940, %v940
        %v957 = vpack.c.bf16 %v941, %v941
        %v958 = vpack.c.bf16 %v942, %v942
        %v959 = vpack.c.bf16 %v943, %v943
        %v960 = vpack.c.bf16 %v944, %v944
        %v961 = vpack.c.bf16 %v945, %v945
        %v962 = vpack.c.bf16 %v946, %v946
        %v963 = vpack.c.bf16 %v947, %v947
        %v964 = vpack.c.bf16 %v948, %v948
        %v965 = vpack.c.bf16 %v949, %v949
        %v966 = vpack.c.bf16 %v950, %v950
        %v967 = vpack.c.bf16 %v951, %v951
        %v968 = vpack.c.bf16 %v952, %v952
        %v969 = vpack.c.bf16 %v953, %v953
        %v970 = vld [vmem:[%s503 + $0x1] sm:$0x1]
        %v971 = vld [vmem:[%s503 + $0x5] sm:$0x1]
        %v972 = vld [vmem:[%s503 + $0x9] sm:$0x1]
        %v973 = vld [vmem:[%s503 + $0xd] sm:$0x1]
        %v974 = vld [vmem:[%s503 + $0x11] sm:$0x1]
        %v975 = vld [vmem:[%s503 + $0x15] sm:$0x1]
        %v976 = vld [vmem:[%s503 + $0x19] sm:$0x1]
        %v977 = vld [vmem:[%s503 + $0x1d] sm:$0x1]
        %v978 = vld [vmem:[%s503 + $0x21] sm:$0x1]
        %v979 = vld [vmem:[%s503 + $0x25] sm:$0x1]
        %v980 = vld [vmem:[%s503 + $0x29] sm:$0x1]
        %v981 = vld [vmem:[%s503 + $0x2d] sm:$0x1]
        %v982 = vld [vmem:[%s503 + $0x31] sm:$0x1]
        %v983 = vld [vmem:[%s503 + $0x35] sm:$0x1]
        %v984 = vld [vmem:[%s503 + $0x39] sm:$0x1]
        %v985 = vld [vmem:[%s503 + $0x3d] sm:$0x1]
        %v986 = vpack.c.bf16 %v970, %v970
        %v987 = vpack.c.bf16 %v971, %v971
        %v988 = vpack.c.bf16 %v972, %v972
        %v989 = vpack.c.bf16 %v973, %v973
        %v990 = vpack.c.bf16 %v974, %v974
        %v991 = vpack.c.bf16 %v975, %v975
        %v992 = vpack.c.bf16 %v976, %v976
        %v993 = vpack.c.bf16 %v977, %v977
        %v994 = vpack.c.bf16 %v978, %v978
        %v995 = vpack.c.bf16 %v979, %v979
        %v996 = vpack.c.bf16 %v980, %v980
        %v997 = vpack.c.bf16 %v981, %v981
        %v998 = vpack.c.bf16 %v982, %v982
        %v999 = vpack.c.bf16 %v983, %v983
        %v1000 = vpack.c.bf16 %v984, %v984
        %v1001 = vpack.c.bf16 %v985, %v985
        %v1002 = vld [vmem:[%s510 + $0x1] sm:$0x1]
        %v1003 = vld [vmem:[%s510 + $0x5] sm:$0x1]
        %v1004 = vld [vmem:[%s510 + $0x9] sm:$0x1]
        %v1005 = vld [vmem:[%s510 + $0xd] sm:$0x1]
        %v1006 = vld [vmem:[%s510 + $0x11] sm:$0x1]
        %v1007 = vld [vmem:[%s510 + $0x15] sm:$0x1]
        %v1008 = vld [vmem:[%s510 + $0x19] sm:$0x1]
        %v1009 = vld [vmem:[%s510 + $0x1d] sm:$0x1]
        %v1010 = vld [vmem:[%s510 + $0x21] sm:$0x1]
        %v1011 = vld [vmem:[%s510 + $0x25] sm:$0x1]
        %v1012 = vld [vmem:[%s510 + $0x29] sm:$0x1]
        %v1013 = vld [vmem:[%s510 + $0x2d] sm:$0x1]
        %v1014 = vld [vmem:[%s510 + $0x31] sm:$0x1]
        %v1015 = vld [vmem:[%s510 + $0x35] sm:$0x1]
        %v1016 = vld [vmem:[%s510 + $0x39] sm:$0x1]
        %v1017 = vld [vmem:[%s510 + $0x3d] sm:$0x1]
        %v1018 = vpack.c.bf16 %v1002, %v1002
        %v1019 = vpack.c.bf16 %v1003, %v1003
        %v1020 = vpack.c.bf16 %v1004, %v1004
        %v1021 = vpack.c.bf16 %v1005, %v1005
        %v1022 = vpack.c.bf16 %v1006, %v1006
        %v1023 = vpack.c.bf16 %v1007, %v1007
        %v1024 = vpack.c.bf16 %v1008, %v1008
        %v1025 = vpack.c.bf16 %v1009, %v1009
        %v1026 = vpack.c.bf16 %v1010, %v1010
        %v1027 = vpack.c.bf16 %v1011, %v1011
        %v1028 = vpack.c.bf16 %v1012, %v1012
        %v1029 = vpack.c.bf16 %v1013, %v1013
        %v1030 = vpack.c.bf16 %v1014, %v1014
        %v1031 = vpack.c.bf16 %v1015, %v1015
        %v1032 = vpack.c.bf16 %v1016, %v1016
        %v1033 = vpack.c.bf16 %v1017, %v1017
        %v1050 = vunpack.c.l.b16 %v954
        %v1051 = vunpack.c.l.b16 %v955
        %v1052 = vunpack.c.l.b16 %v956
        %v1053 = vunpack.c.l.b16 %v957
        %v1054 = vunpack.c.l.b16 %v958
        %v1055 = vunpack.c.l.b16 %v959
        %v1056 = vunpack.c.l.b16 %v960
        %v1057 = vunpack.c.l.b16 %v961
        %v1058 = vunpack.c.l.b16 %v962
        %v1059 = vunpack.c.l.b16 %v963
        %v1060 = vunpack.c.l.b16 %v964
        %v1061 = vunpack.c.l.b16 %v965
        %v1062 = vunpack.c.l.b16 %v966
        %v1063 = vunpack.c.l.b16 %v967
        %v1064 = vunpack.c.l.b16 %v968
        %v1065 = vunpack.c.l.b16 %v969
        %v1066 = vrot.slane %v1051, 7
        %v1067 = vsel %vm700, %v1066, %v1050
        %v1068 = vrot.slane %v1052, 6
        %v1069 = vsel %vm703, %v1068, %v1067
        %v1070 = vrot.slane %v1053, 5
        %v1071 = vsel %vm706, %v1070, %v1069
        %v1072 = vrot.slane %v1054, 4
        %v1073 = vsel %vm709, %v1072, %v1071
        %v1074 = vrot.slane %v1055, 3
        %v1075 = vsel %vm712, %v1074, %v1073
        %v1076 = vrot.slane %v1056, 2
        %v1077 = vsel %vm715, %v1076, %v1075
        %v1078 = vrot.slane %v1057, 1
        %v1079 = vsel %vm718, %v1078, %v1077
        %v1080 = vrot.slane %v1059, 7
        %v1081 = vsel %vm700, %v1080, %v1058
        %v1082 = vrot.slane %v1060, 6
        %v1083 = vsel %vm703, %v1082, %v1081
        %v1084 = vrot.slane %v1061, 5
        %v1085 = vsel %vm706, %v1084, %v1083
        %v1086 = vrot.slane %v1062, 4
        %v1087 = vsel %vm709, %v1086, %v1085
        %v1088 = vrot.slane %v1063, 3
        %v1089 = vsel %vm712, %v1088, %v1087
        %v1090 = vrot.slane %v1064, 2
        %v1091 = vsel %vm715, %v1090, %v1089
        %v1092 = vrot.slane %v1065, 1
        %v1093 = vsel %vm718, %v1092, %v1091
        %v1094 = vpack.c.b16 %v1093, %v1079
        %v1111 = vunpack.c.l.b16 %v986
        %v1112 = vunpack.c.l.b16 %v987
        %v1113 = vunpack.c.l.b16 %v988
        %v1114 = vunpack.c.l.b16 %v989
        %v1115 = vunpack.c.l.b16 %v990
        %v1116 = vunpack.c.l.b16 %v991
        %v1117 = vunpack.c.l.b16 %v992
        %v1118 = vunpack.c.l.b16 %v993
        %v1119 = vunpack.c.l.b16 %v994
        %v1120 = vunpack.c.l.b16 %v995
        %v1121 = vunpack.c.l.b16 %v996
        %v1122 = vunpack.c.l.b16 %v997
        %v1123 = vunpack.c.l.b16 %v998
        %v1124 = vunpack.c.l.b16 %v999
        %v1125 = vunpack.c.l.b16 %v1000
        %v1126 = vunpack.c.l.b16 %v1001
        %v1127 = vrot.slane %v1112, 7
        %v1128 = vsel %vm700, %v1127, %v1111
        %v1129 = vrot.slane %v1113, 6
        %v1130 = vsel %vm703, %v1129, %v1128
        %v1131 = vrot.slane %v1114, 5
        %v1132 = vsel %vm706, %v1131, %v1130
        %v1133 = vrot.slane %v1115, 4
        %v1134 = vsel %vm709, %v1133, %v1132
        %v1135 = vrot.slane %v1116, 3
        %v1136 = vsel %vm712, %v1135, %v1134
        %v1137 = vrot.slane %v1117, 2
        %v1138 = vsel %vm715, %v1137, %v1136
        %v1139 = vrot.slane %v1118, 1
        %v1140 = vsel %vm718, %v1139, %v1138
        %v1141 = vrot.slane %v1120, 7
        %v1142 = vsel %vm700, %v1141, %v1119
        %v1143 = vrot.slane %v1121, 6
        %v1144 = vsel %vm703, %v1143, %v1142
        %v1145 = vrot.slane %v1122, 5
        %v1146 = vsel %vm706, %v1145, %v1144
        %v1147 = vrot.slane %v1123, 4
        %v1148 = vsel %vm709, %v1147, %v1146
        %v1149 = vrot.slane %v1124, 3
        %v1150 = vsel %vm712, %v1149, %v1148
        %v1151 = vrot.slane %v1125, 2
        %v1152 = vsel %vm715, %v1151, %v1150
        %v1153 = vrot.slane %v1126, 1
        %v1154 = vsel %vm718, %v1153, %v1152
        %v1155 = vpack.c.b16 %v1154, %v1140
        %v1157 = vsel %vm796, %v1094, 0
        %v1160 = vsel %vm796, %v1155, 0
        %1162 = vmatpush.bf16.xpose.msra.mxu0 0
        %1163 = vmatpush.bf16.xpose.msra.mxu0 0
        %1164 = vmatpush.bf16.xpose.msra.mxu0 0
        %1165 = vmatpush.bf16.xpose.msra.mxu0 0
        %1166 = vmatpush.bf16.xpose.msra.mxu0 0
        %1167 = vmatpush.bf16.xpose.msra.mxu0 0
        %1168 = vmatpush.bf16.xpose.msra.mxu0 0
        %1169 = vmatpush.bf16.xpose.msra.mxu0 %v1160
        %1170 = vmatmul.bf16.gmra.mxu0 %v1157
        %v1171 = vpop.f32.mrf.mxu0
        %v1172 = vadd.f32 0.0, %v1171
        %v1173 = vpop.f32.mrf.mxu0
        %v1174 = vadd.f32 0.0, %v1173
        %1175 = vdwg.mxu0
        %v1176 = vsel %vm817, %v1172, -inf
        %1177 = vmax.xlane.f32.xlu0 %v1176
        %v1178 = vpop.xlane.xlu0 %1177
        %v1179 = vsel %vm817, %v1174, -inf
        %1180 = vmax.xlane.f32.xlu0 %v1179
        %v1181 = vpop.xlane.xlu0 %1180
        %v1182 = vsub.f32 %v1172, %v1178
        %v1183 = vsub.f32 %v1174, %v1181
        %v1184 = vmul.f32 %v1182, 1.442695
        %v1185 = vpow.pop %v1184
        %v1186 = vmul.f32 %v1183, 1.442695
        %v1187 = vpow.pop %v1186
        %v1188 = vsel %vm817, %v1185, 0.0
        %1189 = vadd.xlane.f32.xlu0 %v1188
        %v1190 = vpop.xlane.xlu0 %1189
        %v1191 = vsel %vm817, %v1187, 0.0
        %1192 = vadd.xlane.f32.xlu0 %v1191
        %v1193 = vpop.xlane.xlu0 %1192
        %v1194 = vrcp.pop %v1190
        %v1195 = vrcp.pop %v1193
        %v1196 = vmul.f32 %v1185, %v1194
        %v1197 = vmul.f32 %v1187, %v1195
        %v1198 = vpack.c.bf16 %v1197, %v1196
        %v1215 = vunpack.c.l.b16 %v1018
        %v1216 = vunpack.c.l.b16 %v1019
        %v1217 = vunpack.c.l.b16 %v1020
        %v1218 = vunpack.c.l.b16 %v1021
        %v1219 = vunpack.c.l.b16 %v1022
        %v1220 = vunpack.c.l.b16 %v1023
        %v1221 = vunpack.c.l.b16 %v1024
        %v1222 = vunpack.c.l.b16 %v1025
        %v1223 = vunpack.c.l.b16 %v1026
        %v1224 = vunpack.c.l.b16 %v1027
        %v1225 = vunpack.c.l.b16 %v1028
        %v1226 = vunpack.c.l.b16 %v1029
        %v1227 = vunpack.c.l.b16 %v1030
        %v1228 = vunpack.c.l.b16 %v1031
        %v1229 = vunpack.c.l.b16 %v1032
        %v1230 = vunpack.c.l.b16 %v1033
        %v1231 = vrot.slane %v1216, 7
        %v1232 = vsel %vm700, %v1231, %v1215
        %v1233 = vrot.slane %v1217, 6
        %v1234 = vsel %vm703, %v1233, %v1232
        %v1235 = vrot.slane %v1218, 5
        %v1236 = vsel %vm706, %v1235, %v1234
        %v1237 = vrot.slane %v1219, 4
        %v1238 = vsel %vm709, %v1237, %v1236
        %v1239 = vrot.slane %v1220, 3
        %v1240 = vsel %vm712, %v1239, %v1238
        %v1241 = vrot.slane %v1221, 2
        %v1242 = vsel %vm715, %v1241, %v1240
        %v1243 = vrot.slane %v1222, 1
        %v1244 = vsel %vm718, %v1243, %v1242
        %v1245 = vrot.slane %v1224, 7
        %v1246 = vsel %vm700, %v1245, %v1223
        %v1247 = vrot.slane %v1225, 6
        %v1248 = vsel %vm703, %v1247, %v1246
        %v1249 = vrot.slane %v1226, 5
        %v1250 = vsel %vm706, %v1249, %v1248
        %v1251 = vrot.slane %v1227, 4
        %v1252 = vsel %vm709, %v1251, %v1250
        %v1253 = vrot.slane %v1228, 3
        %v1254 = vsel %vm712, %v1253, %v1252
        %v1255 = vrot.slane %v1229, 2
        %v1256 = vsel %vm715, %v1255, %v1254
        %v1257 = vrot.slane %v1230, 1
        %v1258 = vsel %vm718, %v1257, %v1256
        %v1259 = vpack.c.b16 %v1258, %v1244
        %v1262 = vsel %vm817, %v1198, 0
        %1264 = vmatpush.bf16.msra.mxu0 0
        %1265 = vmatpush.bf16.msra.mxu0 0
        %1266 = vmatpush.bf16.msra.mxu0 0
        %1267 = vmatpush.bf16.msra.mxu0 0
        %1268 = vmatpush.bf16.msra.mxu0 0
        %1269 = vmatpush.bf16.msra.mxu0 0
        %1270 = vmatpush.bf16.msra.mxu0 0
        %1271 = vmatpush.bf16.msra.mxu0 %v1259
        %1272 = vmatmul.bf16.gmra.mxu0 %v1262
        %v1273 = vpop.f32.mrf.mxu0
        %v1274 = vadd.f32 0.0, %v1273
        %v1275 = vpop.f32.mrf.mxu0
        %v1276 = vadd.f32 0.0, %v1275
        %1277 = vdwg.mxu0
        %1280 = vrot.lane.b32.xlu0 %v1274, 8
        %v1281 = vpop.permute.xlu0 %1280
        %1282 = vrot.lane.b32.xlu0 %v1276, 8
        %v1283 = vpop.permute.xlu0 %1282
        %vm1286 = vcmask 130112
        %1287 = vst.msk [vmem:[%s552] sm:$0xff] %vm1286, %v1281
        %1288 = vst.msk [vmem:[%s552 + $0x8] sm:$0xff] %vm1286, %v1283
        %v1289 = vld [vmem:[%s496 + $0x2] sm:$0x1]
        %v1290 = vld [vmem:[%s496 + $0x6] sm:$0x1]
        %v1291 = vld [vmem:[%s496 + $0xa] sm:$0x1]
        %v1292 = vld [vmem:[%s496 + $0xe] sm:$0x1]
        %v1293 = vld [vmem:[%s496 + $0x12] sm:$0x1]
        %v1294 = vld [vmem:[%s496 + $0x16] sm:$0x1]
        %v1295 = vld [vmem:[%s496 + $0x1a] sm:$0x1]
        %v1296 = vld [vmem:[%s496 + $0x1e] sm:$0x1]
        %v1297 = vld [vmem:[%s496 + $0x22] sm:$0x1]
        %v1298 = vld [vmem:[%s496 + $0x26] sm:$0x1]
        %v1299 = vld [vmem:[%s496 + $0x2a] sm:$0x1]
        %v1300 = vld [vmem:[%s496 + $0x2e] sm:$0x1]
        %v1301 = vld [vmem:[%s496 + $0x32] sm:$0x1]
        %v1302 = vld [vmem:[%s496 + $0x36] sm:$0x1]
        %v1303 = vld [vmem:[%s496 + $0x3a] sm:$0x1]
        %v1304 = vld [vmem:[%s496 + $0x3e] sm:$0x1]
        %v1305 = vmul.f32 %v1289, 0.35355338
        %v1306 = vmul.f32 %v1290, 0.35355338
        %v1307 = vmul.f32 %v1291, 0.35355338
        %v1308 = vmul.f32 %v1292, 0.35355338
        %v1309 = vmul.f32 %v1293, 0.35355338
        %v1310 = vmul.f32 %v1294, 0.35355338
        %v1311 = vmul.f32 %v1295, 0.35355338
        %v1312 = vmul.f32 %v1296, 0.35355338
        %v1313 = vmul.f32 %v1297, 0.35355338
        %v1314 = vmul.f32 %v1298, 0.35355338
        %v1315 = vmul.f32 %v1299, 0.35355338
        %v1316 = vmul.f32 %v1300, 0.35355338
        %v1317 = vmul.f32 %v1301, 0.35355338
        %v1318 = vmul.f32 %v1302, 0.35355338
        %v1319 = vmul.f32 %v1303, 0.35355338
        %v1320 = vmul.f32 %v1304, 0.35355338
        %v1321 = vpack.c.bf16 %v1305, %v1305
        %v1322 = vpack.c.bf16 %v1306, %v1306
        %v1323 = vpack.c.bf16 %v1307, %v1307
        %v1324 = vpack.c.bf16 %v1308, %v1308
        %v1325 = vpack.c.bf16 %v1309, %v1309
        %v1326 = vpack.c.bf16 %v1310, %v1310
        %v1327 = vpack.c.bf16 %v1311, %v1311
        %v1328 = vpack.c.bf16 %v1312, %v1312
        %v1329 = vpack.c.bf16 %v1313, %v1313
        %v1330 = vpack.c.bf16 %v1314, %v1314
        %v1331 = vpack.c.bf16 %v1315, %v1315
        %v1332 = vpack.c.bf16 %v1316, %v1316
        %v1333 = vpack.c.bf16 %v1317, %v1317
        %v1334 = vpack.c.bf16 %v1318, %v1318
        %v1335 = vpack.c.bf16 %v1319, %v1319
        %v1336 = vpack.c.bf16 %v1320, %v1320
        %v1337 = vld [vmem:[%s503 + $0x2] sm:$0x1]
        %v1338 = vld [vmem:[%s503 + $0x6] sm:$0x1]
        %v1339 = vld [vmem:[%s503 + $0xa] sm:$0x1]
        %v1340 = vld [vmem:[%s503 + $0xe] sm:$0x1]
        %v1341 = vld [vmem:[%s503 + $0x12] sm:$0x1]
        %v1342 = vld [vmem:[%s503 + $0x16] sm:$0x1]
        %v1343 = vld [vmem:[%s503 + $0x1a] sm:$0x1]
        %v1344 = vld [vmem:[%s503 + $0x1e] sm:$0x1]
        %v1345 = vld [vmem:[%s503 + $0x22] sm:$0x1]
        %v1346 = vld [vmem:[%s503 + $0x26] sm:$0x1]
        %v1347 = vld [vmem:[%s503 + $0x2a] sm:$0x1]
        %v1348 = vld [vmem:[%s503 + $0x2e] sm:$0x1]
        %v1349 = vld [vmem:[%s503 + $0x32] sm:$0x1]
        %v1350 = vld [vmem:[%s503 + $0x36] sm:$0x1]
        %v1351 = vld [vmem:[%s503 + $0x3a] sm:$0x1]
        %v1352 = vld [vmem:[%s503 + $0x3e] sm:$0x1]
        %v1353 = vpack.c.bf16 %v1337, %v1337
        %v1354 = vpack.c.bf16 %v1338, %v1338
        %v1355 = vpack.c.bf16 %v1339, %v1339
        %v1356 = vpack.c.bf16 %v1340, %v1340
        %v1357 = vpack.c.bf16 %v1341, %v1341
        %v1358 = vpack.c.bf16 %v1342, %v1342
        %v1359 = vpack.c.bf16 %v1343, %v1343
        %v1360 = vpack.c.bf16 %v1344, %v1344
        %v1361 = vpack.c.bf16 %v1345, %v1345
        %v1362 = vpack.c.bf16 %v1346, %v1346
        %v1363 = vpack.c.bf16 %v1347, %v1347
        %v1364 = vpack.c.bf16 %v1348, %v1348
        %v1365 = vpack.c.bf16 %v1349, %v1349
        %v1366 = vpack.c.bf16 %v1350, %v1350
        %v1367 = vpack.c.bf16 %v1351, %v1351
        %v1368 = vpack.c.bf16 %v1352, %v1352
        %v1369 = vld [vmem:[%s510 + $0x2] sm:$0x1]
        %v1370 = vld [vmem:[%s510 + $0x6] sm:$0x1]
        %v1371 = vld [vmem:[%s510 + $0xa] sm:$0x1]
        %v1372 = vld [vmem:[%s510 + $0xe] sm:$0x1]
        %v1373 = vld [vmem:[%s510 + $0x12] sm:$0x1]
        %v1374 = vld [vmem:[%s510 + $0x16] sm:$0x1]
        %v1375 = vld [vmem:[%s510 + $0x1a] sm:$0x1]
        %v1376 = vld [vmem:[%s510 + $0x1e] sm:$0x1]
        %v1377 = vld [vmem:[%s510 + $0x22] sm:$0x1]
        %v1378 = vld [vmem:[%s510 + $0x26] sm:$0x1]
        %v1379 = vld [vmem:[%s510 + $0x2a] sm:$0x1]
        %v1380 = vld [vmem:[%s510 + $0x2e] sm:$0x1]
        %v1381 = vld [vmem:[%s510 + $0x32] sm:$0x1]
        %v1382 = vld [vmem:[%s510 + $0x36] sm:$0x1]
        %v1383 = vld [vmem:[%s510 + $0x3a] sm:$0x1]
        %v1384 = vld [vmem:[%s510 + $0x3e] sm:$0x1]
        %v1385 = vpack.c.bf16 %v1369, %v1369
        %v1386 = vpack.c.bf16 %v1370, %v1370
        %v1387 = vpack.c.bf16 %v1371, %v1371
        %v1388 = vpack.c.bf16 %v1372, %v1372
        %v1389 = vpack.c.bf16 %v1373, %v1373
        %v1390 = vpack.c.bf16 %v1374, %v1374
        %v1391 = vpack.c.bf16 %v1375, %v1375
        %v1392 = vpack.c.bf16 %v1376, %v1376
        %v1393 = vpack.c.bf16 %v1377, %v1377
        %v1394 = vpack.c.bf16 %v1378, %v1378
        %v1395 = vpack.c.bf16 %v1379, %v1379
        %v1396 = vpack.c.bf16 %v1380, %v1380
        %v1397 = vpack.c.bf16 %v1381, %v1381
        %v1398 = vpack.c.bf16 %v1382, %v1382
        %v1399 = vpack.c.bf16 %v1383, %v1383
        %v1400 = vpack.c.bf16 %v1384, %v1384
        %v1417 = vunpack.c.l.b16 %v1321
        %v1418 = vunpack.c.l.b16 %v1322
        %v1419 = vunpack.c.l.b16 %v1323
        %v1420 = vunpack.c.l.b16 %v1324
        %v1421 = vunpack.c.l.b16 %v1325
        %v1422 = vunpack.c.l.b16 %v1326
        %v1423 = vunpack.c.l.b16 %v1327
        %v1424 = vunpack.c.l.b16 %v1328
        %v1425 = vunpack.c.l.b16 %v1329
        %v1426 = vunpack.c.l.b16 %v1330
        %v1427 = vunpack.c.l.b16 %v1331
        %v1428 = vunpack.c.l.b16 %v1332
        %v1429 = vunpack.c.l.b16 %v1333
        %v1430 = vunpack.c.l.b16 %v1334
        %v1431 = vunpack.c.l.b16 %v1335
        %v1432 = vunpack.c.l.b16 %v1336
        %v1433 = vrot.slane %v1418, 7
        %v1434 = vsel %vm700, %v1433, %v1417
        %v1435 = vrot.slane %v1419, 6
        %v1436 = vsel %vm703, %v1435, %v1434
        %v1437 = vrot.slane %v1420, 5
        %v1438 = vsel %vm706, %v1437, %v1436
        %v1439 = vrot.slane %v1421, 4
        %v1440 = vsel %vm709, %v1439, %v1438
        %v1441 = vrot.slane %v1422, 3
        %v1442 = vsel %vm712, %v1441, %v1440
        %v1443 = vrot.slane %v1423, 2
        %v1444 = vsel %vm715, %v1443, %v1442
        %v1445 = vrot.slane %v1424, 1
        %v1446 = vsel %vm718, %v1445, %v1444
        %v1447 = vrot.slane %v1426, 7
        %v1448 = vsel %vm700, %v1447, %v1425
        %v1449 = vrot.slane %v1427, 6
        %v1450 = vsel %vm703, %v1449, %v1448
        %v1451 = vrot.slane %v1428, 5
        %v1452 = vsel %vm706, %v1451, %v1450
        %v1453 = vrot.slane %v1429, 4
        %v1454 = vsel %vm709, %v1453, %v1452
        %v1455 = vrot.slane %v1430, 3
        %v1456 = vsel %vm712, %v1455, %v1454
        %v1457 = vrot.slane %v1431, 2
        %v1458 = vsel %vm715, %v1457, %v1456
        %v1459 = vrot.slane %v1432, 1
        %v1460 = vsel %vm718, %v1459, %v1458
        %v1461 = vpack.c.b16 %v1460, %v1446
        %v1478 = vunpack.c.l.b16 %v1353
        %v1479 = vunpack.c.l.b16 %v1354
        %v1480 = vunpack.c.l.b16 %v1355
        %v1481 = vunpack.c.l.b16 %v1356
        %v1482 = vunpack.c.l.b16 %v1357
        %v1483 = vunpack.c.l.b16 %v1358
        %v1484 = vunpack.c.l.b16 %v1359
        %v1485 = vunpack.c.l.b16 %v1360
        %v1486 = vunpack.c.l.b16 %v1361
        %v1487 = vunpack.c.l.b16 %v1362
        %v1488 = vunpack.c.l.b16 %v1363
        %v1489 = vunpack.c.l.b16 %v1364
        %v1490 = vunpack.c.l.b16 %v1365
        %v1491 = vunpack.c.l.b16 %v1366
        %v1492 = vunpack.c.l.b16 %v1367
        %v1493 = vunpack.c.l.b16 %v1368
        %v1494 = vrot.slane %v1479, 7
        %v1495 = vsel %vm700, %v1494, %v1478
        %v1496 = vrot.slane %v1480, 6
        %v1497 = vsel %vm703, %v1496, %v1495
        %v1498 = vrot.slane %v1481, 5
        %v1499 = vsel %vm706, %v1498, %v1497
        %v1500 = vrot.slane %v1482, 4
        %v1501 = vsel %vm709, %v1500, %v1499
        %v1502 = vrot.slane %v1483, 3
        %v1503 = vsel %vm712, %v1502, %v1501
        %v1504 = vrot.slane %v1484, 2
        %v1505 = vsel %vm715, %v1504, %v1503
        %v1506 = vrot.slane %v1485, 1
        %v1507 = vsel %vm718, %v1506, %v1505
        %v1508 = vrot.slane %v1487, 7
        %v1509 = vsel %vm700, %v1508, %v1486
        %v1510 = vrot.slane %v1488, 6
        %v1511 = vsel %vm703, %v1510, %v1509
        %v1512 = vrot.slane %v1489, 5
        %v1513 = vsel %vm706, %v1512, %v1511
        %v1514 = vrot.slane %v1490, 4
        %v1515 = vsel %vm709, %v1514, %v1513
        %v1516 = vrot.slane %v1491, 3
        %v1517 = vsel %vm712, %v1516, %v1515
        %v1518 = vrot.slane %v1492, 2
        %v1519 = vsel %vm715, %v1518, %v1517
        %v1520 = vrot.slane %v1493, 1
        %v1521 = vsel %vm718, %v1520, %v1519
        %v1522 = vpack.c.b16 %v1521, %v1507
        %v1524 = vsel %vm796, %v1461, 0
        %v1527 = vsel %vm796, %v1522, 0
        %1529 = vmatpush.bf16.xpose.msra.mxu0 0
        %1530 = vmatpush.bf16.xpose.msra.mxu0 0
        %1531 = vmatpush.bf16.xpose.msra.mxu0 0
        %1532 = vmatpush.bf16.xpose.msra.mxu0 0
        %1533 = vmatpush.bf16.xpose.msra.mxu0 0
        %1534 = vmatpush.bf16.xpose.msra.mxu0 0
        %1535 = vmatpush.bf16.xpose.msra.mxu0 0
        %1536 = vmatpush.bf16.xpose.msra.mxu0 %v1527
        %1537 = vmatmul.bf16.gmra.mxu0 %v1524
        %v1538 = vpop.f32.mrf.mxu0
        %v1539 = vadd.f32 0.0, %v1538
        %v1540 = vpop.f32.mrf.mxu0
        %v1541 = vadd.f32 0.0, %v1540
        %1542 = vdwg.mxu0
        %v1543 = vsel %vm817, %v1539, -inf
        %1544 = vmax.xlane.f32.xlu0 %v1543
        %v1545 = vpop.xlane.xlu0 %1544
        %v1546 = vsel %vm817, %v1541, -inf
        %1547 = vmax.xlane.f32.xlu0 %v1546
        %v1548 = vpop.xlane.xlu0 %1547
        %v1549 = vsub.f32 %v1539, %v1545
        %v1550 = vsub.f32 %v1541, %v1548
        %v1551 = vmul.f32 %v1549, 1.442695
        %v1552 = vpow.pop %v1551
        %v1553 = vmul.f32 %v1550, 1.442695
        %v1554 = vpow.pop %v1553
        %v1555 = vsel %vm817, %v1552, 0.0
        %1556 = vadd.xlane.f32.xlu0 %v1555
        %v1557 = vpop.xlane.xlu0 %1556
        %v1558 = vsel %vm817, %v1554, 0.0
        %1559 = vadd.xlane.f32.xlu0 %v1558
        %v1560 = vpop.xlane.xlu0 %1559
        %v1561 = vrcp.pop %v1557
        %v1562 = vrcp.pop %v1560
        %v1563 = vmul.f32 %v1552, %v1561
        %v1564 = vmul.f32 %v1554, %v1562
        %v1565 = vpack.c.bf16 %v1564, %v1563
        %v1582 = vunpack.c.l.b16 %v1385
        %v1583 = vunpack.c.l.b16 %v1386
        %v1584 = vunpack.c.l.b16 %v1387
        %v1585 = vunpack.c.l.b16 %v1388
        %v1586 = vunpack.c.l.b16 %v1389
        %v1587 = vunpack.c.l.b16 %v1390
        %v1588 = vunpack.c.l.b16 %v1391
        %v1589 = vunpack.c.l.b16 %v1392
        %v1590 = vunpack.c.l.b16 %v1393
        %v1591 = vunpack.c.l.b16 %v1394
        %v1592 = vunpack.c.l.b16 %v1395
        %v1593 = vunpack.c.l.b16 %v1396
        %v1594 = vunpack.c.l.b16 %v1397
        %v1595 = vunpack.c.l.b16 %v1398
        %v1596 = vunpack.c.l.b16 %v1399
        %v1597 = vunpack.c.l.b16 %v1400
        %v1598 = vrot.slane %v1583, 7
        %v1599 = vsel %vm700, %v1598, %v1582
        %v1600 = vrot.slane %v1584, 6
        %v1601 = vsel %vm703, %v1600, %v1599
        %v1602 = vrot.slane %v1585, 5
        %v1603 = vsel %vm706, %v1602, %v1601
        %v1604 = vrot.slane %v1586, 4
        %v1605 = vsel %vm709, %v1604, %v1603
        %v1606 = vrot.slane %v1587, 3
        %v1607 = vsel %vm712, %v1606, %v1605
        %v1608 = vrot.slane %v1588, 2
        %v1609 = vsel %vm715, %v1608, %v1607
        %v1610 = vrot.slane %v1589, 1
        %v1611 = vsel %vm718, %v1610, %v1609
        %v1612 = vrot.slane %v1591, 7
        %v1613 = vsel %vm700, %v1612, %v1590
        %v1614 = vrot.slane %v1592, 6
        %v1615 = vsel %vm703, %v1614, %v1613
        %v1616 = vrot.slane %v1593, 5
        %v1617 = vsel %vm706, %v1616, %v1615
        %v1618 = vrot.slane %v1594, 4
        %v1619 = vsel %vm709, %v1618, %v1617
        %v1620 = vrot.slane %v1595, 3
        %v1621 = vsel %vm712, %v1620, %v1619
        %v1622 = vrot.slane %v1596, 2
        %v1623 = vsel %vm715, %v1622, %v1621
        %v1624 = vrot.slane %v1597, 1
        %v1625 = vsel %vm718, %v1624, %v1623
        %v1626 = vpack.c.b16 %v1625, %v1611
        %v1629 = vsel %vm817, %v1565, 0
        %1631 = vmatpush.bf16.msra.mxu0 0
        %1632 = vmatpush.bf16.msra.mxu0 0
        %1633 = vmatpush.bf16.msra.mxu0 0
        %1634 = vmatpush.bf16.msra.mxu0 0
        %1635 = vmatpush.bf16.msra.mxu0 0
        %1636 = vmatpush.bf16.msra.mxu0 0
        %1637 = vmatpush.bf16.msra.mxu0 0
        %1638 = vmatpush.bf16.msra.mxu0 %v1626
        %1639 = vmatmul.bf16.gmra.mxu0 %v1629
        %v1640 = vpop.f32.mrf.mxu0
        %v1641 = vadd.f32 0.0, %v1640
        %v1642 = vpop.f32.mrf.mxu0
        %v1643 = vadd.f32 0.0, %v1642
        %1644 = vdwg.mxu0
        %1647 = vrot.lane.b32.xlu0 %v1641, 16
        %v1648 = vpop.permute.xlu0 %1647
        %1649 = vrot.lane.b32.xlu0 %v1643, 16
        %v1650 = vpop.permute.xlu0 %1649
        %vm1653 = vcmask 195712
        %1654 = vst.msk [vmem:[%s552] sm:$0xff] %vm1653, %v1648
        %1655 = vst.msk [vmem:[%s552 + $0x8] sm:$0xff] %vm1653, %v1650
        %v1656 = vld [vmem:[%s496 + $0x3] sm:$0x1]
        %v1657 = vld [vmem:[%s496 + $0x7] sm:$0x1]
        %v1658 = vld [vmem:[%s496 + $0xb] sm:$0x1]
        %v1659 = vld [vmem:[%s496 + $0xf] sm:$0x1]
        %v1660 = vld [vmem:[%s496 + $0x13] sm:$0x1]
        %v1661 = vld [vmem:[%s496 + $0x17] sm:$0x1]
        %v1662 = vld [vmem:[%s496 + $0x1b] sm:$0x1]
        %v1663 = vld [vmem:[%s496 + $0x1f] sm:$0x1]
        %v1664 = vld [vmem:[%s496 + $0x23] sm:$0x1]
        %v1665 = vld [vmem:[%s496 + $0x27] sm:$0x1]
        %v1666 = vld [vmem:[%s496 + $0x2b] sm:$0x1]
        %v1667 = vld [vmem:[%s496 + $0x2f] sm:$0x1]
        %v1668 = vld [vmem:[%s496 + $0x33] sm:$0x1]
        %v1669 = vld [vmem:[%s496 + $0x37] sm:$0x1]
        %v1670 = vld [vmem:[%s496 + $0x3b] sm:$0x1]
        %v1671 = vld [vmem:[%s496 + $0x3f] sm:$0x1]
        %v1672 = vmul.f32 %v1656, 0.35355338
        %v1673 = vmul.f32 %v1657, 0.35355338
        %v1674 = vmul.f32 %v1658, 0.35355338
        %v1675 = vmul.f32 %v1659, 0.35355338
        %v1676 = vmul.f32 %v1660, 0.35355338
        %v1677 = vmul.f32 %v1661, 0.35355338
        %v1678 = vmul.f32 %v1662, 0.35355338
        %v1679 = vmul.f32 %v1663, 0.35355338
        %v1680 = vmul.f32 %v1664, 0.35355338
        %v1681 = vmul.f32 %v1665, 0.35355338
        %v1682 = vmul.f32 %v1666, 0.35355338
        %v1683 = vmul.f32 %v1667, 0.35355338
        %v1684 = vmul.f32 %v1668, 0.35355338
        %v1685 = vmul.f32 %v1669, 0.35355338
        %v1686 = vmul.f32 %v1670, 0.35355338
        %v1687 = vmul.f32 %v1671, 0.35355338
        %v1688 = vpack.c.bf16 %v1672, %v1672
        %v1689 = vpack.c.bf16 %v1673, %v1673
        %v1690 = vpack.c.bf16 %v1674, %v1674
        %v1691 = vpack.c.bf16 %v1675, %v1675
        %v1692 = vpack.c.bf16 %v1676, %v1676
        %v1693 = vpack.c.bf16 %v1677, %v1677
        %v1694 = vpack.c.bf16 %v1678, %v1678
        %v1695 = vpack.c.bf16 %v1679, %v1679
        %v1696 = vpack.c.bf16 %v1680, %v1680
        %v1697 = vpack.c.bf16 %v1681, %v1681
        %v1698 = vpack.c.bf16 %v1682, %v1682
        %v1699 = vpack.c.bf16 %v1683, %v1683
        %v1700 = vpack.c.bf16 %v1684, %v1684
        %v1701 = vpack.c.bf16 %v1685, %v1685
        %v1702 = vpack.c.bf16 %v1686, %v1686
        %v1703 = vpack.c.bf16 %v1687, %v1687
        %v1704 = vld [vmem:[%s503 + $0x3] sm:$0x1]
        %v1705 = vld [vmem:[%s503 + $0x7] sm:$0x1]
        %v1706 = vld [vmem:[%s503 + $0xb] sm:$0x1]
        %v1707 = vld [vmem:[%s503 + $0xf] sm:$0x1]
        %v1708 = vld [vmem:[%s503 + $0x13] sm:$0x1]
        %v1709 = vld [vmem:[%s503 + $0x17] sm:$0x1]
        %v1710 = vld [vmem:[%s503 + $0x1b] sm:$0x1]
        %v1711 = vld [vmem:[%s503 + $0x1f] sm:$0x1]
        %v1712 = vld [vmem:[%s503 + $0x23] sm:$0x1]
        %v1713 = vld [vmem:[%s503 + $0x27] sm:$0x1]
        %v1714 = vld [vmem:[%s503 + $0x2b] sm:$0x1]
        %v1715 = vld [vmem:[%s503 + $0x2f] sm:$0x1]
        %v1716 = vld [vmem:[%s503 + $0x33] sm:$0x1]
        %v1717 = vld [vmem:[%s503 + $0x37] sm:$0x1]
        %v1718 = vld [vmem:[%s503 + $0x3b] sm:$0x1]
        %v1719 = vld [vmem:[%s503 + $0x3f] sm:$0x1]
        %v1720 = vpack.c.bf16 %v1704, %v1704
        %v1721 = vpack.c.bf16 %v1705, %v1705
        %v1722 = vpack.c.bf16 %v1706, %v1706
        %v1723 = vpack.c.bf16 %v1707, %v1707
        %v1724 = vpack.c.bf16 %v1708, %v1708
        %v1725 = vpack.c.bf16 %v1709, %v1709
        %v1726 = vpack.c.bf16 %v1710, %v1710
        %v1727 = vpack.c.bf16 %v1711, %v1711
        %v1728 = vpack.c.bf16 %v1712, %v1712
        %v1729 = vpack.c.bf16 %v1713, %v1713
        %v1730 = vpack.c.bf16 %v1714, %v1714
        %v1731 = vpack.c.bf16 %v1715, %v1715
        %v1732 = vpack.c.bf16 %v1716, %v1716
        %v1733 = vpack.c.bf16 %v1717, %v1717
        %v1734 = vpack.c.bf16 %v1718, %v1718
        %v1735 = vpack.c.bf16 %v1719, %v1719
        %v1736 = vld [vmem:[%s510 + $0x3] sm:$0x1]
        %v1737 = vld [vmem:[%s510 + $0x7] sm:$0x1]
        %v1738 = vld [vmem:[%s510 + $0xb] sm:$0x1]
        %v1739 = vld [vmem:[%s510 + $0xf] sm:$0x1]
        %v1740 = vld [vmem:[%s510 + $0x13] sm:$0x1]
        %v1741 = vld [vmem:[%s510 + $0x17] sm:$0x1]
        %v1742 = vld [vmem:[%s510 + $0x1b] sm:$0x1]
        %v1743 = vld [vmem:[%s510 + $0x1f] sm:$0x1]
        %v1744 = vld [vmem:[%s510 + $0x23] sm:$0x1]
        %v1745 = vld [vmem:[%s510 + $0x27] sm:$0x1]
        %v1746 = vld [vmem:[%s510 + $0x2b] sm:$0x1]
        %v1747 = vld [vmem:[%s510 + $0x2f] sm:$0x1]
        %v1748 = vld [vmem:[%s510 + $0x33] sm:$0x1]
        %v1749 = vld [vmem:[%s510 + $0x37] sm:$0x1]
        %v1750 = vld [vmem:[%s510 + $0x3b] sm:$0x1]
        %v1751 = vld [vmem:[%s510 + $0x3f] sm:$0x1]
        %v1752 = vpack.c.bf16 %v1736, %v1736
        %v1753 = vpack.c.bf16 %v1737, %v1737
        %v1754 = vpack.c.bf16 %v1738, %v1738
        %v1755 = vpack.c.bf16 %v1739, %v1739
        %v1756 = vpack.c.bf16 %v1740, %v1740
        %v1757 = vpack.c.bf16 %v1741, %v1741
        %v1758 = vpack.c.bf16 %v1742, %v1742
        %v1759 = vpack.c.bf16 %v1743, %v1743
        %v1760 = vpack.c.bf16 %v1744, %v1744
        %v1761 = vpack.c.bf16 %v1745, %v1745
        %v1762 = vpack.c.bf16 %v1746, %v1746
        %v1763 = vpack.c.bf16 %v1747, %v1747
        %v1764 = vpack.c.bf16 %v1748, %v1748
        %v1765 = vpack.c.bf16 %v1749, %v1749
        %v1766 = vpack.c.bf16 %v1750, %v1750
        %v1767 = vpack.c.bf16 %v1751, %v1751
        %v1784 = vunpack.c.l.b16 %v1688
        %v1785 = vunpack.c.l.b16 %v1689
        %v1786 = vunpack.c.l.b16 %v1690
        %v1787 = vunpack.c.l.b16 %v1691
        %v1788 = vunpack.c.l.b16 %v1692
        %v1789 = vunpack.c.l.b16 %v1693
        %v1790 = vunpack.c.l.b16 %v1694
        %v1791 = vunpack.c.l.b16 %v1695
        %v1792 = vunpack.c.l.b16 %v1696
        %v1793 = vunpack.c.l.b16 %v1697
        %v1794 = vunpack.c.l.b16 %v1698
        %v1795 = vunpack.c.l.b16 %v1699
        %v1796 = vunpack.c.l.b16 %v1700
        %v1797 = vunpack.c.l.b16 %v1701
        %v1798 = vunpack.c.l.b16 %v1702
        %v1799 = vunpack.c.l.b16 %v1703
        %v1800 = vrot.slane %v1785, 7
        %v1801 = vsel %vm700, %v1800, %v1784
        %v1802 = vrot.slane %v1786, 6
        %v1803 = vsel %vm703, %v1802, %v1801
        %v1804 = vrot.slane %v1787, 5
        %v1805 = vsel %vm706, %v1804, %v1803
        %v1806 = vrot.slane %v1788, 4
        %v1807 = vsel %vm709, %v1806, %v1805
        %v1808 = vrot.slane %v1789, 3
        %v1809 = vsel %vm712, %v1808, %v1807
        %v1810 = vrot.slane %v1790, 2
        %v1811 = vsel %vm715, %v1810, %v1809
        %v1812 = vrot.slane %v1791, 1
        %v1813 = vsel %vm718, %v1812, %v1811
        %v1814 = vrot.slane %v1793, 7
        %v1815 = vsel %vm700, %v1814, %v1792
        %v1816 = vrot.slane %v1794, 6
        %v1817 = vsel %vm703, %v1816, %v1815
        %v1818 = vrot.slane %v1795, 5
        %v1819 = vsel %vm706, %v1818, %v1817
        %v1820 = vrot.slane %v1796, 4
        %v1821 = vsel %vm709, %v1820, %v1819
        %v1822 = vrot.slane %v1797, 3
        %v1823 = vsel %vm712, %v1822, %v1821
        %v1824 = vrot.slane %v1798, 2
        %v1825 = vsel %vm715, %v1824, %v1823
        %v1826 = vrot.slane %v1799, 1
        %v1827 = vsel %vm718, %v1826, %v1825
        %v1828 = vpack.c.b16 %v1827, %v1813
        %v1845 = vunpack.c.l.b16 %v1720
        %v1846 = vunpack.c.l.b16 %v1721
        %v1847 = vunpack.c.l.b16 %v1722
        %v1848 = vunpack.c.l.b16 %v1723
        %v1849 = vunpack.c.l.b16 %v1724
        %v1850 = vunpack.c.l.b16 %v1725
        %v1851 = vunpack.c.l.b16 %v1726
        %v1852 = vunpack.c.l.b16 %v1727
        %v1853 = vunpack.c.l.b16 %v1728
        %v1854 = vunpack.c.l.b16 %v1729
        %v1855 = vunpack.c.l.b16 %v1730
        %v1856 = vunpack.c.l.b16 %v1731
        %v1857 = vunpack.c.l.b16 %v1732
        %v1858 = vunpack.c.l.b16 %v1733
        %v1859 = vunpack.c.l.b16 %v1734
        %v1860 = vunpack.c.l.b16 %v1735
        %v1861 = vrot.slane %v1846, 7
        %v1862 = vsel %vm700, %v1861, %v1845
        %v1863 = vrot.slane %v1847, 6
        %v1864 = vsel %vm703, %v1863, %v1862
        %v1865 = vrot.slane %v1848, 5
        %v1866 = vsel %vm706, %v1865, %v1864
        %v1867 = vrot.slane %v1849, 4
        %v1868 = vsel %vm709, %v1867, %v1866
        %v1869 = vrot.slane %v1850, 3
        %v1870 = vsel %vm712, %v1869, %v1868
        %v1871 = vrot.slane %v1851, 2
        %v1872 = vsel %vm715, %v1871, %v1870
        %v1873 = vrot.slane %v1852, 1
        %v1874 = vsel %vm718, %v1873, %v1872
        %v1875 = vrot.slane %v1854, 7
        %v1876 = vsel %vm700, %v1875, %v1853
        %v1877 = vrot.slane %v1855, 6
        %v1878 = vsel %vm703, %v1877, %v1876
        %v1879 = vrot.slane %v1856, 5
        %v1880 = vsel %vm706, %v1879, %v1878
        %v1881 = vrot.slane %v1857, 4
        %v1882 = vsel %vm709, %v1881, %v1880
        %v1883 = vrot.slane %v1858, 3
        %v1884 = vsel %vm712, %v1883, %v1882
        %v1885 = vrot.slane %v1859, 2
        %v1886 = vsel %vm715, %v1885, %v1884
        %v1887 = vrot.slane %v1860, 1
        %v1888 = vsel %vm718, %v1887, %v1886
        %v1889 = vpack.c.b16 %v1888, %v1874
        %v1891 = vsel %vm796, %v1828, 0
        %v1894 = vsel %vm796, %v1889, 0
        %1896 = vmatpush.bf16.xpose.msra.mxu0 0
        %1897 = vmatpush.bf16.xpose.msra.mxu0 0
        %1898 = vmatpush.bf16.xpose.msra.mxu0 0
        %1899 = vmatpush.bf16.xpose.msra.mxu0 0
        %1900 = vmatpush.bf16.xpose.msra.mxu0 0
        %1901 = vmatpush.bf16.xpose.msra.mxu0 0
        %1902 = vmatpush.bf16.xpose.msra.mxu0 0
        %1903 = vmatpush.bf16.xpose.msra.mxu0 %v1894
        %1904 = vmatmul.bf16.gmra.mxu0 %v1891
        %v1905 = vpop.f32.mrf.mxu0
        %v1906 = vadd.f32 0.0, %v1905
        %v1907 = vpop.f32.mrf.mxu0
        %v1908 = vadd.f32 0.0, %v1907
        %1909 = vdwg.mxu0
        %v1910 = vsel %vm817, %v1906, -inf
        %1911 = vmax.xlane.f32.xlu0 %v1910
        %v1912 = vpop.xlane.xlu0 %1911
        %v1913 = vsel %vm817, %v1908, -inf
        %1914 = vmax.xlane.f32.xlu0 %v1913
        %v1915 = vpop.xlane.xlu0 %1914
        %v1916 = vsub.f32 %v1906, %v1912
        %v1917 = vsub.f32 %v1908, %v1915
        %v1918 = vmul.f32 %v1916, 1.442695
        %v1919 = vpow.pop %v1918
        %v1920 = vmul.f32 %v1917, 1.442695
        %v1921 = vpow.pop %v1920
        %v1922 = vsel %vm817, %v1919, 0.0
        %1923 = vadd.xlane.f32.xlu0 %v1922
        %v1924 = vpop.xlane.xlu0 %1923
        %v1925 = vsel %vm817, %v1921, 0.0
        %1926 = vadd.xlane.f32.xlu0 %v1925
        %v1927 = vpop.xlane.xlu0 %1926
        %v1928 = vrcp.pop %v1924
        %v1929 = vrcp.pop %v1927
        %v1930 = vmul.f32 %v1919, %v1928
        %v1931 = vmul.f32 %v1921, %v1929
        %v1932 = vpack.c.bf16 %v1931, %v1930
        %v1949 = vunpack.c.l.b16 %v1752
        %v1950 = vunpack.c.l.b16 %v1753
        %v1951 = vunpack.c.l.b16 %v1754
        %v1952 = vunpack.c.l.b16 %v1755
        %v1953 = vunpack.c.l.b16 %v1756
        %v1954 = vunpack.c.l.b16 %v1757
        %v1955 = vunpack.c.l.b16 %v1758
        %v1956 = vunpack.c.l.b16 %v1759
        %v1957 = vunpack.c.l.b16 %v1760
        %v1958 = vunpack.c.l.b16 %v1761
        %v1959 = vunpack.c.l.b16 %v1762
        %v1960 = vunpack.c.l.b16 %v1763
        %v1961 = vunpack.c.l.b16 %v1764
        %v1962 = vunpack.c.l.b16 %v1765
        %v1963 = vunpack.c.l.b16 %v1766
        %v1964 = vunpack.c.l.b16 %v1767
        %v1965 = vrot.slane %v1950, 7
        %v1966 = vsel %vm700, %v1965, %v1949
        %v1967 = vrot.slane %v1951, 6
        %v1968 = vsel %vm703, %v1967, %v1966
        %v1969 = vrot.slane %v1952, 5
        %v1970 = vsel %vm706, %v1969, %v1968
        %v1971 = vrot.slane %v1953, 4
        %v1972 = vsel %vm709, %v1971, %v1970
        %v1973 = vrot.slane %v1954, 3
        %v1974 = vsel %vm712, %v1973, %v1972
        %v1975 = vrot.slane %v1955, 2
        %v1976 = vsel %vm715, %v1975, %v1974
        %v1977 = vrot.slane %v1956, 1
        %v1978 = vsel %vm718, %v1977, %v1976
        %v1979 = vrot.slane %v1958, 7
        %v1980 = vsel %vm700, %v1979, %v1957
        %v1981 = vrot.slane %v1959, 6
        %v1982 = vsel %vm703, %v1981, %v1980
        %v1983 = vrot.slane %v1960, 5
        %v1984 = vsel %vm706, %v1983, %v1982
        %v1985 = vrot.slane %v1961, 4
        %v1986 = vsel %vm709, %v1985, %v1984
        %v1987 = vrot.slane %v1962, 3
        %v1988 = vsel %vm712, %v1987, %v1986
        %v1989 = vrot.slane %v1963, 2
        %v1990 = vsel %vm715, %v1989, %v1988
        %v1991 = vrot.slane %v1964, 1
        %v1992 = vsel %vm718, %v1991, %v1990
        %v1993 = vpack.c.b16 %v1992, %v1978
        %v1996 = vsel %vm817, %v1932, 0
        %1998 = vmatpush.bf16.msra.mxu0 0
        %1999 = vmatpush.bf16.msra.mxu0 0
        %2000 = vmatpush.bf16.msra.mxu0 0
        %2001 = vmatpush.bf16.msra.mxu0 0
        %2002 = vmatpush.bf16.msra.mxu0 0
        %2003 = vmatpush.bf16.msra.mxu0 0
        %2004 = vmatpush.bf16.msra.mxu0 0
        %2005 = vmatpush.bf16.msra.mxu0 %v1993
        %2006 = vmatmul.bf16.gmra.mxu0 %v1996
        %v2007 = vpop.f32.mrf.mxu0
        %v2008 = vadd.f32 0.0, %v2007
        %v2009 = vpop.f32.mrf.mxu0
        %v2010 = vadd.f32 0.0, %v2009
        %2011 = vdwg.mxu0
        %2014 = vrot.lane.b32.xlu0 %v2008, 24
        %v2015 = vpop.permute.xlu0 %2014
        %2016 = vrot.lane.b32.xlu0 %v2010, 24
        %v2017 = vpop.permute.xlu0 %2016
        %vm2020 = vcmask 261312
        %2021 = vst.msk [vmem:[%s552] sm:$0xff] %vm2020, %v2015
        %2022 = vst.msk [vmem:[%s552 + $0x8] sm:$0xff] %vm2020, %v2017
        %s2023 = smul.u32 2, %s19
        %p2024 = scmp.lt.s32.totalorder %s18, 1
        %s2025 = scalar_select %p2024, %s18, 1
        %p2026 = scmp.lt.s32.totalorder %s2023, 1
        %s2027 = scalar_select %p2026, %s2023, 1
        %s2028 = smul.addr %s2025, 2
        %s2029 = sadd.s32 %s2027, %s2028
        %s2030 = smul.addr %s2029, 8
        %s2031 = scalar_lea.vmem %s3, %s2030
        // Predicated region
        $region156: #{climax_forward.14} parent=142 // pred_check
          %p2032 = pneg %p126
        $region157: #{climax_forward.14} parent=142 // pred_check_branch
          %2034 = sbr.rel (%p2032) target = $region159
        $region158: #{climax_forward.14} parent=142 // pred_region
          %s2035 = smul.u32 2, %s19
        $region159: #{climax_forward.14} parent=142 // pred_fallthru
          _
      $region143: #{climax_forward.14} parent=5 // pred_fallthru
        _
      %p2036 = scmp.le.s32.totalorder 2, %s9
      // Predicated region
      $region160: #{climax_forward.14} parent=5 // pred_check
        %p2037 = pneg %p2036
      $region161: #{climax_forward.14} parent=5 // pred_check_branch
        %2039 = sbr.rel (%p2037) target = $region163
      $region162: #{climax_forward.14} parent=5 // pred_region
        %s2040 = ssub.s32 %s9, 2
        // Predicated region
        $region164: #{climax_forward.14} parent=162 // pred_check
          %p2041 = pneg %p132
        $region165: #{climax_forward.14} parent=162 // pred_check_branch
          %2043 = sbr.rel (%p2041) target = $region167
        $region166: #{climax_forward.14} parent=162 // pred_region
          %s2044 = smul.u32 2, %s21
          %p2045 = scmp.lt.s32.totalorder %s20, 1
          %s2046 = scalar_select %p2045, %s20, 1
          %p2047 = scmp.lt.s32.totalorder %s2044, 1
          %s2048 = scalar_select %p2047, %s2044, 1
          %s2049 = smul.addr %s2046, 2
          %s2050 = sadd.s32 %s2048, %s2049
          %s2051 = smul.addr %s2050, 8
          %s2052 = scalar_lea.vmem %s3, %s2051
        $region167: #{climax_forward.14} parent=162 // pred_fallthru
          _
      $region163: #{climax_forward.14} parent=5 // pred_fallthru
        _
    $region6: #{climax_forward.14} parent=1 // loop_footer
      %s13 = sadd.s32 1, %s9
    $region7: #{climax_forward.14} parent=1 // loop_footer_branch
      %8 = sbr.rel target = $region3
    $region8: #{climax_forward.14} parent=1 // loop_exit
      _

</llo_original>
